<compile_context>
chip_gen: v7x
topology: tpu7x:2x2x1
jax: 0.10.0
libtpu: 0.0.40
codegen_flags: <defaults>
</compile_context>

<pallas_src>
import functools
import math

import jax
import jax.numpy as jnp
from jax.experimental import pallas as pl
from jax.experimental.pallas import tpu as pltpu


_PARAM_ORDER = ("wk", "bk", "wv", "bv", "wo", "bo",
                "ln1w", "ln1b", "w1", "b1", "w2", "b2", "ln2w", "ln2b")


# ----------------------------------------------------------------------------
# Fused Pallas kernel: PE add + all transformer blocks for one batch block
# ----------------------------------------------------------------------------
def _layer_norm(x, w, b, eps=1e-5):
    mu = jnp.mean(x, axis=-1, keepdims=True)
    var = jnp.mean((x - mu) ** 2, axis=-1, keepdims=True)
    return (x - mu) * jax.lax.rsqrt(var + eps) * w + b


def _fused_forward_kernel(
    q_ref, qa_ref, pe_ref,
    wk_ref, bk_ref, wv_ref, bv_ref, wo_ref, bo_ref,
    ln1w_ref, ln1b_ref, w1_ref, b1_ref, w2_ref, b2_ref,
    ln2w_ref, ln2b_ref,
    out_ref,
    *, n_blocks, n_heads, d_k):
    pe = pe_ref[...]                                    # (S, D)
    x3 = q_ref[...].astype(jnp.float32) + pe[None]      # (Bb, S, D) query/key stream
    y3 = qa_ref[...].astype(jnp.float32) + pe[None]     # (Bb, S, D) value stream
    Bb, S, D = x3.shape

    # Masks built ONCE (hoisted out of the block / head loops).
    # mask=0 -> attend strictly to the past; zero_pad=True -> row 0 weights = 0.
    row = jax.lax.broadcasted_iota(jnp.int32, (S, S), 0)
    col = jax.lax.broadcasted_iota(jnp.int32, (S, S), 1)
    mask_bias = jnp.where(col < row, 0.0, -1e32).astype(jnp.float32)[None]  # (1,S,S)
    first_row = (row == 0)[None]                                            # (1,S,S)
    scale = 1.0 / math.sqrt(d_k)

    # Fold batch into the matmul row dimension: all projections / FFN / LN run
    # on fat (Bb*S, D) slabs.
    x2 = x3.reshape(Bb * S, D)
    y2 = y3.reshape(Bb * S, D)

    for l in range(n_blocks):             # static unroll over transformer blocks
        # ---- multi-head attention (kq_same=True, so query proj == key proj) ----
        q_proj = jnp.dot(x2, wk_ref[l], preferred_element_type=jnp.float32) + bk_ref[l]
        v_proj = jnp.dot(y2, wv_ref[l], preferred_element_type=jnp.float32) + bv_ref[l]
        q3 = q_proj.reshape(Bb, S, D)
        v3 = v_proj.reshape(Bb, S, D)

        heads = []
        for h in range(n_heads):
            sl = slice(h * d_k, (h + 1) * d_k)
            qh = q3[:, :, sl]             # (Bb, S, d_k); key == query (kq_same)
            vh = v3[:, :, sl]
            s = jnp.einsum("bqd,bkd->bqk", qh, qh,
                           preferred_element_type=jnp.float32) * scale + mask_bias
            s = s - jnp.max(s, axis=-1, keepdims=True)
            p = jnp.exp(s)
            inv = pl.reciprocal(jnp.sum(p, axis=-1, keepdims=True), approx=True)
            p = jnp.where(first_row, 0.0, p * inv)          # softmax + zero_pad
            heads.append(jnp.einsum("bqk,bkd->bqd", p, vh,
                                    preferred_element_type=jnp.float32))

        # Single output projection over the concatenated heads.
        concat = jnp.concatenate(heads, axis=-1).reshape(Bb * S, D)
        attn = jnp.dot(concat, wo_ref[l], preferred_element_type=jnp.float32) + bo_ref[l]

        # ---- residual + LayerNorm1 (dropout is identity at inference) ----
        x1 = _layer_norm(x2 + attn, ln1w_ref[l], ln1b_ref[l])

        # ---- position-wise FFN + residual + LayerNorm2 ----
        h1 = jnp.maximum(
            jnp.dot(x1, w1_ref[l], preferred_element_type=jnp.float32) + b1_ref[l], 0.0)
        ffn = jnp.dot(h1, w2_ref[l], preferred_element_type=jnp.float32) + b2_ref[l]
        x2 = _layer_norm(x1 + ffn, ln2w_ref[l], ln2b_ref[l])

    out_ref[...] = x2.reshape(Bb, S, D).astype(out_ref.dtype)


# ----------------------------------------------------------------------------
# Wrapper: one pallas_call for the entire forward
# ----------------------------------------------------------------------------
def _tensorcores_per_chip():
    try:
        kind = jax.devices()[0].device_kind.lower()
    except Exception:
        return 1
    return 2 if ("v7" in kind or "7x" in kind) else 1


def architecture_forward(q_embed_data, qa_embed_data, stacked_params, pos_emb,
                         n_heads, batch_block=None):
    B, S, D = q_embed_data.shape
    n_blocks = stacked_params["wk"].shape[0]
    d_k = D // n_heads

    if batch_block is None:
        # v7x (2 TCs): one batch element per TensorCore via a "parallel" grid.
        # v5e/v6e (1 TC): fold the whole batch into a single grid step.
        batch_block = 1 if (_tensorcores_per_chip() >= 2 and B > 1) else B
    assert B % batch_block == 0

    kern = functools.partial(_fused_forward_kernel,
                             n_blocks=n_blocks, n_heads=n_heads, d_k=d_k)

    act_spec = pl.BlockSpec((batch_block, S, D), lambda b: (b, 0, 0))
    pe_spec = pl.BlockSpec((S, D), lambda b: (0, 0))      # first S rows of pos_emb

    def wspec(arr):
        ndim = arr.ndim
        return pl.BlockSpec(arr.shape, lambda b: (0,) * ndim)   # resident weights

    weights = [stacked_params[k] for k in _PARAM_ORDER]

    return pl.pallas_call(
        kern,
        out_shape=jax.ShapeDtypeStruct((B, S, D), jnp.float32),
        grid=(B // batch_block,),
        in_specs=[act_spec, act_spec, pe_spec] + [wspec(w) for w in weights],
        out_specs=act_spec,
        compiler_params=pltpu.CompilerParams(dimension_semantics=("parallel",)),
    )(q_embed_data, qa_embed_data, pos_emb, *weights)


# ----------------------------------------------------------------------------
# Parameter construction (matches the PyTorch module's init scheme)
# ----------------------------------------------------------------------------
def cosine_positional_embedding(max_len, d_model):
    # 0.1*randn init is fully overwritten by sin/cos when d_model is even.
    position = jnp.arange(max_len, dtype=jnp.float32)[:, None]
    div_term = jnp.exp(jnp.arange(0, d_model, 2, dtype=jnp.float32)
                       * -(math.log(10000.0) / d_model))
    pe = jnp.zeros((max_len, d_model), jnp.float32)
    pe = pe.at[:, 0::2].set(jnp.sin(position * div_term))
    pe = pe.at[:, 1::2].set(jnp.cos(position * div_term))
    return pe


def init_block_params(key, d_model, d_ff):
    ks = jax.random.split(key, 5)

    def xav(k, shape):  # xavier_uniform (weights stored as (in, out))
        limit = math.sqrt(6.0 / (shape[0] + shape[1]))
        return jax.random.uniform(k, shape, jnp.float32, -limit, limit)

    return dict(
        wk=xav(ks[0], (d_model, d_model)), bk=jnp.zeros((1, d_model), jnp.float32),
        wv=xav(ks[1], (d_model, d_model)), bv=jnp.zeros((1, d_model), jnp.float32),
        wo=xav(ks[2], (d_model, d_model)), bo=jnp.zeros((1, d_model), jnp.float32),
        ln1w=jnp.ones((1, d_model), jnp.float32), ln1b=jnp.zeros((1, d_model), jnp.float32),
        w1=xav(ks[3], (d_model, d_ff)), b1=jnp.zeros((1, d_ff), jnp.float32),
        w2=xav(ks[4], (d_ff, d_model)), b2=jnp.zeros((1, d_model), jnp.float32),
        ln2w=jnp.ones((1, d_model), jnp.float32), ln2b=jnp.zeros((1, d_model), jnp.float32),
    )


def stack_block_params(blocks):
    return {k: jnp.stack([blk[k] for blk in blocks], axis=0) for k in _PARAM_ORDER}


# ----------------------------------------------------------------------------
# Plain-JAX reference (mirrors the PyTorch semantics) for correctness check
# ----------------------------------------------------------------------------
def _ref_block(x, y, p, n_heads):
    B, S, D = x.shape
    d_k = D // n_heads
    q = x @ p["wk"] + p["bk"]
    k = q
    v = y @ p["wv"] + p["bv"]

    def split(t):
        return t.reshape(B, S, n_heads, d_k).transpose(0, 2, 1, 3)

    qh, kh, vh = split(q), split(k), split(v)
    scores = jnp.einsum("bhqd,bhkd->bhqk", qh, kh) / math.sqrt(d_k)
    row = jnp.arange(S)[:, None]
    col = jnp.arange(S)[None, :]
    scores = jnp.where(col < row, scores, -1e32)
    attn = jax.nn.softmax(scores, axis=-1)
    attn = jnp.where((row == 0)[None, None], 0.0, attn)
    o = jnp.einsum("bhqk,bhkd->bhqd", attn, vh).transpose(0, 2, 1, 3).reshape(B, S, D)
    q2 = o @ p["wo"] + p["bo"]

    def ln(t, w, b):
        mu = jnp.mean(t, -1, keepdims=True)
        var = jnp.mean((t - mu) ** 2, -1, keepdims=True)
        return (t - mu) * jax.lax.rsqrt(var + 1e-5) * w + b

    x1 = ln(x + q2, p["ln1w"], p["ln1b"])
    ffn = jnp.maximum(x1 @ p["w1"] + p["b1"], 0.0) @ p["w2"] + p["b2"]
    return ln(x1 + ffn, p["ln2w"], p["ln2b"])


def _ref_forward(q_embed, qa_embed, blocks_params, pos_emb, n_heads):
    S = q_embed.shape[1]
    pe = pos_emb[:S][None, :, :]
    x = q_embed + pe
    y = qa_embed + pe
    for p in blocks_params:
        x = _ref_block(x, y, p, n_heads)
    return x


# ----------------------------------------------------------------------------
if __name__ == "__main__":
    # Architecture(n_question, n_blocks=2, d_model=32, d_feature=16, d_ff=64,
    #              n_heads=2, dropout=0.0, kq_same=1, model_type='simplekt',
    #              seq_len=64)
    B, S, D, N_HEADS, D_FF, N_BLOCKS, SEQ_LEN = 2, 8, 32, 2, 64, 2, 64

    key = jax.random.PRNGKey(0)
    k_q, k_qa, k_params = jax.random.split(key, 3)
    q_embed_data = 0.1 * jax.random.normal(k_q, (B, S, D), jnp.float32)
    qa_embed_data = 0.1 * jax.random.normal(k_qa, (B, S, D), jnp.float32)

    block_keys = jax.random.split(k_params, N_BLOCKS)
    blocks_params = [init_block_params(bk, D, D_FF) for bk in block_keys]
    stacked = stack_block_params(blocks_params)
    pos_emb = cosine_positional_embedding(SEQ_LEN, D)

    out = architecture_forward(q_embed_data, qa_embed_data, stacked, pos_emb, N_HEADS)
    out = jax.block_until_ready(out)

    ref = _ref_forward(q_embed_data, qa_embed_data, blocks_params, pos_emb, N_HEADS)
    assert out.shape == (B, S, D)
    # Tolerance accounts for the EUP approximate reciprocal in the softmax.
    assert jnp.allclose(out, ref, rtol=5e-3, atol=5e-3), "mismatch vs reference"

    print("KERNEL_OK")
</pallas_src>

<mosaic_0001>
module attributes {stable_mosaic.version = 11 : i64} {
  func.func @_fused_forward_kernel(%arg0: i32, %arg1: memref<2x8x32xf32, #tpu.memory_space<vmem>>, %arg2: memref<2x8x32xf32, #tpu.memory_space<vmem>>, %arg3: memref<8x32xf32, #tpu.memory_space<vmem>>, %arg4: memref<2x32x32xf32, #tpu.memory_space<vmem>>, %arg5: memref<2x1x32xf32, #tpu.memory_space<vmem>>, %arg6: memref<2x32x32xf32, #tpu.memory_space<vmem>>, %arg7: memref<2x1x32xf32, #tpu.memory_space<vmem>>, %arg8: memref<2x32x32xf32, #tpu.memory_space<vmem>>, %arg9: memref<2x1x32xf32, #tpu.memory_space<vmem>>, %arg10: memref<2x1x32xf32, #tpu.memory_space<vmem>>, %arg11: memref<2x1x32xf32, #tpu.memory_space<vmem>>, %arg12: memref<2x32x64xf32, #tpu.memory_space<vmem>>, %arg13: memref<2x1x64xf32, #tpu.memory_space<vmem>>, %arg14: memref<2x64x32xf32, #tpu.memory_space<vmem>>, %arg15: memref<2x1x32xf32, #tpu.memory_space<vmem>>, %arg16: memref<2x1x32xf32, #tpu.memory_space<vmem>>, %arg17: memref<2x1x32xf32, #tpu.memory_space<vmem>>, %arg18: memref<2x8x32xf32, #tpu.memory_space<vmem>>) attributes {dimension_semantics = [#tpu.dimension_semantics<parallel>], iteration_bounds = array<i64: 1>, scalar_prefetch = 0 : i64, scratch_operands = 0 : i64, tpu.core_type = #tpu.core_type<tc>, window_params = [{transform_indices = @transform_0, window_bounds = array<i64: 2, 8, 32>}, {transform_indices = @transform_1, window_bounds = array<i64: 2, 8, 32>}, {transform_indices = @transform_2, window_bounds = array<i64: 8, 32>}, {pipeline_mode = #tpu.pipeline_mode<synchronous>, transform_indices = @transform_3, window_bounds = array<i64: 2, 32, 32>}, {pipeline_mode = #tpu.pipeline_mode<synchronous>, transform_indices = @transform_4, window_bounds = array<i64: 2, 1, 32>}, {pipeline_mode = #tpu.pipeline_mode<synchronous>, transform_indices = @transform_5, window_bounds = array<i64: 2, 32, 32>}, {pipeline_mode = #tpu.pipeline_mode<synchronous>, transform_indices = @transform_6, window_bounds = array<i64: 2, 1, 32>}, {pipeline_mode = #tpu.pipeline_mode<synchronous>, transform_indices = @transform_7, window_bounds = array<i64: 2, 32, 32>}, {pipeline_mode = #tpu.pipeline_mode<synchronous>, transform_indices = @transform_8, window_bounds = array<i64: 2, 1, 32>}, {pipeline_mode = #tpu.pipeline_mode<synchronous>, transform_indices = @transform_9, window_bounds = array<i64: 2, 1, 32>}, {pipeline_mode = #tpu.pipeline_mode<synchronous>, transform_indices = @transform_10, window_bounds = array<i64: 2, 1, 32>}, {pipeline_mode = #tpu.pipeline_mode<synchronous>, transform_indices = @transform_11, window_bounds = array<i64: 2, 32, 64>}, {pipeline_mode = #tpu.pipeline_mode<synchronous>, transform_indices = @transform_12, window_bounds = array<i64: 2, 1, 64>}, {pipeline_mode = #tpu.pipeline_mode<synchronous>, transform_indices = @transform_13, window_bounds = array<i64: 2, 64, 32>}, {pipeline_mode = #tpu.pipeline_mode<synchronous>, transform_indices = @transform_14, window_bounds = array<i64: 2, 1, 32>}, {pipeline_mode = #tpu.pipeline_mode<synchronous>, transform_indices = @transform_15, window_bounds = array<i64: 2, 1, 32>}, {pipeline_mode = #tpu.pipeline_mode<synchronous>, transform_indices = @transform_16, window_bounds = array<i64: 2, 1, 32>}, {transform_indices = @transform_17, window_bounds = array<i64: 2, 8, 32>}]} {
    %c0 = arith.constant 0 : index
    %c0_0 = arith.constant 0 : index
    %0 = vector.load %arg3[%c0, %c0_0] : memref<8x32xf32, #tpu.memory_space<vmem>>, vector<8x32xf32>
    %c0_1 = arith.constant 0 : index
    %c0_2 = arith.constant 0 : index
    %c0_3 = arith.constant 0 : index
    %1 = vector.load %arg1[%c0_1, %c0_2, %c0_3] : memref<2x8x32xf32, #tpu.memory_space<vmem>>, vector<2x8x32xf32>
    %2 = vector.shape_cast %0 : vector<8x32xf32> to vector<1x8x32xf32>
    %3 = vector.broadcast %2 : vector<1x8x32xf32> to vector<2x8x32xf32>
    %4 = arith.addf %1, %3 : vector<2x8x32xf32>
    %c0_4 = arith.constant 0 : index
    %c0_5 = arith.constant 0 : index
    %c0_6 = arith.constant 0 : index
    %5 = vector.load %arg2[%c0_4, %c0_5, %c0_6] : memref<2x8x32xf32, #tpu.memory_space<vmem>>, vector<2x8x32xf32>
    %6 = vector.shape_cast %0 : vector<8x32xf32> to vector<1x8x32xf32>
    %7 = vector.broadcast %6 : vector<1x8x32xf32> to vector<2x8x32xf32>
    %8 = arith.addf %5, %7 : vector<2x8x32xf32>
    %9 = tpu.iota {dimensions = array<i32: 0>} : vector<8x8xi32>
    %10 = tpu.iota {dimensions = array<i32: 1>} : vector<8x8xi32>
    %11 = arith.cmpi slt, %10, %9 : vector<8x8xi32>
    %cst = arith.constant 0.000000e+00 : f32
    %cst_7 = arith.constant -1.000000e+32 : f32
    %12 = vector.broadcast %cst : f32 to vector<8x8xf32>
    %13 = vector.broadcast %cst_7 : f32 to vector<8x8xf32>
    %14 = arith.select %11, %12, %13 : vector<8x8xi1>, vector<8x8xf32>
    %15 = vector.shape_cast %14 : vector<8x8xf32> to vector<1x8x8xf32>
    %c0_i32 = arith.constant 0 : i32
    %16 = vector.broadcast %c0_i32 : i32 to vector<8x8xi32>
    %17 = arith.cmpi eq, %9, %16 : vector<8x8xi32>
    %18 = vector.shape_cast %17 : vector<8x8xi1> to vector<1x8x8xi1>
    %19 = vector.shape_cast %4 : vector<2x8x32xf32> to vector<16x32xf32>
    %20 = vector.shape_cast %8 : vector<2x8x32xf32> to vector<16x32xf32>
    %c0_8 = arith.constant 0 : index
    %c0_9 = arith.constant 0 : index
    %c0_10 = arith.constant 0 : index
    %21 = vector.load %arg4[%c0_8, %c0_9, %c0_10] : memref<2x32x32xf32, #tpu.memory_space<vmem>>, vector<1x32x32xf32>
    %22 = vector.shape_cast %21 : vector<1x32x32xf32> to vector<32x32xf32>
    %cst_11 = arith.constant dense<0.000000e+00> : vector<16x32xf32>
    %23 = tpu.matmul %19, %22, %cst_11 {dimension_numbers = #tpu.dot_dimension_numbers<[1], [0], [0], [1], [0, 0, 1, 1], [], []>} : vector<16x32xf32>, vector<32x32xf32>, vector<16x32xf32> -> vector<16x32xf32>
    %c0_12 = arith.constant 0 : index
    %c0_13 = arith.constant 0 : index
    %c0_14 = arith.constant 0 : index
    %24 = vector.load %arg5[%c0_12, %c0_13, %c0_14] : memref<2x1x32xf32, #tpu.memory_space<vmem>>, vector<1x1x32xf32>
    %25 = vector.shape_cast %24 : vector<1x1x32xf32> to vector<1x32xf32>
    %26 = vector.broadcast %25 : vector<1x32xf32> to vector<16x32xf32>
    %27 = arith.addf %23, %26 : vector<16x32xf32>
    %c0_15 = arith.constant 0 : index
    %c0_16 = arith.constant 0 : index
    %c0_17 = arith.constant 0 : index
    %28 = vector.load %arg6[%c0_15, %c0_16, %c0_17] : memref<2x32x32xf32, #tpu.memory_space<vmem>>, vector<1x32x32xf32>
    %29 = vector.shape_cast %28 : vector<1x32x32xf32> to vector<32x32xf32>
    %cst_18 = arith.constant dense<0.000000e+00> : vector<16x32xf32>
    %30 = tpu.matmul %20, %29, %cst_18 {dimension_numbers = #tpu.dot_dimension_numbers<[1], [0], [0], [1], [0, 0, 1, 1], [], []>} : vector<16x32xf32>, vector<32x32xf32>, vector<16x32xf32> -> vector<16x32xf32>
    %c0_19 = arith.constant 0 : index
    %c0_20 = arith.constant 0 : index
    %c0_21 = arith.constant 0 : index
    %31 = vector.load %arg7[%c0_19, %c0_20, %c0_21] : memref<2x1x32xf32, #tpu.memory_space<vmem>>, vector<1x1x32xf32>
    %32 = vector.shape_cast %31 : vector<1x1x32xf32> to vector<1x32xf32>
    %33 = vector.broadcast %32 : vector<1x32xf32> to vector<16x32xf32>
    %34 = arith.addf %30, %33 : vector<16x32xf32>
    %35 = vector.shape_cast %27 : vector<16x32xf32> to vector<2x8x32xf32>
    %36 = vector.shape_cast %34 : vector<16x32xf32> to vector<2x8x32xf32>
    %37 = vector.extract_strided_slice %35 {offsets = [0, 0, 0], sizes = [2, 8, 16], strides = [1, 1, 1]} : vector<2x8x32xf32> to vector<2x8x16xf32>
    %38 = vector.extract_strided_slice %36 {offsets = [0, 0, 0], sizes = [2, 8, 16], strides = [1, 1, 1]} : vector<2x8x32xf32> to vector<2x8x16xf32>
    "tpu.trace_start"() <{level = 10 : i32, message = "bqd,bkd->bqk"}> : () -> ()
    %cst_22 = arith.constant dense<0.000000e+00> : vector<2x8x8xf32>
    %39 = tpu.matmul %37, %37, %cst_22 {dimension_numbers = #tpu.dot_dimension_numbers<[2], [2], [1], [1], [0, 0, 0, 1, 1, 1], [0], [0]>} : vector<2x8x16xf32>, vector<2x8x16xf32>, vector<2x8x8xf32> -> vector<2x8x8xf32>
    "tpu.trace_stop"() : () -> ()
    %cst_23 = arith.constant 2.500000e-01 : f32
    %40 = vector.broadcast %cst_23 : f32 to vector<2x8x8xf32>
    %41 = arith.mulf %39, %40 : vector<2x8x8xf32>
    %42 = vector.broadcast %15 : vector<1x8x8xf32> to vector<2x8x8xf32>
    %43 = arith.addf %41, %42 : vector<2x8x8xf32>
    %cst_24 = arith.constant dense<0xFF800000> : vector<2x8xf32>
    %44 = vector.multi_reduction <maximumf>, %43, %cst_24 [2] : vector<2x8x8xf32> to vector<2x8xf32>
    %45 = vector.shape_cast %44 : vector<2x8xf32> to vector<2x8x1xf32>
    %46 = vector.broadcast %45 : vector<2x8x1xf32> to vector<2x8x8xf32>
    %47 = arith.subf %43, %46 : vector<2x8x8xf32>
    %48 = math.exp %47 : vector<2x8x8xf32>
    %cst_25 = arith.constant dense<0.000000e+00> : vector<2x8xf32>
    %49 = vector.multi_reduction <add>, %48, %cst_25 [2] : vector<2x8x8xf32> to vector<2x8xf32>
    %50 = vector.shape_cast %49 : vector<2x8xf32> to vector<2x8x1xf32>
    %51 = tpu.reciprocal %50 {approx = true} : vector<2x8x1xf32> -> vector<2x8x1xf32>
    %52 = vector.broadcast %51 : vector<2x8x1xf32> to vector<2x8x8xf32>
    %53 = arith.mulf %48, %52 : vector<2x8x8xf32>
    %cst_26 = arith.constant 0.000000e+00 : f32
    %54 = vector.shape_cast %18 : vector<1x8x8xi1> to vector<1x8x8xi1>
    %55 = vector.broadcast %54 : vector<1x8x8xi1> to vector<2x8x8xi1>
    %56 = vector.broadcast %cst_26 : f32 to vector<2x8x8xf32>
    %57 = arith.select %55, %56, %53 : vector<2x8x8xi1>, vector<2x8x8xf32>
    "tpu.trace_start"() <{level = 10 : i32, message = "bqk,bkd->bqd"}> : () -> ()
    %cst_27 = arith.constant dense<0.000000e+00> : vector<2x8x16xf32>
    %58 = tpu.matmul %57, %38, %cst_27 {dimension_numbers = #tpu.dot_dimension_numbers<[2], [1], [1], [2], [0, 0, 0, 1, 1, 2], [0], [0]>} : vector<2x8x8xf32>, vector<2x8x16xf32>, vector<2x8x16xf32> -> vector<2x8x16xf32>
    "tpu.trace_stop"() : () -> ()
    %59 = vector.extract_strided_slice %35 {offsets = [0, 0, 16], sizes = [2, 8, 16], strides = [1, 1, 1]} : vector<2x8x32xf32> to vector<2x8x16xf32>
    %60 = vector.extract_strided_slice %36 {offsets = [0, 0, 16], sizes = [2, 8, 16], strides = [1, 1, 1]} : vector<2x8x32xf32> to vector<2x8x16xf32>
    "tpu.trace_start"() <{level = 10 : i32, message = "bqd,bkd->bqk"}> : () -> ()
    %cst_28 = arith.constant dense<0.000000e+00> : vector<2x8x8xf32>
    %61 = tpu.matmul %59, %59, %cst_28 {dimension_numbers = #tpu.dot_dimension_numbers<[2], [2], [1], [1], [0, 0, 0, 1, 1, 1], [0], [0]>} : vector<2x8x16xf32>, vector<2x8x16xf32>, vector<2x8x8xf32> -> vector<2x8x8xf32>
    "tpu.trace_stop"() : () -> ()
    %cst_29 = arith.constant 2.500000e-01 : f32
    %62 = vector.broadcast %cst_29 : f32 to vector<2x8x8xf32>
    %63 = arith.mulf %61, %62 : vector<2x8x8xf32>
    %64 = vector.broadcast %15 : vector<1x8x8xf32> to vector<2x8x8xf32>
    %65 = arith.addf %63, %64 : vector<2x8x8xf32>
    %cst_30 = arith.constant dense<0xFF800000> : vector<2x8xf32>
    %66 = vector.multi_reduction <maximumf>, %65, %cst_30 [2] : vector<2x8x8xf32> to vector<2x8xf32>
    %67 = vector.shape_cast %66 : vector<2x8xf32> to vector<2x8x1xf32>
    %68 = vector.broadcast %67 : vector<2x8x1xf32> to vector<2x8x8xf32>
    %69 = arith.subf %65, %68 : vector<2x8x8xf32>
    %70 = math.exp %69 : vector<2x8x8xf32>
    %cst_31 = arith.constant dense<0.000000e+00> : vector<2x8xf32>
    %71 = vector.multi_reduction <add>, %70, %cst_31 [2] : vector<2x8x8xf32> to vector<2x8xf32>
    %72 = vector.shape_cast %71 : vector<2x8xf32> to vector<2x8x1xf32>
    %73 = tpu.reciprocal %72 {approx = true} : vector<2x8x1xf32> -> vector<2x8x1xf32>
    %74 = vector.broadcast %73 : vector<2x8x1xf32> to vector<2x8x8xf32>
    %75 = arith.mulf %70, %74 : vector<2x8x8xf32>
    %cst_32 = arith.constant 0.000000e+00 : f32
    %76 = vector.shape_cast %18 : vector<1x8x8xi1> to vector<1x8x8xi1>
    %77 = vector.broadcast %76 : vector<1x8x8xi1> to vector<2x8x8xi1>
    %78 = vector.broadcast %cst_32 : f32 to vector<2x8x8xf32>
    %79 = arith.select %77, %78, %75 : vector<2x8x8xi1>, vector<2x8x8xf32>
    "tpu.trace_start"() <{level = 10 : i32, message = "bqk,bkd->bqd"}> : () -> ()
    %cst_33 = arith.constant dense<0.000000e+00> : vector<2x8x16xf32>
    %80 = tpu.matmul %79, %60, %cst_33 {dimension_numbers = #tpu.dot_dimension_numbers<[2], [1], [1], [2], [0, 0, 0, 1, 1, 2], [0], [0]>} : vector<2x8x8xf32>, vector<2x8x16xf32>, vector<2x8x16xf32> -> vector<2x8x16xf32>
    "tpu.trace_stop"() : () -> ()
    %81 = tpu.concatenate %58, %80 in 2 : vector<2x8x16xf32>, vector<2x8x16xf32> -> vector<2x8x32xf32>
    %82 = vector.shape_cast %81 : vector<2x8x32xf32> to vector<16x32xf32>
    %c0_34 = arith.constant 0 : index
    %c0_35 = arith.constant 0 : index
    %c0_36 = arith.constant 0 : index
    %83 = vector.load %arg8[%c0_34, %c0_35, %c0_36] : memref<2x32x32xf32, #tpu.memory_space<vmem>>, vector<1x32x32xf32>
    %84 = vector.shape_cast %83 : vector<1x32x32xf32> to vector<32x32xf32>
    %cst_37 = arith.constant dense<0.000000e+00> : vector<16x32xf32>
    %85 = tpu.matmul %82, %84, %cst_37 {dimension_numbers = #tpu.dot_dimension_numbers<[1], [0], [0], [1], [0, 0, 1, 1], [], []>} : vector<16x32xf32>, vector<32x32xf32>, vector<16x32xf32> -> vector<16x32xf32>
    %c0_38 = arith.constant 0 : index
    %c0_39 = arith.constant 0 : index
    %c0_40 = arith.constant 0 : index
    %86 = vector.load %arg9[%c0_38, %c0_39, %c0_40] : memref<2x1x32xf32, #tpu.memory_space<vmem>>, vector<1x1x32xf32>
    %87 = vector.shape_cast %86 : vector<1x1x32xf32> to vector<1x32xf32>
    %88 = vector.broadcast %87 : vector<1x32xf32> to vector<16x32xf32>
    %89 = arith.addf %85, %88 : vector<16x32xf32>
    %90 = arith.addf %19, %89 : vector<16x32xf32>
    %c0_41 = arith.constant 0 : index
    %c0_42 = arith.constant 0 : index
    %c0_43 = arith.constant 0 : index
    %91 = vector.load %arg10[%c0_41, %c0_42, %c0_43] : memref<2x1x32xf32, #tpu.memory_space<vmem>>, vector<1x1x32xf32>
    %92 = vector.shape_cast %91 : vector<1x1x32xf32> to vector<1x32xf32>
    %c0_44 = arith.constant 0 : index
    %c0_45 = arith.constant 0 : index
    %c0_46 = arith.constant 0 : index
    %93 = vector.load %arg11[%c0_44, %c0_45, %c0_46] : memref<2x1x32xf32, #tpu.memory_space<vmem>>, vector<1x1x32xf32>
    %94 = vector.shape_cast %93 : vector<1x1x32xf32> to vector<1x32xf32>
    %cst_47 = arith.constant dense<0.000000e+00> : vector<16xf32>
    %95 = vector.multi_reduction <add>, %90, %cst_47 [1] : vector<16x32xf32> to vector<16xf32>
    %96 = vector.shape_cast %95 : vector<16xf32> to vector<16x1xf32>
    %cst_48 = arith.constant 3.200000e+01 : f32
    %97 = vector.broadcast %cst_48 : f32 to vector<16x1xf32>
    %98 = arith.divf %96, %97 : vector<16x1xf32>
    %99 = vector.broadcast %98 : vector<16x1xf32> to vector<16x32xf32>
    %100 = arith.subf %90, %99 : vector<16x32xf32>
    %101 = arith.mulf %100, %100 : vector<16x32xf32>
    %cst_49 = arith.constant dense<0.000000e+00> : vector<16xf32>
    %102 = vector.multi_reduction <add>, %101, %cst_49 [1] : vector<16x32xf32> to vector<16xf32>
    %103 = vector.shape_cast %102 : vector<16xf32> to vector<16x1xf32>
    %cst_50 = arith.constant 3.200000e+01 : f32
    %104 = vector.broadcast %cst_50 : f32 to vector<16x1xf32>
    %105 = arith.divf %103, %104 : vector<16x1xf32>
    %106 = vector.broadcast %98 : vector<16x1xf32> to vector<16x32xf32>
    %107 = arith.subf %90, %106 : vector<16x32xf32>
    %cst_51 = arith.constant 9.99999974E-6 : f32
    %108 = vector.broadcast %cst_51 : f32 to vector<16x1xf32>
    %109 = arith.addf %105, %108 : vector<16x1xf32>
    %110 = math.rsqrt %109 : vector<16x1xf32>
    %111 = vector.broadcast %110 : vector<16x1xf32> to vector<16x32xf32>
    %112 = arith.mulf %107, %111 : vector<16x32xf32>
    %113 = vector.broadcast %92 : vector<1x32xf32> to vector<16x32xf32>
    %114 = arith.mulf %112, %113 : vector<16x32xf32>
    %115 = vector.broadcast %94 : vector<1x32xf32> to vector<16x32xf32>
    %116 = arith.addf %114, %115 : vector<16x32xf32>
    %c0_52 = arith.constant 0 : index
    %c0_53 = arith.constant 0 : index
    %c0_54 = arith.constant 0 : index
    %117 = vector.load %arg12[%c0_52, %c0_53, %c0_54] : memref<2x32x64xf32, #tpu.memory_space<vmem>>, vector<1x32x64xf32>
    %118 = vector.shape_cast %117 : vector<1x32x64xf32> to vector<32x64xf32>
    %cst_55 = arith.constant dense<0.000000e+00> : vector<16x64xf32>
    %119 = tpu.matmul %116, %118, %cst_55 {dimension_numbers = #tpu.dot_dimension_numbers<[1], [0], [0], [1], [0, 0, 1, 1], [], []>} : vector<16x32xf32>, vector<32x64xf32>, vector<16x64xf32> -> vector<16x64xf32>
    %c0_56 = arith.constant 0 : index
    %c0_57 = arith.constant 0 : index
    %c0_58 = arith.constant 0 : index
    %120 = vector.load %arg13[%c0_56, %c0_57, %c0_58] : memref<2x1x64xf32, #tpu.memory_space<vmem>>, vector<1x1x64xf32>
    %121 = vector.shape_cast %120 : vector<1x1x64xf32> to vector<1x64xf32>
    %122 = vector.broadcast %121 : vector<1x64xf32> to vector<16x64xf32>
    %123 = arith.addf %119, %122 : vector<16x64xf32>
    %cst_59 = arith.constant 0.000000e+00 : f32
    %124 = vector.broadcast %cst_59 : f32 to vector<16x64xf32>
    %125 = arith.maximumf %123, %124 : vector<16x64xf32>
    %c0_60 = arith.constant 0 : index
    %c0_61 = arith.constant 0 : index
    %c0_62 = arith.constant 0 : index
    %126 = vector.load %arg14[%c0_60, %c0_61, %c0_62] : memref<2x64x32xf32, #tpu.memory_space<vmem>>, vector<1x64x32xf32>
    %127 = vector.shape_cast %126 : vector<1x64x32xf32> to vector<64x32xf32>
    %cst_63 = arith.constant dense<0.000000e+00> : vector<16x32xf32>
    %128 = tpu.matmul %125, %127, %cst_63 {dimension_numbers = #tpu.dot_dimension_numbers<[1], [0], [0], [1], [0, 0, 1, 1], [], []>} : vector<16x64xf32>, vector<64x32xf32>, vector<16x32xf32> -> vector<16x32xf32>
    %c0_64 = arith.constant 0 : index
    %c0_65 = arith.constant 0 : index
    %c0_66 = arith.constant 0 : index
    %129 = vector.load %arg15[%c0_64, %c0_65, %c0_66] : memref<2x1x32xf32, #tpu.memory_space<vmem>>, vector<1x1x32xf32>
    %130 = vector.shape_cast %129 : vector<1x1x32xf32> to vector<1x32xf32>
    %131 = vector.broadcast %130 : vector<1x32xf32> to vector<16x32xf32>
    %132 = arith.addf %128, %131 : vector<16x32xf32>
    %133 = arith.addf %116, %132 : vector<16x32xf32>
    %c0_67 = arith.constant 0 : index
    %c0_68 = arith.constant 0 : index
    %c0_69 = arith.constant 0 : index
    %134 = vector.load %arg16[%c0_67, %c0_68, %c0_69] : memref<2x1x32xf32, #tpu.memory_space<vmem>>, vector<1x1x32xf32>
    %135 = vector.shape_cast %134 : vector<1x1x32xf32> to vector<1x32xf32>
    %c0_70 = arith.constant 0 : index
    %c0_71 = arith.constant 0 : index
    %c0_72 = arith.constant 0 : index
    %136 = vector.load %arg17[%c0_70, %c0_71, %c0_72] : memref<2x1x32xf32, #tpu.memory_space<vmem>>, vector<1x1x32xf32>
    %137 = vector.shape_cast %136 : vector<1x1x32xf32> to vector<1x32xf32>
    %cst_73 = arith.constant dense<0.000000e+00> : vector<16xf32>
    %138 = vector.multi_reduction <add>, %133, %cst_73 [1] : vector<16x32xf32> to vector<16xf32>
    %139 = vector.shape_cast %138 : vector<16xf32> to vector<16x1xf32>
    %cst_74 = arith.constant 3.200000e+01 : f32
    %140 = vector.broadcast %cst_74 : f32 to vector<16x1xf32>
    %141 = arith.divf %139, %140 : vector<16x1xf32>
    %142 = vector.broadcast %141 : vector<16x1xf32> to vector<16x32xf32>
    %143 = arith.subf %133, %142 : vector<16x32xf32>
    %144 = arith.mulf %143, %143 : vector<16x32xf32>
    %cst_75 = arith.constant dense<0.000000e+00> : vector<16xf32>
    %145 = vector.multi_reduction <add>, %144, %cst_75 [1] : vector<16x32xf32> to vector<16xf32>
    %146 = vector.shape_cast %145 : vector<16xf32> to vector<16x1xf32>
    %cst_76 = arith.constant 3.200000e+01 : f32
    %147 = vector.broadcast %cst_76 : f32 to vector<16x1xf32>
    %148 = arith.divf %146, %147 : vector<16x1xf32>
    %149 = vector.broadcast %141 : vector<16x1xf32> to vector<16x32xf32>
    %150 = arith.subf %133, %149 : vector<16x32xf32>
    %cst_77 = arith.constant 9.99999974E-6 : f32
    %151 = vector.broadcast %cst_77 : f32 to vector<16x1xf32>
    %152 = arith.addf %148, %151 : vector<16x1xf32>
    %153 = math.rsqrt %152 : vector<16x1xf32>
    %154 = vector.broadcast %153 : vector<16x1xf32> to vector<16x32xf32>
    %155 = arith.mulf %150, %154 : vector<16x32xf32>
    %156 = vector.broadcast %135 : vector<1x32xf32> to vector<16x32xf32>
    %157 = arith.mulf %155, %156 : vector<16x32xf32>
    %158 = vector.broadcast %137 : vector<1x32xf32> to vector<16x32xf32>
    %159 = arith.addf %157, %158 : vector<16x32xf32>
    %c1 = arith.constant 1 : index
    %c0_78 = arith.constant 0 : index
    %c0_79 = arith.constant 0 : index
    %160 = vector.load %arg4[%c1, %c0_78, %c0_79] : memref<2x32x32xf32, #tpu.memory_space<vmem>>, vector<1x32x32xf32>
    %161 = vector.shape_cast %160 : vector<1x32x32xf32> to vector<32x32xf32>
    %cst_80 = arith.constant dense<0.000000e+00> : vector<16x32xf32>
    %162 = tpu.matmul %159, %161, %cst_80 {dimension_numbers = #tpu.dot_dimension_numbers<[1], [0], [0], [1], [0, 0, 1, 1], [], []>} : vector<16x32xf32>, vector<32x32xf32>, vector<16x32xf32> -> vector<16x32xf32>
    %c1_81 = arith.constant 1 : index
    %c0_82 = arith.constant 0 : index
    %c0_83 = arith.constant 0 : index
    %163 = vector.load %arg5[%c1_81, %c0_82, %c0_83] : memref<2x1x32xf32, #tpu.memory_space<vmem>>, vector<1x1x32xf32>
    %164 = vector.shape_cast %163 : vector<1x1x32xf32> to vector<1x32xf32>
    %165 = vector.broadcast %164 : vector<1x32xf32> to vector<16x32xf32>
    %166 = arith.addf %162, %165 : vector<16x32xf32>
    %c1_84 = arith.constant 1 : index
    %c0_85 = arith.constant 0 : index
    %c0_86 = arith.constant 0 : index
    %167 = vector.load %arg6[%c1_84, %c0_85, %c0_86] : memref<2x32x32xf32, #tpu.memory_space<vmem>>, vector<1x32x32xf32>
    %168 = vector.shape_cast %167 : vector<1x32x32xf32> to vector<32x32xf32>
    %cst_87 = arith.constant dense<0.000000e+00> : vector<16x32xf32>
    %169 = tpu.matmul %20, %168, %cst_87 {dimension_numbers = #tpu.dot_dimension_numbers<[1], [0], [0], [1], [0, 0, 1, 1], [], []>} : vector<16x32xf32>, vector<32x32xf32>, vector<16x32xf32> -> vector<16x32xf32>
    %c1_88 = arith.constant 1 : index
    %c0_89 = arith.constant 0 : index
    %c0_90 = arith.constant 0 : index
    %170 = vector.load %arg7[%c1_88, %c0_89, %c0_90] : memref<2x1x32xf32, #tpu.memory_space<vmem>>, vector<1x1x32xf32>
    %171 = vector.shape_cast %170 : vector<1x1x32xf32> to vector<1x32xf32>
    %172 = vector.broadcast %171 : vector<1x32xf32> to vector<16x32xf32>
    %173 = arith.addf %169, %172 : vector<16x32xf32>
    %174 = vector.shape_cast %166 : vector<16x32xf32> to vector<2x8x32xf32>
    %175 = vector.shape_cast %173 : vector<16x32xf32> to vector<2x8x32xf32>
    %176 = vector.extract_strided_slice %174 {offsets = [0, 0, 0], sizes = [2, 8, 16], strides = [1, 1, 1]} : vector<2x8x32xf32> to vector<2x8x16xf32>
    %177 = vector.extract_strided_slice %175 {offsets = [0, 0, 0], sizes = [2, 8, 16], strides = [1, 1, 1]} : vector<2x8x32xf32> to vector<2x8x16xf32>
    "tpu.trace_start"() <{level = 10 : i32, message = "bqd,bkd->bqk"}> : () -> ()
    %cst_91 = arith.constant dense<0.000000e+00> : vector<2x8x8xf32>
    %178 = tpu.matmul %176, %176, %cst_91 {dimension_numbers = #tpu.dot_dimension_numbers<[2], [2], [1], [1], [0, 0, 0, 1, 1, 1], [0], [0]>} : vector<2x8x16xf32>, vector<2x8x16xf32>, vector<2x8x8xf32> -> vector<2x8x8xf32>
    "tpu.trace_stop"() : () -> ()
    %cst_92 = arith.constant 2.500000e-01 : f32
    %179 = vector.broadcast %cst_92 : f32 to vector<2x8x8xf32>
    %180 = arith.mulf %178, %179 : vector<2x8x8xf32>
    %181 = vector.broadcast %15 : vector<1x8x8xf32> to vector<2x8x8xf32>
    %182 = arith.addf %180, %181 : vector<2x8x8xf32>
    %cst_93 = arith.constant dense<0xFF800000> : vector<2x8xf32>
    %183 = vector.multi_reduction <maximumf>, %182, %cst_93 [2] : vector<2x8x8xf32> to vector<2x8xf32>
    %184 = vector.shape_cast %183 : vector<2x8xf32> to vector<2x8x1xf32>
    %185 = vector.broadcast %184 : vector<2x8x1xf32> to vector<2x8x8xf32>
    %186 = arith.subf %182, %185 : vector<2x8x8xf32>
    %187 = math.exp %186 : vector<2x8x8xf32>
    %cst_94 = arith.constant dense<0.000000e+00> : vector<2x8xf32>
    %188 = vector.multi_reduction <add>, %187, %cst_94 [2] : vector<2x8x8xf32> to vector<2x8xf32>
    %189 = vector.shape_cast %188 : vector<2x8xf32> to vector<2x8x1xf32>
    %190 = tpu.reciprocal %189 {approx = true} : vector<2x8x1xf32> -> vector<2x8x1xf32>
    %191 = vector.broadcast %190 : vector<2x8x1xf32> to vector<2x8x8xf32>
    %192 = arith.mulf %187, %191 : vector<2x8x8xf32>
    %cst_95 = arith.constant 0.000000e+00 : f32
    %193 = vector.shape_cast %18 : vector<1x8x8xi1> to vector<1x8x8xi1>
    %194 = vector.broadcast %193 : vector<1x8x8xi1> to vector<2x8x8xi1>
    %195 = vector.broadcast %cst_95 : f32 to vector<2x8x8xf32>
    %196 = arith.select %194, %195, %192 : vector<2x8x8xi1>, vector<2x8x8xf32>
    "tpu.trace_start"() <{level = 10 : i32, message = "bqk,bkd->bqd"}> : () -> ()
    %cst_96 = arith.constant dense<0.000000e+00> : vector<2x8x16xf32>
    %197 = tpu.matmul %196, %177, %cst_96 {dimension_numbers = #tpu.dot_dimension_numbers<[2], [1], [1], [2], [0, 0, 0, 1, 1, 2], [0], [0]>} : vector<2x8x8xf32>, vector<2x8x16xf32>, vector<2x8x16xf32> -> vector<2x8x16xf32>
    "tpu.trace_stop"() : () -> ()
    %198 = vector.extract_strided_slice %174 {offsets = [0, 0, 16], sizes = [2, 8, 16], strides = [1, 1, 1]} : vector<2x8x32xf32> to vector<2x8x16xf32>
    %199 = vector.extract_strided_slice %175 {offsets = [0, 0, 16], sizes = [2, 8, 16], strides = [1, 1, 1]} : vector<2x8x32xf32> to vector<2x8x16xf32>
    "tpu.trace_start"() <{level = 10 : i32, message = "bqd,bkd->bqk"}> : () -> ()
    %cst_97 = arith.constant dense<0.000000e+00> : vector<2x8x8xf32>
    %200 = tpu.matmul %198, %198, %cst_97 {dimension_numbers = #tpu.dot_dimension_numbers<[2], [2], [1], [1], [0, 0, 0, 1, 1, 1], [0], [0]>} : vector<2x8x16xf32>, vector<2x8x16xf32>, vector<2x8x8xf32> -> vector<2x8x8xf32>
    "tpu.trace_stop"() : () -> ()
    %cst_98 = arith.constant 2.500000e-01 : f32
    %201 = vector.broadcast %cst_98 : f32 to vector<2x8x8xf32>
    %202 = arith.mulf %200, %201 : vector<2x8x8xf32>
    %203 = vector.broadcast %15 : vector<1x8x8xf32> to vector<2x8x8xf32>
    %204 = arith.addf %202, %203 : vector<2x8x8xf32>
    %cst_99 = arith.constant dense<0xFF800000> : vector<2x8xf32>
    %205 = vector.multi_reduction <maximumf>, %204, %cst_99 [2] : vector<2x8x8xf32> to vector<2x8xf32>
    %206 = vector.shape_cast %205 : vector<2x8xf32> to vector<2x8x1xf32>
    %207 = vector.broadcast %206 : vector<2x8x1xf32> to vector<2x8x8xf32>
    %208 = arith.subf %204, %207 : vector<2x8x8xf32>
    %209 = math.exp %208 : vector<2x8x8xf32>
    %cst_100 = arith.constant dense<0.000000e+00> : vector<2x8xf32>
    %210 = vector.multi_reduction <add>, %209, %cst_100 [2] : vector<2x8x8xf32> to vector<2x8xf32>
    %211 = vector.shape_cast %210 : vector<2x8xf32> to vector<2x8x1xf32>
    %212 = tpu.reciprocal %211 {approx = true} : vector<2x8x1xf32> -> vector<2x8x1xf32>
    %213 = vector.broadcast %212 : vector<2x8x1xf32> to vector<2x8x8xf32>
    %214 = arith.mulf %209, %213 : vector<2x8x8xf32>
    %cst_101 = arith.constant 0.000000e+00 : f32
    %215 = vector.shape_cast %18 : vector<1x8x8xi1> to vector<1x8x8xi1>
    %216 = vector.broadcast %215 : vector<1x8x8xi1> to vector<2x8x8xi1>
    %217 = vector.broadcast %cst_101 : f32 to vector<2x8x8xf32>
    %218 = arith.select %216, %217, %214 : vector<2x8x8xi1>, vector<2x8x8xf32>
    "tpu.trace_start"() <{level = 10 : i32, message = "bqk,bkd->bqd"}> : () -> ()
    %cst_102 = arith.constant dense<0.000000e+00> : vector<2x8x16xf32>
    %219 = tpu.matmul %218, %199, %cst_102 {dimension_numbers = #tpu.dot_dimension_numbers<[2], [1], [1], [2], [0, 0, 0, 1, 1, 2], [0], [0]>} : vector<2x8x8xf32>, vector<2x8x16xf32>, vector<2x8x16xf32> -> vector<2x8x16xf32>
    "tpu.trace_stop"() : () -> ()
    %220 = tpu.concatenate %197, %219 in 2 : vector<2x8x16xf32>, vector<2x8x16xf32> -> vector<2x8x32xf32>
    %221 = vector.shape_cast %220 : vector<2x8x32xf32> to vector<16x32xf32>
    %c1_103 = arith.constant 1 : index
    %c0_104 = arith.constant 0 : index
    %c0_105 = arith.constant 0 : index
    %222 = vector.load %arg8[%c1_103, %c0_104, %c0_105] : memref<2x32x32xf32, #tpu.memory_space<vmem>>, vector<1x32x32xf32>
    %223 = vector.shape_cast %222 : vector<1x32x32xf32> to vector<32x32xf32>
    %cst_106 = arith.constant dense<0.000000e+00> : vector<16x32xf32>
    %224 = tpu.matmul %221, %223, %cst_106 {dimension_numbers = #tpu.dot_dimension_numbers<[1], [0], [0], [1], [0, 0, 1, 1], [], []>} : vector<16x32xf32>, vector<32x32xf32>, vector<16x32xf32> -> vector<16x32xf32>
    %c1_107 = arith.constant 1 : index
    %c0_108 = arith.constant 0 : index
    %c0_109 = arith.constant 0 : index
    %225 = vector.load %arg9[%c1_107, %c0_108, %c0_109] : memref<2x1x32xf32, #tpu.memory_space<vmem>>, vector<1x1x32xf32>
    %226 = vector.shape_cast %225 : vector<1x1x32xf32> to vector<1x32xf32>
    %227 = vector.broadcast %226 : vector<1x32xf32> to vector<16x32xf32>
    %228 = arith.addf %224, %227 : vector<16x32xf32>
    %229 = arith.addf %159, %228 : vector<16x32xf32>
    %c1_110 = arith.constant 1 : index
    %c0_111 = arith.constant 0 : index
    %c0_112 = arith.constant 0 : index
    %230 = vector.load %arg10[%c1_110, %c0_111, %c0_112] : memref<2x1x32xf32, #tpu.memory_space<vmem>>, vector<1x1x32xf32>
    %231 = vector.shape_cast %230 : vector<1x1x32xf32> to vector<1x32xf32>
    %c1_113 = arith.constant 1 : index
    %c0_114 = arith.constant 0 : index
    %c0_115 = arith.constant 0 : index
    %232 = vector.load %arg11[%c1_113, %c0_114, %c0_115] : memref<2x1x32xf32, #tpu.memory_space<vmem>>, vector<1x1x32xf32>
    %233 = vector.shape_cast %232 : vector<1x1x32xf32> to vector<1x32xf32>
    %cst_116 = arith.constant dense<0.000000e+00> : vector<16xf32>
    %234 = vector.multi_reduction <add>, %229, %cst_116 [1] : vector<16x32xf32> to vector<16xf32>
    %235 = vector.shape_cast %234 : vector<16xf32> to vector<16x1xf32>
    %cst_117 = arith.constant 3.200000e+01 : f32
    %236 = vector.broadcast %cst_117 : f32 to vector<16x1xf32>
    %237 = arith.divf %235, %236 : vector<16x1xf32>
    %238 = vector.broadcast %237 : vector<16x1xf32> to vector<16x32xf32>
    %239 = arith.subf %229, %238 : vector<16x32xf32>
    %240 = arith.mulf %239, %239 : vector<16x32xf32>
    %cst_118 = arith.constant dense<0.000000e+00> : vector<16xf32>
    %241 = vector.multi_reduction <add>, %240, %cst_118 [1] : vector<16x32xf32> to vector<16xf32>
    %242 = vector.shape_cast %241 : vector<16xf32> to vector<16x1xf32>
    %cst_119 = arith.constant 3.200000e+01 : f32
    %243 = vector.broadcast %cst_119 : f32 to vector<16x1xf32>
    %244 = arith.divf %242, %243 : vector<16x1xf32>
    %245 = vector.broadcast %237 : vector<16x1xf32> to vector<16x32xf32>
    %246 = arith.subf %229, %245 : vector<16x32xf32>
    %cst_120 = arith.constant 9.99999974E-6 : f32
    %247 = vector.broadcast %cst_120 : f32 to vector<16x1xf32>
    %248 = arith.addf %244, %247 : vector<16x1xf32>
    %249 = math.rsqrt %248 : vector<16x1xf32>
    %250 = vector.broadcast %249 : vector<16x1xf32> to vector<16x32xf32>
    %251 = arith.mulf %246, %250 : vector<16x32xf32>
    %252 = vector.broadcast %231 : vector<1x32xf32> to vector<16x32xf32>
    %253 = arith.mulf %251, %252 : vector<16x32xf32>
    %254 = vector.broadcast %233 : vector<1x32xf32> to vector<16x32xf32>
    %255 = arith.addf %253, %254 : vector<16x32xf32>
    %c1_121 = arith.constant 1 : index
    %c0_122 = arith.constant 0 : index
    %c0_123 = arith.constant 0 : index
    %256 = vector.load %arg12[%c1_121, %c0_122, %c0_123] : memref<2x32x64xf32, #tpu.memory_space<vmem>>, vector<1x32x64xf32>
    %257 = vector.shape_cast %256 : vector<1x32x64xf32> to vector<32x64xf32>
    %cst_124 = arith.constant dense<0.000000e+00> : vector<16x64xf32>
    %258 = tpu.matmul %255, %257, %cst_124 {dimension_numbers = #tpu.dot_dimension_numbers<[1], [0], [0], [1], [0, 0, 1, 1], [], []>} : vector<16x32xf32>, vector<32x64xf32>, vector<16x64xf32> -> vector<16x64xf32>
    %c1_125 = arith.constant 1 : index
    %c0_126 = arith.constant 0 : index
    %c0_127 = arith.constant 0 : index
    %259 = vector.load %arg13[%c1_125, %c0_126, %c0_127] : memref<2x1x64xf32, #tpu.memory_space<vmem>>, vector<1x1x64xf32>
    %260 = vector.shape_cast %259 : vector<1x1x64xf32> to vector<1x64xf32>
    %261 = vector.broadcast %260 : vector<1x64xf32> to vector<16x64xf32>
    %262 = arith.addf %258, %261 : vector<16x64xf32>
    %cst_128 = arith.constant 0.000000e+00 : f32
    %263 = vector.broadcast %cst_128 : f32 to vector<16x64xf32>
    %264 = arith.maximumf %262, %263 : vector<16x64xf32>
    %c1_129 = arith.constant 1 : index
    %c0_130 = arith.constant 0 : index
    %c0_131 = arith.constant 0 : index
    %265 = vector.load %arg14[%c1_129, %c0_130, %c0_131] : memref<2x64x32xf32, #tpu.memory_space<vmem>>, vector<1x64x32xf32>
    %266 = vector.shape_cast %265 : vector<1x64x32xf32> to vector<64x32xf32>
    %cst_132 = arith.constant dense<0.000000e+00> : vector<16x32xf32>
    %267 = tpu.matmul %264, %266, %cst_132 {dimension_numbers = #tpu.dot_dimension_numbers<[1], [0], [0], [1], [0, 0, 1, 1], [], []>} : vector<16x64xf32>, vector<64x32xf32>, vector<16x32xf32> -> vector<16x32xf32>
    %c1_133 = arith.constant 1 : index
    %c0_134 = arith.constant 0 : index
    %c0_135 = arith.constant 0 : index
    %268 = vector.load %arg15[%c1_133, %c0_134, %c0_135] : memref<2x1x32xf32, #tpu.memory_space<vmem>>, vector<1x1x32xf32>
    %269 = vector.shape_cast %268 : vector<1x1x32xf32> to vector<1x32xf32>
    %270 = vector.broadcast %269 : vector<1x32xf32> to vector<16x32xf32>
    %271 = arith.addf %267, %270 : vector<16x32xf32>
    %272 = arith.addf %255, %271 : vector<16x32xf32>
    %c1_136 = arith.constant 1 : index
    %c0_137 = arith.constant 0 : index
    %c0_138 = arith.constant 0 : index
    %273 = vector.load %arg16[%c1_136, %c0_137, %c0_138] : memref<2x1x32xf32, #tpu.memory_space<vmem>>, vector<1x1x32xf32>
    %274 = vector.shape_cast %273 : vector<1x1x32xf32> to vector<1x32xf32>
    %c1_139 = arith.constant 1 : index
    %c0_140 = arith.constant 0 : index
    %c0_141 = arith.constant 0 : index
    %275 = vector.load %arg17[%c1_139, %c0_140, %c0_141] : memref<2x1x32xf32, #tpu.memory_space<vmem>>, vector<1x1x32xf32>
    %276 = vector.shape_cast %275 : vector<1x1x32xf32> to vector<1x32xf32>
    %cst_142 = arith.constant dense<0.000000e+00> : vector<16xf32>
    %277 = vector.multi_reduction <add>, %272, %cst_142 [1] : vector<16x32xf32> to vector<16xf32>
    %278 = vector.shape_cast %277 : vector<16xf32> to vector<16x1xf32>
    %cst_143 = arith.constant 3.200000e+01 : f32
    %279 = vector.broadcast %cst_143 : f32 to vector<16x1xf32>
    %280 = arith.divf %278, %279 : vector<16x1xf32>
    %281 = vector.broadcast %280 : vector<16x1xf32> to vector<16x32xf32>
    %282 = arith.subf %272, %281 : vector<16x32xf32>
    %283 = arith.mulf %282, %282 : vector<16x32xf32>
    %cst_144 = arith.constant dense<0.000000e+00> : vector<16xf32>
    %284 = vector.multi_reduction <add>, %283, %cst_144 [1] : vector<16x32xf32> to vector<16xf32>
    %285 = vector.shape_cast %284 : vector<16xf32> to vector<16x1xf32>
    %cst_145 = arith.constant 3.200000e+01 : f32
    %286 = vector.broadcast %cst_145 : f32 to vector<16x1xf32>
    %287 = arith.divf %285, %286 : vector<16x1xf32>
    %288 = vector.broadcast %280 : vector<16x1xf32> to vector<16x32xf32>
    %289 = arith.subf %272, %288 : vector<16x32xf32>
    %cst_146 = arith.constant 9.99999974E-6 : f32
    %290 = vector.broadcast %cst_146 : f32 to vector<16x1xf32>
    %291 = arith.addf %287, %290 : vector<16x1xf32>
    %292 = math.rsqrt %291 : vector<16x1xf32>
    %293 = vector.broadcast %292 : vector<16x1xf32> to vector<16x32xf32>
    %294 = arith.mulf %289, %293 : vector<16x32xf32>
    %295 = vector.broadcast %274 : vector<1x32xf32> to vector<16x32xf32>
    %296 = arith.mulf %294, %295 : vector<16x32xf32>
    %297 = vector.broadcast %276 : vector<1x32xf32> to vector<16x32xf32>
    %298 = arith.addf %296, %297 : vector<16x32xf32>
    %299 = vector.shape_cast %298 : vector<16x32xf32> to vector<2x8x32xf32>
    %c0_147 = arith.constant 0 : index
    %c0_148 = arith.constant 0 : index
    %c0_149 = arith.constant 0 : index
    %300 = vector.load %arg18[%c0_147, %c0_148, %c0_149] : memref<2x8x32xf32, #tpu.memory_space<vmem>>, vector<2x8x32xf32>
    tpu.vector_store %arg18[%c0_147, %c0_148, %c0_149], %299 {strides = array<i32>} : memref<2x8x32xf32, #tpu.memory_space<vmem>>, vector<2x8x32xf32>,
    return
  }
  func.func @transform_0(%arg0: i32) -> (i32, i32, i32) {
    %c0_i32 = arith.constant 0 : i32
    %c0_i32_0 = arith.constant 0 : i32
    %c0_i32_1 = arith.constant 0 : i32
    return %arg0, %c0_i32, %c0_i32_0 : i32, i32, i32
  }
  func.func @transform_1(%arg0: i32) -> (i32, i32, i32) {
    %c0_i32 = arith.constant 0 : i32
    %c0_i32_0 = arith.constant 0 : i32
    %c0_i32_1 = arith.constant 0 : i32
    return %arg0, %c0_i32, %c0_i32_0 : i32, i32, i32
  }
  func.func @transform_2(%arg0: i32) -> (i32, i32) {
    %c0_i32 = arith.constant 0 : i32
    %c0_i32_0 = arith.constant 0 : i32
    %c0_i32_1 = arith.constant 0 : i32
    return %c0_i32, %c0_i32_0 : i32, i32
  }
  func.func @transform_3(%arg0: i32) -> (i32, i32, i32) {
    %c0_i32 = arith.constant 0 : i32
    %c0_i32_0 = arith.constant 0 : i32
    %c0_i32_1 = arith.constant 0 : i32
    %c0_i32_2 = arith.constant 0 : i32
    return %c0_i32, %c0_i32_0, %c0_i32_1 : i32, i32, i32
  }
  func.func @transform_4(%arg0: i32) -> (i32, i32, i32) {
    %c0_i32 = arith.constant 0 : i32
    %c0_i32_0 = arith.constant 0 : i32
    %c0_i32_1 = arith.constant 0 : i32
    %c0_i32_2 = arith.constant 0 : i32
    return %c0_i32, %c0_i32_0, %c0_i32_1 : i32, i32, i32
  }
  func.func @transform_5(%arg0: i32) -> (i32, i32, i32) {
    %c0_i32 = arith.constant 0 : i32
    %c0_i32_0 = arith.constant 0 : i32
    %c0_i32_1 = arith.constant 0 : i32
    %c0_i32_2 = arith.constant 0 : i32
    return %c0_i32, %c0_i32_0, %c0_i32_1 : i32, i32, i32
  }
  func.func @transform_6(%arg0: i32) -> (i32, i32, i32) {
    %c0_i32 = arith.constant 0 : i32
    %c0_i32_0 = arith.constant 0 : i32
    %c0_i32_1 = arith.constant 0 : i32
    %c0_i32_2 = arith.constant 0 : i32
    return %c0_i32, %c0_i32_0, %c0_i32_1 : i32, i32, i32
  }
  func.func @transform_7(%arg0: i32) -> (i32, i32, i32) {
    %c0_i32 = arith.constant 0 : i32
    %c0_i32_0 = arith.constant 0 : i32
    %c0_i32_1 = arith.constant 0 : i32
    %c0_i32_2 = arith.constant 0 : i32
    return %c0_i32, %c0_i32_0, %c0_i32_1 : i32, i32, i32
  }
  func.func @transform_8(%arg0: i32) -> (i32, i32, i32) {
    %c0_i32 = arith.constant 0 : i32
    %c0_i32_0 = arith.constant 0 : i32
    %c0_i32_1 = arith.constant 0 : i32
    %c0_i32_2 = arith.constant 0 : i32
    return %c0_i32, %c0_i32_0, %c0_i32_1 : i32, i32, i32
  }
  func.func @transform_9(%arg0: i32) -> (i32, i32, i32) {
    %c0_i32 = arith.constant 0 : i32
    %c0_i32_0 = arith.constant 0 : i32
    %c0_i32_1 = arith.constant 0 : i32
    %c0_i32_2 = arith.constant 0 : i32
    return %c0_i32, %c0_i32_0, %c0_i32_1 : i32, i32, i32
  }
  func.func @transform_10(%arg0: i32) -> (i32, i32, i32) {
    %c0_i32 = arith.constant 0 : i32
    %c0_i32_0 = arith.constant 0 : i32
    %c0_i32_1 = arith.constant 0 : i32
    %c0_i32_2 = arith.constant 0 : i32
    return %c0_i32, %c0_i32_0, %c0_i32_1 : i32, i32, i32
  }
  func.func @transform_11(%arg0: i32) -> (i32, i32, i32) {
    %c0_i32 = arith.constant 0 : i32
    %c0_i32_0 = arith.constant 0 : i32
    %c0_i32_1 = arith.constant 0 : i32
    %c0_i32_2 = arith.constant 0 : i32
    return %c0_i32, %c0_i32_0, %c0_i32_1 : i32, i32, i32
  }
  func.func @transform_12(%arg0: i32) -> (i32, i32, i32) {
    %c0_i32 = arith.constant 0 : i32
    %c0_i32_0 = arith.constant 0 : i32
    %c0_i32_1 = arith.constant 0 : i32
    %c0_i32_2 = arith.constant 0 : i32
    return %c0_i32, %c0_i32_0, %c0_i32_1 : i32, i32, i32
  }
  func.func @transform_13(%arg0: i32) -> (i32, i32, i32) {
    %c0_i32 = arith.constant 0 : i32
    %c0_i32_0 = arith.constant 0 : i32
    %c0_i32_1 = arith.constant 0 : i32
    %c0_i32_2 = arith.constant 0 : i32
    return %c0_i32, %c0_i32_0, %c0_i32_1 : i32, i32, i32
  }
  func.func @transform_14(%arg0: i32) -> (i32, i32, i32) {
    %c0_i32 = arith.constant 0 : i32
    %c0_i32_0 = arith.constant 0 : i32
    %c0_i32_1 = arith.constant 0 : i32
    %c0_i32_2 = arith.constant 0 : i32
    return %c0_i32, %c0_i32_0, %c0_i32_1 : i32, i32, i32
  }
  func.func @transform_15(%arg0: i32) -> (i32, i32, i32) {
    %c0_i32 = arith.constant 0 : i32
    %c0_i32_0 = arith.constant 0 : i32
    %c0_i32_1 = arith.constant 0 : i32
    %c0_i32_2 = arith.constant 0 : i32
    return %c0_i32, %c0_i32_0, %c0_i32_1 : i32, i32, i32
  }
  func.func @transform_16(%arg0: i32) -> (i32, i32, i32) {
    %c0_i32 = arith.constant 0 : i32
    %c0_i32_0 = arith.constant 0 : i32
    %c0_i32_1 = arith.constant 0 : i32
    %c0_i32_2 = arith.constant 0 : i32
    return %c0_i32, %c0_i32_0, %c0_i32_1 : i32, i32, i32
  }
  func.func @transform_17(%arg0: i32) -> (i32, i32, i32) {
    %c0_i32 = arith.constant 0 : i32
    %c0_i32_0 = arith.constant 0 : i32
    %c0_i32_1 = arith.constant 0 : i32
    return %arg0, %c0_i32, %c0_i32_0 : i32, i32, i32
  }
}

</mosaic_0001>

<llo_original>
// kernel: tpu_custom_call.1
$region0: #{tpu_custom_call.1}
  #allocation0 [shape = 'u32[]', space=smem, size = 0x4, offset = 0x4, fixed_abs, tag = 'smem constant byte address 0x4 - core index']
  #allocation1 [shape = 'u32[144,128]{1,0:T(1,128)}', space=vmem, size = 0x12000, scoped, tag = 'internal scratch']
  %s0 = inlined_call_operand.hbm [shape: f32[2,8,32], index: 0, kind: input, shape index: {}]
  %s1 = inlined_call_operand.hbm [shape: f32[2,8,32], index: 1, kind: input, shape index: {}]
  %s2 = inlined_call_operand.vmem [shape: f32[64,32], index: 2, kind: input, shape index: {}]
  %s3 = inlined_call_operand.vmem [shape: f32[2,32,32], index: 3, kind: input, shape index: {}]
  %s4 = inlined_call_operand.vmem [shape: f32[2,1,32], index: 4, kind: input, shape index: {}]
  %s5 = inlined_call_operand.vmem [shape: f32[2,32,32], index: 5, kind: input, shape index: {}]
  %s6 = inlined_call_operand.hbm [shape: f32[2,1,32], index: 6, kind: input, shape index: {}]
  %s7 = inlined_call_operand.vmem [shape: f32[2,32,32], index: 7, kind: input, shape index: {}]
  %s8 = inlined_call_operand.hbm [shape: f32[2,1,32], index: 8, kind: input, shape index: {}]
  %s9 = inlined_call_operand.hbm [shape: f32[2,1,32], index: 9, kind: input, shape index: {}]
  %s10 = inlined_call_operand.vmem [shape: f32[2,1,32], index: 10, kind: input, shape index: {}]
  %s11 = inlined_call_operand.vmem [shape: f32[2,32,64], index: 11, kind: input, shape index: {}]
  %s12 = inlined_call_operand.vmem [shape: f32[2,1,64], index: 12, kind: input, shape index: {}]
  %s13 = inlined_call_operand.vmem [shape: f32[2,64,32], index: 13, kind: input, shape index: {}]
  %s14 = inlined_call_operand.vmem [shape: f32[2,1,32], index: 14, kind: input, shape index: {}]
  %s15 = inlined_call_operand.vmem [shape: f32[2,1,32], index: 15, kind: input, shape index: {}]
  %s16 = inlined_call_operand.vmem [shape: f32[2,1,32], index: 16, kind: input, shape index: {}]
  %s17 = inlined_call_operand.hbm [shape: f32[2,8,32], index: 17, kind: output, shape index: {}]
  %s18 = sld [smem:[#allocation0]]
  $region98: #{tpu_custom_call.1} parent=0
    _
  %s20 = ssub.s32 1, %s18
  %s21 = scalar_select 0, %s20, %s18
  $region1: #{tpu_custom_call.1} parent=0
    #allocation2 [shape = 'u8[8192]{0}', space=vmem, size = 0x2000, scoped, tag = 'input window, operand 0, single buffered']
    #allocation3 [shape = 's32[1]{0}', space=sflag, size = 0x4, scoped, tag = 'scoped memory for tpu_custom_call.1']
    #allocation4 [shape = 's32[1]{0}', space=sflag, size = 0x4, scoped, tag = 'scoped memory for tpu_custom_call.1']
    #allocation5 [shape = 'u8[8192]{0}', space=vmem, size = 0x2000, scoped, tag = 'input window, operand 1, single buffered']
    #allocation6 [shape = 's32[1]{0}', space=sflag, size = 0x4, scoped, tag = 'scoped memory for tpu_custom_call.1']
    #allocation7 [shape = 'u8[1024]{0}', space=vmem, size = 0x400, scoped, tag = 'input window, operand 6, single buffered']
    #allocation8 [shape = 'u8[1024]{0}', space=vmem, size = 0x400, scoped, tag = 'input window, operand 8, single buffered']
    #allocation9 [shape = 's32[1]{0}', space=sflag, size = 0x4, scoped, tag = 'scoped memory for tpu_custom_call.1']
    #allocation10 [shape = 'u8[1024]{0}', space=vmem, size = 0x400, scoped, tag = 'input window, operand 9, single buffered']
    #allocation11 [shape = 'u8[8192]{0}', space=vmem, size = 0x2000, scoped, tag = 'output window, operand 0, single buffered']
    %22 = vsyncpa [#allocation3], 0
    %23 = vsyncpa [#allocation6], 0
    %24 = vsyncpa [#allocation9], 0
    %25 = vsyncpa [#allocation4], 0
    // Predicated region
    $region2: #{tpu_custom_call.1} parent=1 // pred_check
      _
    $region3: #{tpu_custom_call.1} parent=1 // pred_check_branch
      %27 = sbr.rel (0) target = $region5
    $region4: #{tpu_custom_call.1} parent=1 // pred_region
      %s29 = ssub.s32 256, 256
      %30 = vsyncadd [#allocation3], %s29
      %s31 = sshll.u32 [#allocation2], 4
      %s32 = int_to_ptr.vmem [resolvable:$true] %s31
      %37 = dma.hbm_to_vmem [thread:$0]  %s0, 256, %s32, [#allocation3], 128, 128, 8
    $region5: #{tpu_custom_call.1} parent=1 // pred_fallthru
      _
    // Predicated region
    $region6: #{tpu_custom_call.1} parent=1 // pred_check
      _
    $region7: #{tpu_custom_call.1} parent=1 // pred_check_branch
      %39 = sbr.rel (0) target = $region9
    $region8: #{tpu_custom_call.1} parent=1 // pred_region
      %s41 = ssub.s32 256, 256
      %42 = vsyncadd [#allocation6], %s41
      %s43 = sshll.u32 [#allocation5], 4
      %s44 = int_to_ptr.vmem [resolvable:$true] %s43
      %49 = dma.hbm_to_vmem [thread:$0]  %s1, 256, %s44, [#allocation6], 128, 128, 8
    $region9: #{tpu_custom_call.1} parent=1 // pred_fallthru
      _
    // Predicated region
    $region10: #{tpu_custom_call.1} parent=1 // pred_check
      _
    $region11: #{tpu_custom_call.1} parent=1 // pred_check_branch
      %51 = sbr.rel (0) target = $region13
    $region12: #{tpu_custom_call.1} parent=1 // pred_region
      _
    $region13: #{tpu_custom_call.1} parent=1 // pred_fallthru
      _
    // Predicated region
    $region14: #{tpu_custom_call.1} parent=1 // pred_check
      _
    $region15: #{tpu_custom_call.1} parent=1 // pred_check_branch
      %53 = sbr.rel (0) target = $region17
    $region16: #{tpu_custom_call.1} parent=1 // pred_region
      _
    $region17: #{tpu_custom_call.1} parent=1 // pred_fallthru
      _
    // Predicated region
    $region18: #{tpu_custom_call.1} parent=1 // pred_check
      _
    $region19: #{tpu_custom_call.1} parent=1 // pred_check_branch
      %55 = sbr.rel (0) target = $region21
    $region20: #{tpu_custom_call.1} parent=1 // pred_region
      _
    $region21: #{tpu_custom_call.1} parent=1 // pred_fallthru
      _
    // Predicated region
    $region22: #{tpu_custom_call.1} parent=1 // pred_check
      _
    $region23: #{tpu_custom_call.1} parent=1 // pred_check_branch
      %57 = sbr.rel (0) target = $region25
    $region24: #{tpu_custom_call.1} parent=1 // pred_region
      _
    $region25: #{tpu_custom_call.1} parent=1 // pred_fallthru
      _
    // Predicated region
    $region26: #{tpu_custom_call.1} parent=1 // pred_check
      _
    $region27: #{tpu_custom_call.1} parent=1 // pred_check_branch
      %59 = sbr.rel (0) target = $region29
    $region28: #{tpu_custom_call.1} parent=1 // pred_region
      %s61 = ssub.s32 32, 32
      %62 = vsyncadd [#allocation6], %s61
      %s63 = sshll.u32 [#allocation7], 4
      %s64 = int_to_ptr.vmem [resolvable:$true] %s63
      %69 = dma.hbm_to_vmem [thread:$0]  %s6, 32, %s64, [#allocation6], 16, 16, 1
    $region29: #{tpu_custom_call.1} parent=1 // pred_fallthru
      _
    // Predicated region
    $region30: #{tpu_custom_call.1} parent=1 // pred_check
      _
    $region31: #{tpu_custom_call.1} parent=1 // pred_check_branch
      %71 = sbr.rel (0) target = $region33
    $region32: #{tpu_custom_call.1} parent=1 // pred_region
      _
    $region33: #{tpu_custom_call.1} parent=1 // pred_fallthru
      _
    // Predicated region
    $region34: #{tpu_custom_call.1} parent=1 // pred_check
      _
    $region35: #{tpu_custom_call.1} parent=1 // pred_check_branch
      %73 = sbr.rel (0) target = $region37
    $region36: #{tpu_custom_call.1} parent=1 // pred_region
      %s75 = ssub.s32 32, 32
      %76 = vsyncadd [#allocation9], %s75
      %s77 = sshll.u32 [#allocation8], 4
      %s78 = int_to_ptr.vmem [resolvable:$true] %s77
      %83 = dma.hbm_to_vmem [thread:$0]  %s8, 32, %s78, [#allocation9], 16, 16, 1
    $region37: #{tpu_custom_call.1} parent=1 // pred_fallthru
      _
    // Predicated region
    $region38: #{tpu_custom_call.1} parent=1 // pred_check
      _
    $region39: #{tpu_custom_call.1} parent=1 // pred_check_branch
      %85 = sbr.rel (0) target = $region41
    $region40: #{tpu_custom_call.1} parent=1 // pred_region
      %s87 = ssub.s32 32, 32
      %88 = vsyncadd [#allocation9], %s87
      %s89 = sshll.u32 [#allocation10], 4
      %s90 = int_to_ptr.vmem [resolvable:$true] %s89
      %95 = dma.hbm_to_vmem [thread:$0]  %s9, 32, %s90, [#allocation9], 16, 16, 1
    $region41: #{tpu_custom_call.1} parent=1 // pred_fallthru
      _
    // Predicated region
    $region42: #{tpu_custom_call.1} parent=1 // pred_check
      _
    $region43: #{tpu_custom_call.1} parent=1 // pred_check_branch
      %97 = sbr.rel (0) target = $region45
    $region44: #{tpu_custom_call.1} parent=1 // pred_region
      _
    $region45: #{tpu_custom_call.1} parent=1 // pred_fallthru
      _
    // Predicated region
    $region46: #{tpu_custom_call.1} parent=1 // pred_check
      _
    $region47: #{tpu_custom_call.1} parent=1 // pred_check_branch
      %99 = sbr.rel (0) target = $region49
    $region48: #{tpu_custom_call.1} parent=1 // pred_region
      _
    $region49: #{tpu_custom_call.1} parent=1 // pred_fallthru
      _
    // Predicated region
    $region50: #{tpu_custom_call.1} parent=1 // pred_check
      _
    $region51: #{tpu_custom_call.1} parent=1 // pred_check_branch
      %101 = sbr.rel (0) target = $region53
    $region52: #{tpu_custom_call.1} parent=1 // pred_region
      _
    $region53: #{tpu_custom_call.1} parent=1 // pred_fallthru
      _
    // Predicated region
    $region54: #{tpu_custom_call.1} parent=1 // pred_check
      _
    $region55: #{tpu_custom_call.1} parent=1 // pred_check_branch
      %103 = sbr.rel (0) target = $region57
    $region56: #{tpu_custom_call.1} parent=1 // pred_region
      _
    $region57: #{tpu_custom_call.1} parent=1 // pred_fallthru
      _
    // Predicated region
    $region58: #{tpu_custom_call.1} parent=1 // pred_check
      _
    $region59: #{tpu_custom_call.1} parent=1 // pred_check_branch
      %105 = sbr.rel (0) target = $region61
    $region60: #{tpu_custom_call.1} parent=1 // pred_region
      _
    $region61: #{tpu_custom_call.1} parent=1 // pred_fallthru
      _
    // Predicated region
    $region62: #{tpu_custom_call.1} parent=1 // pred_check
      _
    $region63: #{tpu_custom_call.1} parent=1 // pred_check_branch
      %107 = sbr.rel (0) target = $region65
    $region64: #{tpu_custom_call.1} parent=1 // pred_region
      _
    $region65: #{tpu_custom_call.1} parent=1 // pred_fallthru
      _
    // Predicated region
    $region66: #{tpu_custom_call.1} parent=1 // pred_check
      _
    $region67: #{tpu_custom_call.1} parent=1 // pred_check_branch
      %109 = sbr.rel (0) target = $region69
    $region68: #{tpu_custom_call.1} parent=1 // pred_region
      _
    $region69: #{tpu_custom_call.1} parent=1 // pred_fallthru
      _
    // Predicated region
    $region70: #{tpu_custom_call.1} parent=1 // pred_check
      _
    $region71: #{tpu_custom_call.1} parent=1 // pred_check_branch
      %111 = sbr.rel (0) target = $region73
    $region72: #{tpu_custom_call.1} parent=1 // pred_region
      %112 = dma.done [#allocation3], 256
    $region73: #{tpu_custom_call.1} parent=1 // pred_fallthru
      _
    // Predicated region
    $region74: #{tpu_custom_call.1} parent=1 // pred_check
      _
    $region75: #{tpu_custom_call.1} parent=1 // pred_check_branch
      %114 = sbr.rel (0) target = $region77
    $region76: #{tpu_custom_call.1} parent=1 // pred_region
      %115 = dma.done [#allocation6], 256
    $region77: #{tpu_custom_call.1} parent=1 // pred_fallthru
      _
    // Predicated region
    $region78: #{tpu_custom_call.1} parent=1 // pred_check
      _
    $region79: #{tpu_custom_call.1} parent=1 // pred_check_branch
      %117 = sbr.rel (0) target = $region81
    $region80: #{tpu_custom_call.1} parent=1 // pred_region
      %118 = dma.done [#allocation6], 32
    $region81: #{tpu_custom_call.1} parent=1 // pred_fallthru
      _
    // Predicated region
    $region82: #{tpu_custom_call.1} parent=1 // pred_check
      _
    $region83: #{tpu_custom_call.1} parent=1 // pred_check_branch
      %120 = sbr.rel (0) target = $region85
    $region84: #{tpu_custom_call.1} parent=1 // pred_region
      %121 = dma.done [#allocation9], 32
    $region85: #{tpu_custom_call.1} parent=1 // pred_fallthru
      _
    // Predicated region
    $region86: #{tpu_custom_call.1} parent=1 // pred_check
      _
    $region87: #{tpu_custom_call.1} parent=1 // pred_check_branch
      %123 = sbr.rel (0) target = $region89
    $region88: #{tpu_custom_call.1} parent=1 // pred_region
      %124 = dma.done [#allocation9], 32
    $region89: #{tpu_custom_call.1} parent=1 // pred_fallthru
      _
    %v125 = vld [vmem:[%s2] sm:$0xff]
    %v126 = vld [vmem:[#allocation2] sm:$0xff]
    %v127 = vld [vmem:[#allocation2 + $0x8] sm:$0xff]
    %v128 = vadd.f32 %v126, %v125
    %v129 = vadd.f32 %v127, %v125
    %v130 = vld [vmem:[#allocation5] sm:$0xff]
    %v131 = vld [vmem:[#allocation5 + $0x8] sm:$0xff]
    %v132 = vadd.f32 %v130, %v125
    %v133 = vadd.f32 %v131, %v125
    %v134 = vlaneseq
    %v135 = vshrl.u32 %v134, 7
    %v136 = vlaneseq
    %v137 = vand.u32 %v136, 127
    %vm138 = vcmp.lt.s32.totalorder %v137, %v135
    %v139 = vsel %vm138, 0.0, -1e+32
    %vm140 = vcmp.eq.s32.totalorder %v135, 0
    %v141 = vld [vmem:[%s3] sm:$0xff]
    %v142 = vld [vmem:[%s3 + $0x8] sm:$0xff]
    %v143 = vld [vmem:[%s3 + $0x10] sm:$0xff]
    %v144 = vld [vmem:[%s3 + $0x18] sm:$0xff]
    %v145 = vld [vmem:[%s4] sm:$0x1]
    %v147 = vlaneseq
    %v148 = vshrl.u32 %v147, 7
    %v149 = vsub.s32 0, %v148
    %v150 = vrot.slane %v145, %v149
    %vm152 = vcmask 261120
    %v154 = vsel %vm152, %v128, 0
    %v157 = vsel %vm152, %v129, 0
    %159 = vmatprep.subr.mxu0 0.0
    %160 = vmatpush1.msra.mxu0 %v141
    %161 = vmatprep.subr.mxu0 0.0
    %162 = vmatpush1.msra.mxu0 %v142
    %163 = vmatprep.subr.mxu0 0.0
    %164 = vmatpush1.msra.mxu0 %v143
    %165 = vmatprep.subr.mxu0 0.0
    %166 = vmatpush1.msra.mxu0 %v144
    %167 = vmatprep.subr.mxu0 0.0
    %168 = vmatpush1.msra.mxu0 0.0
    %169 = vmatprep.subr.mxu0 0.0
    %170 = vmatpush1.msra.mxu0 0.0
    %171 = vmatprep.subr.mxu0 0.0
    %172 = vmatpush1.msra.mxu0 0.0
    %173 = vmatprep.subr.mxu0 0.0
    %174 = vmatpush1.msra.mxu0 0.0
    %175 = vmatprep.subr.mxu0 0.0
    %176 = vmatpush1.msra.mxu0 0.0
    %177 = vmatprep.subr.mxu0 0.0
    %178 = vmatpush1.msra.mxu0 0.0
    %179 = vmatprep.subr.mxu0 0.0
    %180 = vmatpush1.msra.mxu0 0.0
    %181 = vmatprep.subr.mxu0 0.0
    %182 = vmatpush1.msra.mxu0 0.0
    %183 = vmatprep.subr.mxu0 0.0
    %184 = vmatpush1.msra.mxu0 0.0
    %185 = vmatprep.subr.mxu0 0.0
    %186 = vmatpush1.msra.mxu0 0.0
    %187 = vmatprep.subr.mxu0 0.0
    %188 = vmatpush1.msra.mxu0 0.0
    %189 = vmatprep.subr.mxu0 0.0
    %190 = vmatpush1.msra.mxu0 0.0
    %191 = vmatprep.subr.mxu0 0.0
    %192 = vmatpush1.msra.mxu0 0.0
    %193 = vmatprep.subr.mxu0 0.0
    %194 = vmatpush1.msra.mxu0 0.0
    %195 = vmatprep.subr.mxu0 0.0
    %196 = vmatpush1.msra.mxu0 0.0
    %197 = vmatprep.subr.mxu0 0.0
    %198 = vmatpush1.msra.mxu0 0.0
    %199 = vmatprep.subr.mxu0 0.0
    %200 = vmatpush1.msra.mxu0 0.0
    %201 = vmatprep.subr.mxu0 0.0
    %202 = vmatpush1.msra.mxu0 0.0
    %203 = vmatprep.subr.mxu0 0.0
    %204 = vmatpush1.msra.mxu0 0.0
    %205 = vmatprep.subr.mxu0 0.0
    %206 = vmatpush1.msra.mxu0 0.0
    %207 = vmatprep.subr.mxu0 0.0
    %208 = vmatpush1.msra.mxu0 0.0
    %209 = vmatprep.subr.mxu0 0.0
    %210 = vmatpush1.msra.mxu0 0.0
    %211 = vmatprep.subr.mxu0 0.0
    %212 = vmatpush1.msra.mxu0 0.0
    %213 = vmatprep.subr.mxu0 0.0
    %214 = vmatpush1.msra.mxu0 0.0
    %215 = vmatprep.subr.mxu0 0.0
    %216 = vmatpush1.msra.mxu0 0.0
    %217 = vmatprep.subr.mxu0 0.0
    %218 = vmatpush1.msra.mxu0 0.0
    %219 = vmatprep.subr.mxu0 0.0
    %220 = vmatpush1.msra.mxu0 0.0
    %221 = vmatprep.subr.mxu0 0.0
    %222 = vmatpush1.msra.mxu0 0.0
    %223 = vmatprep.mubr.f32.mxu0 0.0
    %224 = vmatmul.mubr.f32.gmra.mrb[0].mxu0 %v154
    %v225 = vpop.f32.mrb[0].mxu0
    %v226 = vadd.f32 %v150, %v225
    %v227 = vpop.f32.mrb[0].mxu0
    %228 = vmatprep.mubr.f32.mxu0 0.0
    %229 = vmatmul.mubr.f32.gmra.mrb[0].mxu0 %v157
    %v230 = vpop.f32.mrb[0].mxu0
    %v231 = vadd.f32 %v150, %v230
    %v232 = vpop.f32.mrb[0].mxu0
    %233 = vdwg.mxu0
    %v234 = vld [vmem:[%s5] sm:$0xff]
    %v235 = vld [vmem:[%s5 + $0x8] sm:$0xff]
    %v236 = vld [vmem:[%s5 + $0x10] sm:$0xff]
    %v237 = vld [vmem:[%s5 + $0x18] sm:$0xff]
    %v238 = vld [vmem:[#allocation7] sm:$0x1]
    %v240 = vlaneseq
    %v241 = vshrl.u32 %v240, 7
    %v242 = vsub.s32 0, %v241
    %v243 = vrot.slane %v238, %v242
    %v246 = vsel %vm152, %v132, 0
    %v249 = vsel %vm152, %v133, 0
    %251 = vmatprep.subr.mxu0 0.0
    %252 = vmatpush1.msra.mxu0 %v234
    %253 = vmatprep.subr.mxu0 0.0
    %254 = vmatpush1.msra.mxu0 %v235
    %255 = vmatprep.subr.mxu0 0.0
    %256 = vmatpush1.msra.mxu0 %v236
    %257 = vmatprep.subr.mxu0 0.0
    %258 = vmatpush1.msra.mxu0 %v237
    %259 = vmatprep.subr.mxu0 0.0
    %260 = vmatpush1.msra.mxu0 0.0
    %261 = vmatprep.subr.mxu0 0.0
    %262 = vmatpush1.msra.mxu0 0.0
    %263 = vmatprep.subr.mxu0 0.0
    %264 = vmatpush1.msra.mxu0 0.0
    %265 = vmatprep.subr.mxu0 0.0
    %266 = vmatpush1.msra.mxu0 0.0
    %267 = vmatprep.subr.mxu0 0.0
    %268 = vmatpush1.msra.mxu0 0.0
    %269 = vmatprep.subr.mxu0 0.0
    %270 = vmatpush1.msra.mxu0 0.0
    %271 = vmatprep.subr.mxu0 0.0
    %272 = vmatpush1.msra.mxu0 0.0
    %273 = vmatprep.subr.mxu0 0.0
    %274 = vmatpush1.msra.mxu0 0.0
    %275 = vmatprep.subr.mxu0 0.0
    %276 = vmatpush1.msra.mxu0 0.0
    %277 = vmatprep.subr.mxu0 0.0
    %278 = vmatpush1.msra.mxu0 0.0
    %279 = vmatprep.subr.mxu0 0.0
    %280 = vmatpush1.msra.mxu0 0.0
    %281 = vmatprep.subr.mxu0 0.0
    %282 = vmatpush1.msra.mxu0 0.0
    %283 = vmatprep.subr.mxu0 0.0
    %284 = vmatpush1.msra.mxu0 0.0
    %285 = vmatprep.subr.mxu0 0.0
    %286 = vmatpush1.msra.mxu0 0.0
    %287 = vmatprep.subr.mxu0 0.0
    %288 = vmatpush1.msra.mxu0 0.0
    %289 = vmatprep.subr.mxu0 0.0
    %290 = vmatpush1.msra.mxu0 0.0
    %291 = vmatprep.subr.mxu0 0.0
    %292 = vmatpush1.msra.mxu0 0.0
    %293 = vmatprep.subr.mxu0 0.0
    %294 = vmatpush1.msra.mxu0 0.0
    %295 = vmatprep.subr.mxu0 0.0
    %296 = vmatpush1.msra.mxu0 0.0
    %297 = vmatprep.subr.mxu0 0.0
    %298 = vmatpush1.msra.mxu0 0.0
    %299 = vmatprep.subr.mxu0 0.0
    %300 = vmatpush1.msra.mxu0 0.0
    %301 = vmatprep.subr.mxu0 0.0
    %302 = vmatpush1.msra.mxu0 0.0
    %303 = vmatprep.subr.mxu0 0.0
    %304 = vmatpush1.msra.mxu0 0.0
    %305 = vmatprep.subr.mxu0 0.0
    %306 = vmatpush1.msra.mxu0 0.0
    %307 = vmatprep.subr.mxu0 0.0
    %308 = vmatpush1.msra.mxu0 0.0
    %309 = vmatprep.subr.mxu0 0.0
    %310 = vmatpush1.msra.mxu0 0.0
    %311 = vmatprep.subr.mxu0 0.0
    %312 = vmatpush1.msra.mxu0 0.0
    %313 = vmatprep.subr.mxu0 0.0
    %314 = vmatpush1.msra.mxu0 0.0
    %315 = vmatprep.mubr.f32.mxu0 0.0
    %316 = vmatmul.mubr.f32.gmra.mrb[0].mxu0 %v246
    %v317 = vpop.f32.mrb[0].mxu0
    %v318 = vadd.f32 %v243, %v317
    %v319 = vpop.f32.mrb[0].mxu0
    %320 = vmatprep.mubr.f32.mxu0 0.0
    %321 = vmatmul.mubr.f32.gmra.mrb[0].mxu0 %v249
    %v322 = vpop.f32.mrb[0].mxu0
    %v323 = vadd.f32 %v243, %v322
    %v324 = vpop.f32.mrb[0].mxu0
    %325 = vdwg.mxu0
    %vm326 = vcmask 130048
    %v328 = vsel %vm326, %v226, 0
    %330 = vmatprep.subr.mxu0 0.0
    %331 = vmatpush1.xpose.msra.mxu0 %v328
    %332 = vmatprep.subr.mxu0 0.0
    %333 = vmatpush1.xpose.msra.mxu0 0.0
    %334 = vmatprep.subr.mxu0 0.0
    %335 = vmatpush1.xpose.msra.mxu0 0.0
    %336 = vmatprep.subr.mxu0 0.0
    %337 = vmatpush1.xpose.msra.mxu0 0.0
    %338 = vmatprep.subr.mxu0 0.0
    %339 = vmatpush1.xpose.msra.mxu0 0.0
    %340 = vmatprep.subr.mxu0 0.0
    %341 = vmatpush1.xpose.msra.mxu0 0.0
    %342 = vmatprep.subr.mxu0 0.0
    %343 = vmatpush1.xpose.msra.mxu0 0.0
    %344 = vmatprep.subr.mxu0 0.0
    %345 = vmatpush1.xpose.msra.mxu0 0.0
    %346 = vmatprep.subr.mxu0 0.0
    %347 = vmatpush1.xpose.msra.mxu0 0.0
    %348 = vmatprep.subr.mxu0 0.0
    %349 = vmatpush1.xpose.msra.mxu0 0.0
    %350 = vmatprep.subr.mxu0 0.0
    %351 = vmatpush1.xpose.msra.mxu0 0.0
    %352 = vmatprep.subr.mxu0 0.0
    %353 = vmatpush1.xpose.msra.mxu0 0.0
    %354 = vmatprep.subr.mxu0 0.0
    %355 = vmatpush1.xpose.msra.mxu0 0.0
    %356 = vmatprep.subr.mxu0 0.0
    %357 = vmatpush1.xpose.msra.mxu0 0.0
    %358 = vmatprep.subr.mxu0 0.0
    %359 = vmatpush1.xpose.msra.mxu0 0.0
    %360 = vmatprep.subr.mxu0 0.0
    %361 = vmatpush1.xpose.msra.mxu0 0.0
    %362 = vmatprep.subr.mxu0 0.0
    %363 = vmatpush1.xpose.msra.mxu0 0.0
    %364 = vmatprep.subr.mxu0 0.0
    %365 = vmatpush1.xpose.msra.mxu0 0.0
    %366 = vmatprep.subr.mxu0 0.0
    %367 = vmatpush1.xpose.msra.mxu0 0.0
    %368 = vmatprep.subr.mxu0 0.0
    %369 = vmatpush1.xpose.msra.mxu0 0.0
    %370 = vmatprep.subr.mxu0 0.0
    %371 = vmatpush1.xpose.msra.mxu0 0.0
    %372 = vmatprep.subr.mxu0 0.0
    %373 = vmatpush1.xpose.msra.mxu0 0.0
    %374 = vmatprep.subr.mxu0 0.0
    %375 = vmatpush1.xpose.msra.mxu0 0.0
    %376 = vmatprep.subr.mxu0 0.0
    %377 = vmatpush1.xpose.msra.mxu0 0.0
    %378 = vmatprep.subr.mxu0 0.0
    %379 = vmatpush1.xpose.msra.mxu0 0.0
    %380 = vmatprep.subr.mxu0 0.0
    %381 = vmatpush1.xpose.msra.mxu0 0.0
    %382 = vmatprep.subr.mxu0 0.0
    %383 = vmatpush1.xpose.msra.mxu0 0.0
    %384 = vmatprep.subr.mxu0 0.0
    %385 = vmatpush1.xpose.msra.mxu0 0.0
    %386 = vmatprep.subr.mxu0 0.0
    %387 = vmatpush1.xpose.msra.mxu0 0.0
    %388 = vmatprep.subr.mxu0 0.0
    %389 = vmatpush1.xpose.msra.mxu0 0.0
    %390 = vmatprep.subr.mxu0 0.0
    %391 = vmatpush1.xpose.msra.mxu0 0.0
    %392 = vmatprep.subr.mxu0 0.0
    %393 = vmatpush1.xpose.msra.mxu0 0.0
    %394 = vmatprep.mubr.f32.mxu0 0.0
    %395 = vmatmul.mubr.f32.gmra.mrb[0].mxu0 %v328
    %v396 = vpop.f32.mrb[0].mxu0
    %v397 = vadd.f32 0.0, %v396
    %v398 = vpop.f32.mrb[0].mxu0
    %399 = vdwg.mxu0
    %v401 = vsel %vm326, %v231, 0
    %403 = vmatprep.subr.mxu0 0.0
    %404 = vmatpush1.xpose.msra.mxu0 %v401
    %405 = vmatprep.subr.mxu0 0.0
    %406 = vmatpush1.xpose.msra.mxu0 0.0
    %407 = vmatprep.subr.mxu0 0.0
    %408 = vmatpush1.xpose.msra.mxu0 0.0
    %409 = vmatprep.subr.mxu0 0.0
    %410 = vmatpush1.xpose.msra.mxu0 0.0
    %411 = vmatprep.subr.mxu0 0.0
    %412 = vmatpush1.xpose.msra.mxu0 0.0
    %413 = vmatprep.subr.mxu0 0.0
    %414 = vmatpush1.xpose.msra.mxu0 0.0
    %415 = vmatprep.subr.mxu0 0.0
    %416 = vmatpush1.xpose.msra.mxu0 0.0
    %417 = vmatprep.subr.mxu0 0.0
    %418 = vmatpush1.xpose.msra.mxu0 0.0
    %419 = vmatprep.subr.mxu0 0.0
    %420 = vmatpush1.xpose.msra.mxu0 0.0
    %421 = vmatprep.subr.mxu0 0.0
    %422 = vmatpush1.xpose.msra.mxu0 0.0
    %423 = vmatprep.subr.mxu0 0.0
    %424 = vmatpush1.xpose.msra.mxu0 0.0
    %425 = vmatprep.subr.mxu0 0.0
    %426 = vmatpush1.xpose.msra.mxu0 0.0
    %427 = vmatprep.subr.mxu0 0.0
    %428 = vmatpush1.xpose.msra.mxu0 0.0
    %429 = vmatprep.subr.mxu0 0.0
    %430 = vmatpush1.xpose.msra.mxu0 0.0
    %431 = vmatprep.subr.mxu0 0.0
    %432 = vmatpush1.xpose.msra.mxu0 0.0
    %433 = vmatprep.subr.mxu0 0.0
    %434 = vmatpush1.xpose.msra.mxu0 0.0
    %435 = vmatprep.subr.mxu0 0.0
    %436 = vmatpush1.xpose.msra.mxu0 0.0
    %437 = vmatprep.subr.mxu0 0.0
    %438 = vmatpush1.xpose.msra.mxu0 0.0
    %439 = vmatprep.subr.mxu0 0.0
    %440 = vmatpush1.xpose.msra.mxu0 0.0
    %441 = vmatprep.subr.mxu0 0.0
    %442 = vmatpush1.xpose.msra.mxu0 0.0
    %443 = vmatprep.subr.mxu0 0.0
    %444 = vmatpush1.xpose.msra.mxu0 0.0
    %445 = vmatprep.subr.mxu0 0.0
    %446 = vmatpush1.xpose.msra.mxu0 0.0
    %447 = vmatprep.subr.mxu0 0.0
    %448 = vmatpush1.xpose.msra.mxu0 0.0
    %449 = vmatprep.subr.mxu0 0.0
    %450 = vmatpush1.xpose.msra.mxu0 0.0
    %451 = vmatprep.subr.mxu0 0.0
    %452 = vmatpush1.xpose.msra.mxu0 0.0
    %453 = vmatprep.subr.mxu0 0.0
    %454 = vmatpush1.xpose.msra.mxu0 0.0
    %455 = vmatprep.subr.mxu0 0.0
    %456 = vmatpush1.xpose.msra.mxu0 0.0
    %457 = vmatprep.subr.mxu0 0.0
    %458 = vmatpush1.xpose.msra.mxu0 0.0
    %459 = vmatprep.subr.mxu0 0.0
    %460 = vmatpush1.xpose.msra.mxu0 0.0
    %461 = vmatprep.subr.mxu0 0.0
    %462 = vmatpush1.xpose.msra.mxu0 0.0
    %463 = vmatprep.subr.mxu0 0.0
    %464 = vmatpush1.xpose.msra.mxu0 0.0
    %465 = vmatprep.subr.mxu0 0.0
    %466 = vmatpush1.xpose.msra.mxu0 0.0
    %467 = vmatprep.mubr.f32.mxu0 0.0
    %468 = vmatmul.mubr.f32.gmra.mrb[0].mxu0 %v401
    %v469 = vpop.f32.mrb[0].mxu0
    %v470 = vadd.f32 0.0, %v469
    %v471 = vpop.f32.mrb[0].mxu0
    %472 = vdwg.mxu0
    %v473 = vmul.f32 %v397, 0.25
    %v474 = vmul.f32 %v470, 0.25
    %v475 = vadd.f32 %v473, %v139
    %v476 = vadd.f32 %v474, %v139
    %vm477 = vcmask 64512
    %v478 = vsel %vm477, %v475, -inf
    %479 = vmax.xlane.f32.xlu0 %v478
    %v480 = vpop.xlane.xlu0 %479
    %v481 = vsel %vm477, %v476, -inf
    %482 = vmax.xlane.f32.xlu0 %v481
    %v483 = vpop.xlane.xlu0 %482
    %v484 = vsub.f32 %v475, %v480
    %v485 = vsub.f32 %v476, %v483
    %v486 = vmul.f32 %v484, 1.442695
    %v487 = vpow.pop %v486
    %v488 = vmul.f32 %v485, 1.442695
    %v489 = vpow.pop %v488
    %v490 = vsel %vm477, %v487, 0.0
    %491 = vadd.xlane.f32.xlu0 %v490
    %v492 = vpop.xlane.xlu0 %491
    %v493 = vsel %vm477, %v489, 0.0
    %494 = vadd.xlane.f32.xlu0 %v493
    %v495 = vpop.xlane.xlu0 %494
    %v496 = vrcp.pop %v492
    %v497 = vrcp.pop %v495
    %v498 = vmul.f32 %v487, %v496
    %v499 = vmul.f32 %v489, %v497
    %v500 = vsel %vm140, 1, 0
    %vm501 = vcmp.eq.s32.totalorder %v500, 1
    %v502 = vsel %vm501, 0.0, %v498
    %v503 = vsel %vm501, 0.0, %v499
    %v505 = vsel %vm477, %v502, 0
    %507 = vmatprep.subr.mxu0 0.0
    %508 = vmatpush1.msra.mxu0 %v318
    %509 = vmatprep.subr.mxu0 0.0
    %510 = vmatpush1.msra.mxu0 0.0
    %511 = vmatprep.subr.mxu0 0.0
    %512 = vmatpush1.msra.mxu0 0.0
    %513 = vmatprep.subr.mxu0 0.0
    %514 = vmatpush1.msra.mxu0 0.0
    %515 = vmatprep.subr.mxu0 0.0
    %516 = vmatpush1.msra.mxu0 0.0
    %517 = vmatprep.subr.mxu0 0.0
    %518 = vmatpush1.msra.mxu0 0.0
    %519 = vmatprep.subr.mxu0 0.0
    %520 = vmatpush1.msra.mxu0 0.0
    %521 = vmatprep.subr.mxu0 0.0
    %522 = vmatpush1.msra.mxu0 0.0
    %523 = vmatprep.subr.mxu0 0.0
    %524 = vmatpush1.msra.mxu0 0.0
    %525 = vmatprep.subr.mxu0 0.0
    %526 = vmatpush1.msra.mxu0 0.0
    %527 = vmatprep.subr.mxu0 0.0
    %528 = vmatpush1.msra.mxu0 0.0
    %529 = vmatprep.subr.mxu0 0.0
    %530 = vmatpush1.msra.mxu0 0.0
    %531 = vmatprep.subr.mxu0 0.0
    %532 = vmatpush1.msra.mxu0 0.0
    %533 = vmatprep.subr.mxu0 0.0
    %534 = vmatpush1.msra.mxu0 0.0
    %535 = vmatprep.subr.mxu0 0.0
    %536 = vmatpush1.msra.mxu0 0.0
    %537 = vmatprep.subr.mxu0 0.0
    %538 = vmatpush1.msra.mxu0 0.0
    %539 = vmatprep.subr.mxu0 0.0
    %540 = vmatpush1.msra.mxu0 0.0
    %541 = vmatprep.subr.mxu0 0.0
    %542 = vmatpush1.msra.mxu0 0.0
    %543 = vmatprep.subr.mxu0 0.0
    %544 = vmatpush1.msra.mxu0 0.0
    %545 = vmatprep.subr.mxu0 0.0
    %546 = vmatpush1.msra.mxu0 0.0
    %547 = vmatprep.subr.mxu0 0.0
    %548 = vmatpush1.msra.mxu0 0.0
    %549 = vmatprep.subr.mxu0 0.0
    %550 = vmatpush1.msra.mxu0 0.0
    %551 = vmatprep.subr.mxu0 0.0
    %552 = vmatpush1.msra.mxu0 0.0
    %553 = vmatprep.subr.mxu0 0.0
    %554 = vmatpush1.msra.mxu0 0.0
    %555 = vmatprep.subr.mxu0 0.0
    %556 = vmatpush1.msra.mxu0 0.0
    %557 = vmatprep.subr.mxu0 0.0
    %558 = vmatpush1.msra.mxu0 0.0
    %559 = vmatprep.subr.mxu0 0.0
    %560 = vmatpush1.msra.mxu0 0.0
    %561 = vmatprep.subr.mxu0 0.0
    %562 = vmatpush1.msra.mxu0 0.0
    %563 = vmatprep.subr.mxu0 0.0
    %564 = vmatpush1.msra.mxu0 0.0
    %565 = vmatprep.subr.mxu0 0.0
    %566 = vmatpush1.msra.mxu0 0.0
    %567 = vmatprep.subr.mxu0 0.0
    %568 = vmatpush1.msra.mxu0 0.0
    %569 = vmatprep.subr.mxu0 0.0
    %570 = vmatpush1.msra.mxu0 0.0
    %571 = vmatprep.mubr.f32.mxu0 0.0
    %572 = vmatmul.mubr.f32.gmra.mrb[0].mxu0 %v505
    %v573 = vpop.f32.mrb[0].mxu0
    %v574 = vadd.f32 0.0, %v573
    %v575 = vpop.f32.mrb[0].mxu0
    %576 = vdwg.mxu0
    %v578 = vsel %vm477, %v503, 0
    %580 = vmatprep.subr.mxu0 0.0
    %581 = vmatpush1.msra.mxu0 %v323
    %582 = vmatprep.subr.mxu0 0.0
    %583 = vmatpush1.msra.mxu0 0.0
    %584 = vmatprep.subr.mxu0 0.0
    %585 = vmatpush1.msra.mxu0 0.0
    %586 = vmatprep.subr.mxu0 0.0
    %587 = vmatpush1.msra.mxu0 0.0
    %588 = vmatprep.subr.mxu0 0.0
    %589 = vmatpush1.msra.mxu0 0.0
    %590 = vmatprep.subr.mxu0 0.0
    %591 = vmatpush1.msra.mxu0 0.0
    %592 = vmatprep.subr.mxu0 0.0
    %593 = vmatpush1.msra.mxu0 0.0
    %594 = vmatprep.subr.mxu0 0.0
    %595 = vmatpush1.msra.mxu0 0.0
    %596 = vmatprep.subr.mxu0 0.0
    %597 = vmatpush1.msra.mxu0 0.0
    %598 = vmatprep.subr.mxu0 0.0
    %599 = vmatpush1.msra.mxu0 0.0
    %600 = vmatprep.subr.mxu0 0.0
    %601 = vmatpush1.msra.mxu0 0.0
    %602 = vmatprep.subr.mxu0 0.0
    %603 = vmatpush1.msra.mxu0 0.0
    %604 = vmatprep.subr.mxu0 0.0
    %605 = vmatpush1.msra.mxu0 0.0
    %606 = vmatprep.subr.mxu0 0.0
    %607 = vmatpush1.msra.mxu0 0.0
    %608 = vmatprep.subr.mxu0 0.0
    %609 = vmatpush1.msra.mxu0 0.0
    %610 = vmatprep.subr.mxu0 0.0
    %611 = vmatpush1.msra.mxu0 0.0
    %612 = vmatprep.subr.mxu0 0.0
    %613 = vmatpush1.msra.mxu0 0.0
    %614 = vmatprep.subr.mxu0 0.0
    %615 = vmatpush1.msra.mxu0 0.0
    %616 = vmatprep.subr.mxu0 0.0
    %617 = vmatpush1.msra.mxu0 0.0
    %618 = vmatprep.subr.mxu0 0.0
    %619 = vmatpush1.msra.mxu0 0.0
    %620 = vmatprep.subr.mxu0 0.0
    %621 = vmatpush1.msra.mxu0 0.0
    %622 = vmatprep.subr.mxu0 0.0
    %623 = vmatpush1.msra.mxu0 0.0
    %624 = vmatprep.subr.mxu0 0.0
    %625 = vmatpush1.msra.mxu0 0.0
    %626 = vmatprep.subr.mxu0 0.0
    %627 = vmatpush1.msra.mxu0 0.0
    %628 = vmatprep.subr.mxu0 0.0
    %629 = vmatpush1.msra.mxu0 0.0
    %630 = vmatprep.subr.mxu0 0.0
    %631 = vmatpush1.msra.mxu0 0.0
    %632 = vmatprep.subr.mxu0 0.0
    %633 = vmatpush1.msra.mxu0 0.0
    %634 = vmatprep.subr.mxu0 0.0
    %635 = vmatpush1.msra.mxu0 0.0
    %636 = vmatprep.subr.mxu0 0.0
    %637 = vmatpush1.msra.mxu0 0.0
    %638 = vmatprep.subr.mxu0 0.0
    %639 = vmatpush1.msra.mxu0 0.0
    %640 = vmatprep.subr.mxu0 0.0
    %641 = vmatpush1.msra.mxu0 0.0
    %642 = vmatprep.subr.mxu0 0.0
    %643 = vmatpush1.msra.mxu0 0.0
    %644 = vmatprep.mubr.f32.mxu0 0.0
    %645 = vmatmul.mubr.f32.gmra.mrb[0].mxu0 %v578
    %v646 = vpop.f32.mrb[0].mxu0
    %v647 = vadd.f32 0.0, %v646
    %v648 = vpop.f32.mrb[0].mxu0
    %649 = vdwg.mxu0
    %650 = vrot.lane.b32.xlu0 %v226, 112
    %v651 = vpop.permute.xlu0 %650
    %v652 = vsel %vm326, %v651, 0
    %654 = vmatprep.subr.mxu0 0.0
    %655 = vmatpush1.xpose.msra.mxu0 %v652
    %656 = vmatprep.subr.mxu0 0.0
    %657 = vmatpush1.xpose.msra.mxu0 0.0
    %658 = vmatprep.subr.mxu0 0.0
    %659 = vmatpush1.xpose.msra.mxu0 0.0
    %660 = vmatprep.subr.mxu0 0.0
    %661 = vmatpush1.xpose.msra.mxu0 0.0
    %662 = vmatprep.subr.mxu0 0.0
    %663 = vmatpush1.xpose.msra.mxu0 0.0
    %664 = vmatprep.subr.mxu0 0.0
    %665 = vmatpush1.xpose.msra.mxu0 0.0
    %666 = vmatprep.subr.mxu0 0.0
    %667 = vmatpush1.xpose.msra.mxu0 0.0
    %668 = vmatprep.subr.mxu0 0.0
    %669 = vmatpush1.xpose.msra.mxu0 0.0
    %670 = vmatprep.subr.mxu0 0.0
    %671 = vmatpush1.xpose.msra.mxu0 0.0
    %672 = vmatprep.subr.mxu0 0.0
    %673 = vmatpush1.xpose.msra.mxu0 0.0
    %674 = vmatprep.subr.mxu0 0.0
    %675 = vmatpush1.xpose.msra.mxu0 0.0
    %676 = vmatprep.subr.mxu0 0.0
    %677 = vmatpush1.xpose.msra.mxu0 0.0
    %678 = vmatprep.subr.mxu0 0.0
    %679 = vmatpush1.xpose.msra.mxu0 0.0
    %680 = vmatprep.subr.mxu0 0.0
    %681 = vmatpush1.xpose.msra.mxu0 0.0
    %682 = vmatprep.subr.mxu0 0.0
    %683 = vmatpush1.xpose.msra.mxu0 0.0
    %684 = vmatprep.subr.mxu0 0.0
    %685 = vmatpush1.xpose.msra.mxu0 0.0
    %686 = vmatprep.subr.mxu0 0.0
    %687 = vmatpush1.xpose.msra.mxu0 0.0
    %688 = vmatprep.subr.mxu0 0.0
    %689 = vmatpush1.xpose.msra.mxu0 0.0
    %690 = vmatprep.subr.mxu0 0.0
    %691 = vmatpush1.xpose.msra.mxu0 0.0
    %692 = vmatprep.subr.mxu0 0.0
    %693 = vmatpush1.xpose.msra.mxu0 0.0
    %694 = vmatprep.subr.mxu0 0.0
    %695 = vmatpush1.xpose.msra.mxu0 0.0
    %696 = vmatprep.subr.mxu0 0.0
    %697 = vmatpush1.xpose.msra.mxu0 0.0
    %698 = vmatprep.subr.mxu0 0.0
    %699 = vmatpush1.xpose.msra.mxu0 0.0
    %700 = vmatprep.subr.mxu0 0.0
    %701 = vmatpush1.xpose.msra.mxu0 0.0
    %702 = vmatprep.subr.mxu0 0.0
    %703 = vmatpush1.xpose.msra.mxu0 0.0
    %704 = vmatprep.subr.mxu0 0.0
    %705 = vmatpush1.xpose.msra.mxu0 0.0
    %706 = vmatprep.subr.mxu0 0.0
    %707 = vmatpush1.xpose.msra.mxu0 0.0
    %708 = vmatprep.subr.mxu0 0.0
    %709 = vmatpush1.xpose.msra.mxu0 0.0
    %710 = vmatprep.subr.mxu0 0.0
    %711 = vmatpush1.xpose.msra.mxu0 0.0
    %712 = vmatprep.subr.mxu0 0.0
    %713 = vmatpush1.xpose.msra.mxu0 0.0
    %714 = vmatprep.subr.mxu0 0.0
    %715 = vmatpush1.xpose.msra.mxu0 0.0
    %716 = vmatprep.subr.mxu0 0.0
    %717 = vmatpush1.xpose.msra.mxu0 0.0
    %718 = vmatprep.mubr.f32.mxu0 0.0
    %719 = vmatmul.mubr.f32.gmra.mrb[0].mxu0 %v652
    %v720 = vpop.f32.mrb[0].mxu0
    %v721 = vadd.f32 0.0, %v720
    %v722 = vpop.f32.mrb[0].mxu0
    %723 = vdwg.mxu0
    %724 = vrot.lane.b32.xlu0 %v231, 112
    %v725 = vpop.permute.xlu0 %724
    %v726 = vsel %vm326, %v725, 0
    %728 = vmatprep.subr.mxu0 0.0
    %729 = vmatpush1.xpose.msra.mxu0 %v726
    %730 = vmatprep.subr.mxu0 0.0
    %731 = vmatpush1.xpose.msra.mxu0 0.0
    %732 = vmatprep.subr.mxu0 0.0
    %733 = vmatpush1.xpose.msra.mxu0 0.0
    %734 = vmatprep.subr.mxu0 0.0
    %735 = vmatpush1.xpose.msra.mxu0 0.0
    %736 = vmatprep.subr.mxu0 0.0
    %737 = vmatpush1.xpose.msra.mxu0 0.0
    %738 = vmatprep.subr.mxu0 0.0
    %739 = vmatpush1.xpose.msra.mxu0 0.0
    %740 = vmatprep.subr.mxu0 0.0
    %741 = vmatpush1.xpose.msra.mxu0 0.0
    %742 = vmatprep.subr.mxu0 0.0
    %743 = vmatpush1.xpose.msra.mxu0 0.0
    %744 = vmatprep.subr.mxu0 0.0
    %745 = vmatpush1.xpose.msra.mxu0 0.0
    %746 = vmatprep.subr.mxu0 0.0
    %747 = vmatpush1.xpose.msra.mxu0 0.0
    %748 = vmatprep.subr.mxu0 0.0
    %749 = vmatpush1.xpose.msra.mxu0 0.0
    %750 = vmatprep.subr.mxu0 0.0
    %751 = vmatpush1.xpose.msra.mxu0 0.0
    %752 = vmatprep.subr.mxu0 0.0
    %753 = vmatpush1.xpose.msra.mxu0 0.0
    %754 = vmatprep.subr.mxu0 0.0
    %755 = vmatpush1.xpose.msra.mxu0 0.0
    %756 = vmatprep.subr.mxu0 0.0
    %757 = vmatpush1.xpose.msra.mxu0 0.0
    %758 = vmatprep.subr.mxu0 0.0
    %759 = vmatpush1.xpose.msra.mxu0 0.0
    %760 = vmatprep.subr.mxu0 0.0
    %761 = vmatpush1.xpose.msra.mxu0 0.0
    %762 = vmatprep.subr.mxu0 0.0
    %763 = vmatpush1.xpose.msra.mxu0 0.0
    %764 = vmatprep.subr.mxu0 0.0
    %765 = vmatpush1.xpose.msra.mxu0 0.0
    %766 = vmatprep.subr.mxu0 0.0
    %767 = vmatpush1.xpose.msra.mxu0 0.0
    %768 = vmatprep.subr.mxu0 0.0
    %769 = vmatpush1.xpose.msra.mxu0 0.0
    %770 = vmatprep.subr.mxu0 0.0
    %771 = vmatpush1.xpose.msra.mxu0 0.0
    %772 = vmatprep.subr.mxu0 0.0
    %773 = vmatpush1.xpose.msra.mxu0 0.0
    %774 = vmatprep.subr.mxu0 0.0
    %775 = vmatpush1.xpose.msra.mxu0 0.0
    %776 = vmatprep.subr.mxu0 0.0
    %777 = vmatpush1.xpose.msra.mxu0 0.0
    %778 = vmatprep.subr.mxu0 0.0
    %779 = vmatpush1.xpose.msra.mxu0 0.0
    %780 = vmatprep.subr.mxu0 0.0
    %781 = vmatpush1.xpose.msra.mxu0 0.0
    %782 = vmatprep.subr.mxu0 0.0
    %783 = vmatpush1.xpose.msra.mxu0 0.0
    %784 = vmatprep.subr.mxu0 0.0
    %785 = vmatpush1.xpose.msra.mxu0 0.0
    %786 = vmatprep.subr.mxu0 0.0
    %787 = vmatpush1.xpose.msra.mxu0 0.0
    %788 = vmatprep.subr.mxu0 0.0
    %789 = vmatpush1.xpose.msra.mxu0 0.0
    %790 = vmatprep.subr.mxu0 0.0
    %791 = vmatpush1.xpose.msra.mxu0 0.0
    %792 = vmatprep.mubr.f32.mxu0 0.0
    %793 = vmatmul.mubr.f32.gmra.mrb[0].mxu0 %v726
    %v794 = vpop.f32.mrb[0].mxu0
    %v795 = vadd.f32 0.0, %v794
    %v796 = vpop.f32.mrb[0].mxu0
    %797 = vdwg.mxu0
    %v798 = vmul.f32 %v721, 0.25
    %v799 = vmul.f32 %v795, 0.25
    %v800 = vadd.f32 %v798, %v139
    %v801 = vadd.f32 %v799, %v139
    %v802 = vsel %vm477, %v800, -inf
    %803 = vmax.xlane.f32.xlu0 %v802
    %v804 = vpop.xlane.xlu0 %803
    %v805 = vsel %vm477, %v801, -inf
    %806 = vmax.xlane.f32.xlu0 %v805
    %v807 = vpop.xlane.xlu0 %806
    %v808 = vsub.f32 %v800, %v804
    %v809 = vsub.f32 %v801, %v807
    %v810 = vmul.f32 %v808, 1.442695
    %v811 = vpow.pop %v810
    %v812 = vmul.f32 %v809, 1.442695
    %v813 = vpow.pop %v812
    %v814 = vsel %vm477, %v811, 0.0
    %815 = vadd.xlane.f32.xlu0 %v814
    %v816 = vpop.xlane.xlu0 %815
    %v817 = vsel %vm477, %v813, 0.0
    %818 = vadd.xlane.f32.xlu0 %v817
    %v819 = vpop.xlane.xlu0 %818
    %v820 = vrcp.pop %v816
    %v821 = vrcp.pop %v819
    %v822 = vmul.f32 %v811, %v820
    %v823 = vmul.f32 %v813, %v821
    %v824 = vsel %vm501, 0.0, %v822
    %v825 = vsel %vm501, 0.0, %v823
    %827 = vrot.lane.b32.xlu0 %v318, 112
    %v828 = vpop.permute.xlu0 %827
    %v831 = vsel %vm477, %v824, 0
    %833 = vmatprep.subr.mxu0 0.0
    %834 = vmatpush1.msra.mxu0 %v828
    %835 = vmatprep.subr.mxu0 0.0
    %836 = vmatpush1.msra.mxu0 0.0
    %837 = vmatprep.subr.mxu0 0.0
    %838 = vmatpush1.msra.mxu0 0.0
    %839 = vmatprep.subr.mxu0 0.0
    %840 = vmatpush1.msra.mxu0 0.0
    %841 = vmatprep.subr.mxu0 0.0
    %842 = vmatpush1.msra.mxu0 0.0
    %843 = vmatprep.subr.mxu0 0.0
    %844 = vmatpush1.msra.mxu0 0.0
    %845 = vmatprep.subr.mxu0 0.0
    %846 = vmatpush1.msra.mxu0 0.0
    %847 = vmatprep.subr.mxu0 0.0
    %848 = vmatpush1.msra.mxu0 0.0
    %849 = vmatprep.subr.mxu0 0.0
    %850 = vmatpush1.msra.mxu0 0.0
    %851 = vmatprep.subr.mxu0 0.0
    %852 = vmatpush1.msra.mxu0 0.0
    %853 = vmatprep.subr.mxu0 0.0
    %854 = vmatpush1.msra.mxu0 0.0
    %855 = vmatprep.subr.mxu0 0.0
    %856 = vmatpush1.msra.mxu0 0.0
    %857 = vmatprep.subr.mxu0 0.0
    %858 = vmatpush1.msra.mxu0 0.0
    %859 = vmatprep.subr.mxu0 0.0
    %860 = vmatpush1.msra.mxu0 0.0
    %861 = vmatprep.subr.mxu0 0.0
    %862 = vmatpush1.msra.mxu0 0.0
    %863 = vmatprep.subr.mxu0 0.0
    %864 = vmatpush1.msra.mxu0 0.0
    %865 = vmatprep.subr.mxu0 0.0
    %866 = vmatpush1.msra.mxu0 0.0
    %867 = vmatprep.subr.mxu0 0.0
    %868 = vmatpush1.msra.mxu0 0.0
    %869 = vmatprep.subr.mxu0 0.0
    %870 = vmatpush1.msra.mxu0 0.0
    %871 = vmatprep.subr.mxu0 0.0
    %872 = vmatpush1.msra.mxu0 0.0
    %873 = vmatprep.subr.mxu0 0.0
    %874 = vmatpush1.msra.mxu0 0.0
    %875 = vmatprep.subr.mxu0 0.0
    %876 = vmatpush1.msra.mxu0 0.0
    %877 = vmatprep.subr.mxu0 0.0
    %878 = vmatpush1.msra.mxu0 0.0
    %879 = vmatprep.subr.mxu0 0.0
    %880 = vmatpush1.msra.mxu0 0.0
    %881 = vmatprep.subr.mxu0 0.0
    %882 = vmatpush1.msra.mxu0 0.0
    %883 = vmatprep.subr.mxu0 0.0
    %884 = vmatpush1.msra.mxu0 0.0
    %885 = vmatprep.subr.mxu0 0.0
    %886 = vmatpush1.msra.mxu0 0.0
    %887 = vmatprep.subr.mxu0 0.0
    %888 = vmatpush1.msra.mxu0 0.0
    %889 = vmatprep.subr.mxu0 0.0
    %890 = vmatpush1.msra.mxu0 0.0
    %891 = vmatprep.subr.mxu0 0.0
    %892 = vmatpush1.msra.mxu0 0.0
    %893 = vmatprep.subr.mxu0 0.0
    %894 = vmatpush1.msra.mxu0 0.0
    %895 = vmatprep.subr.mxu0 0.0
    %896 = vmatpush1.msra.mxu0 0.0
    %897 = vmatprep.mubr.f32.mxu0 0.0
    %898 = vmatmul.mubr.f32.gmra.mrb[0].mxu0 %v831
    %v899 = vpop.f32.mrb[0].mxu0
    %v900 = vadd.f32 0.0, %v899
    %v901 = vpop.f32.mrb[0].mxu0
    %902 = vdwg.mxu0
    %904 = vrot.lane.b32.xlu0 %v323, 112
    %v905 = vpop.permute.xlu0 %904
    %v908 = vsel %vm477, %v825, 0
    %910 = vmatprep.subr.mxu0 0.0
    %911 = vmatpush1.msra.mxu0 %v905
    %912 = vmatprep.subr.mxu0 0.0
    %913 = vmatpush1.msra.mxu0 0.0
    %914 = vmatprep.subr.mxu0 0.0
    %915 = vmatpush1.msra.mxu0 0.0
    %916 = vmatprep.subr.mxu0 0.0
    %917 = vmatpush1.msra.mxu0 0.0
    %918 = vmatprep.subr.mxu0 0.0
    %919 = vmatpush1.msra.mxu0 0.0
    %920 = vmatprep.subr.mxu0 0.0
    %921 = vmatpush1.msra.mxu0 0.0
    %922 = vmatprep.subr.mxu0 0.0
    %923 = vmatpush1.msra.mxu0 0.0
    %924 = vmatprep.subr.mxu0 0.0
    %925 = vmatpush1.msra.mxu0 0.0
    %926 = vmatprep.subr.mxu0 0.0
    %927 = vmatpush1.msra.mxu0 0.0
    %928 = vmatprep.subr.mxu0 0.0
    %929 = vmatpush1.msra.mxu0 0.0
    %930 = vmatprep.subr.mxu0 0.0
    %931 = vmatpush1.msra.mxu0 0.0
    %932 = vmatprep.subr.mxu0 0.0
    %933 = vmatpush1.msra.mxu0 0.0
    %934 = vmatprep.subr.mxu0 0.0
    %935 = vmatpush1.msra.mxu0 0.0
    %936 = vmatprep.subr.mxu0 0.0
    %937 = vmatpush1.msra.mxu0 0.0
    %938 = vmatprep.subr.mxu0 0.0
    %939 = vmatpush1.msra.mxu0 0.0
    %940 = vmatprep.subr.mxu0 0.0
    %941 = vmatpush1.msra.mxu0 0.0
    %942 = vmatprep.subr.mxu0 0.0
    %943 = vmatpush1.msra.mxu0 0.0
    %944 = vmatprep.subr.mxu0 0.0
    %945 = vmatpush1.msra.mxu0 0.0
    %946 = vmatprep.subr.mxu0 0.0
    %947 = vmatpush1.msra.mxu0 0.0
    %948 = vmatprep.subr.mxu0 0.0
    %949 = vmatpush1.msra.mxu0 0.0
    %950 = vmatprep.subr.mxu0 0.0
    %951 = vmatpush1.msra.mxu0 0.0
    %952 = vmatprep.subr.mxu0 0.0
    %953 = vmatpush1.msra.mxu0 0.0
    %954 = vmatprep.subr.mxu0 0.0
    %955 = vmatpush1.msra.mxu0 0.0
    %956 = vmatprep.subr.mxu0 0.0
    %957 = vmatpush1.msra.mxu0 0.0
    %958 = vmatprep.subr.mxu0 0.0
    %959 = vmatpush1.msra.mxu0 0.0
    %960 = vmatprep.subr.mxu0 0.0
    %961 = vmatpush1.msra.mxu0 0.0
    %962 = vmatprep.subr.mxu0 0.0
    %963 = vmatpush1.msra.mxu0 0.0
    %964 = vmatprep.subr.mxu0 0.0
    %965 = vmatpush1.msra.mxu0 0.0
    %966 = vmatprep.subr.mxu0 0.0
    %967 = vmatpush1.msra.mxu0 0.0
    %968 = vmatprep.subr.mxu0 0.0
    %969 = vmatpush1.msra.mxu0 0.0
    %970 = vmatprep.subr.mxu0 0.0
    %971 = vmatpush1.msra.mxu0 0.0
    %972 = vmatprep.subr.mxu0 0.0
    %973 = vmatpush1.msra.mxu0 0.0
    %974 = vmatprep.mubr.f32.mxu0 0.0
    %975 = vmatmul.mubr.f32.gmra.mrb[0].mxu0 %v908
    %v976 = vpop.f32.mrb[0].mxu0
    %v977 = vadd.f32 0.0, %v976
    %v978 = vpop.f32.mrb[0].mxu0
    %979 = vdwg.mxu0
    %982 = vrot.lane.b32.xlu0 %v900, 16
    %v983 = vpop.permute.xlu0 %982
    %984 = vrot.lane.b32.xlu0 %v977, 16
    %v985 = vpop.permute.xlu0 %984
    %v988 = vsel %vm326, %v574, %v983
    %v989 = vsel %vm326, %v647, %v985
    %v990 = vld [vmem:[%s7] sm:$0xff]
    %v991 = vld [vmem:[%s7 + $0x8] sm:$0xff]
    %v992 = vld [vmem:[%s7 + $0x10] sm:$0xff]
    %v993 = vld [vmem:[%s7 + $0x18] sm:$0xff]
    %v994 = vld [vmem:[#allocation8] sm:$0x1]
    %v996 = vlaneseq
    %v997 = vshrl.u32 %v996, 7
    %v998 = vsub.s32 0, %v997
    %v999 = vrot.slane %v994, %v998
    %v1002 = vsel %vm152, %v988, 0
    %v1005 = vsel %vm152, %v989, 0
    %1007 = vmatprep.subr.mxu0 0.0
    %1008 = vmatpush1.msra.mxu0 %v990
    %1009 = vmatprep.subr.mxu0 0.0
    %1010 = vmatpush1.msra.mxu0 %v991
    %1011 = vmatprep.subr.mxu0 0.0
    %1012 = vmatpush1.msra.mxu0 %v992
    %1013 = vmatprep.subr.mxu0 0.0
    %1014 = vmatpush1.msra.mxu0 %v993
    %1015 = vmatprep.subr.mxu0 0.0
    %1016 = vmatpush1.msra.mxu0 0.0
    %1017 = vmatprep.subr.mxu0 0.0
    %1018 = vmatpush1.msra.mxu0 0.0
    %1019 = vmatprep.subr.mxu0 0.0
    %1020 = vmatpush1.msra.mxu0 0.0
    %1021 = vmatprep.subr.mxu0 0.0
    %1022 = vmatpush1.msra.mxu0 0.0
    %1023 = vmatprep.subr.mxu0 0.0
    %1024 = vmatpush1.msra.mxu0 0.0
    %1025 = vmatprep.subr.mxu0 0.0
    %1026 = vmatpush1.msra.mxu0 0.0
    %1027 = vmatprep.subr.mxu0 0.0
    %1028 = vmatpush1.msra.mxu0 0.0
    %1029 = vmatprep.subr.mxu0 0.0
    %1030 = vmatpush1.msra.mxu0 0.0
    %1031 = vmatprep.subr.mxu0 0.0
    %1032 = vmatpush1.msra.mxu0 0.0
    %1033 = vmatprep.subr.mxu0 0.0
    %1034 = vmatpush1.msra.mxu0 0.0
    %1035 = vmatprep.subr.mxu0 0.0
    %1036 = vmatpush1.msra.mxu0 0.0
    %1037 = vmatprep.subr.mxu0 0.0
    %1038 = vmatpush1.msra.mxu0 0.0
    %1039 = vmatprep.subr.mxu0 0.0
    %1040 = vmatpush1.msra.mxu0 0.0
    %1041 = vmatprep.subr.mxu0 0.0
    %1042 = vmatpush1.msra.mxu0 0.0
    %1043 = vmatprep.subr.mxu0 0.0
    %1044 = vmatpush1.msra.mxu0 0.0
    %1045 = vmatprep.subr.mxu0 0.0
    %1046 = vmatpush1.msra.mxu0 0.0
    %1047 = vmatprep.subr.mxu0 0.0
    %1048 = vmatpush1.msra.mxu0 0.0
    %1049 = vmatprep.subr.mxu0 0.0
    %1050 = vmatpush1.msra.mxu0 0.0
    %1051 = vmatprep.subr.mxu0 0.0
    %1052 = vmatpush1.msra.mxu0 0.0
    %1053 = vmatprep.subr.mxu0 0.0
    %1054 = vmatpush1.msra.mxu0 0.0
    %1055 = vmatprep.subr.mxu0 0.0
    %1056 = vmatpush1.msra.mxu0 0.0
    %1057 = vmatprep.subr.mxu0 0.0
    %1058 = vmatpush1.msra.mxu0 0.0
    %1059 = vmatprep.subr.mxu0 0.0
    %1060 = vmatpush1.msra.mxu0 0.0
    %1061 = vmatprep.subr.mxu0 0.0
    %1062 = vmatpush1.msra.mxu0 0.0
    %1063 = vmatprep.subr.mxu0 0.0
    %1064 = vmatpush1.msra.mxu0 0.0
    %1065 = vmatprep.subr.mxu0 0.0
    %1066 = vmatpush1.msra.mxu0 0.0
    %1067 = vmatprep.subr.mxu0 0.0
    %1068 = vmatpush1.msra.mxu0 0.0
    %1069 = vmatprep.subr.mxu0 0.0
    %1070 = vmatpush1.msra.mxu0 0.0
    %1071 = vmatprep.mubr.f32.mxu0 0.0
    %1072 = vmatmul.mubr.f32.gmra.mrb[0].mxu0 %v1002
    %v1073 = vpop.f32.mrb[0].mxu0
    %v1074 = vadd.f32 %v999, %v1073
    %v1075 = vpop.f32.mrb[0].mxu0
    %1076 = vmatprep.mubr.f32.mxu0 0.0
    %1077 = vmatmul.mubr.f32.gmra.mrb[0].mxu0 %v1005
    %v1078 = vpop.f32.mrb[0].mxu0
    %v1079 = vadd.f32 %v999, %v1078
    %v1080 = vpop.f32.mrb[0].mxu0
    %1081 = vdwg.mxu0
    %v1082 = vadd.f32 %v128, %v1074
    %v1083 = vadd.f32 %v129, %v1079
    %v1084 = vld [vmem:[#allocation10] sm:$0x1]
    %v1085 = vld [vmem:[%s10] sm:$0x1]
    %v1086 = vsel %vm152, %v1082, 0.0
    %1087 = vadd.xlane.f32.xlu0 %v1086
    %v1088 = vpop.xlane.xlu0 %1087
    %v1089 = vsel %vm152, %v1083, 0.0
    %1090 = vadd.xlane.f32.xlu0 %v1089
    %v1091 = vpop.xlane.xlu0 %1090
    %v1092 = vrcp.pop 32.0
    %v1093 = vmul.f32 %v1088, %v1092
    %v1094 = vmul.f32 %v1091, %v1092
    %v1095 = vsub.f32 %v1082, %v1093
    %v1096 = vsub.f32 %v1083, %v1094
    %v1097 = vmul.f32 %v1095, %v1095
    %v1098 = vmul.f32 %v1096, %v1096
    %v1099 = vsel %vm152, %v1097, 0.0
    %1100 = vadd.xlane.f32.xlu0 %v1099
    %v1101 = vpop.xlane.xlu0 %1100
    %v1102 = vsel %vm152, %v1098, 0.0
    %1103 = vadd.xlane.f32.xlu0 %v1102
    %v1104 = vpop.xlane.xlu0 %1103
    %v1105 = vmul.f32 %v1101, %v1092
    %v1106 = vmul.f32 %v1104, %v1092
    %v1107 = vadd.f32 %v1105, 1e-05
    %v1108 = vadd.f32 %v1106, 1e-05
    %v1109 = vrsqrt.pop %v1107
    %v1110 = vrsqrt.pop %v1108
    %v1111 = vmul.f32 %v1095, %v1109
    %v1112 = vmul.f32 %v1096, %v1110
    %v1114 = vlaneseq
    %v1115 = vshrl.u32 %v1114, 7
    %v1116 = vsub.s32 0, %v1115
    %v1117 = vrot.slane %v1084, %v1116
    %v1119 = vmul.f32 %v1111, %v1117
    %v1120 = vmul.f32 %v1112, %v1117
    %v1122 = vlaneseq
    %v1123 = vshrl.u32 %v1122, 7
    %v1124 = vsub.s32 0, %v1123
    %v1125 = vrot.slane %v1085, %v1124
    %v1127 = vadd.f32 %v1119, %v1125
    %v1128 = vadd.f32 %v1120, %v1125
    %v1129 = vld [vmem:[%s11] sm:$0xff]
    %v1130 = vld [vmem:[%s11 + $0x8] sm:$0xff]
    %v1131 = vld [vmem:[%s11 + $0x10] sm:$0xff]
    %v1132 = vld [vmem:[%s11 + $0x18] sm:$0xff]
    %v1133 = vld [vmem:[%s12] sm:$0x1]
    %v1135 = vlaneseq
    %v1136 = vshrl.u32 %v1135, 7
    %v1137 = vsub.s32 0, %v1136
    %v1138 = vrot.slane %v1133, %v1137
    %v1141 = vsel %vm152, %v1127, 0
    %v1144 = vsel %vm152, %v1128, 0
    %1146 = vmatprep.subr.mxu0 0.0
    %1147 = vmatpush1.msra.mxu0 %v1129
    %1148 = vmatprep.subr.mxu0 0.0
    %1149 = vmatpush1.msra.mxu0 %v1130
    %1150 = vmatprep.subr.mxu0 0.0
    %1151 = vmatpush1.msra.mxu0 %v1131
    %1152 = vmatprep.subr.mxu0 0.0
    %1153 = vmatpush1.msra.mxu0 %v1132
    %1154 = vmatprep.subr.mxu0 0.0
    %1155 = vmatpush1.msra.mxu0 0.0
    %1156 = vmatprep.subr.mxu0 0.0
    %1157 = vmatpush1.msra.mxu0 0.0
    %1158 = vmatprep.subr.mxu0 0.0
    %1159 = vmatpush1.msra.mxu0 0.0
    %1160 = vmatprep.subr.mxu0 0.0
    %1161 = vmatpush1.msra.mxu0 0.0
    %1162 = vmatprep.subr.mxu0 0.0
    %1163 = vmatpush1.msra.mxu0 0.0
    %1164 = vmatprep.subr.mxu0 0.0
    %1165 = vmatpush1.msra.mxu0 0.0
    %1166 = vmatprep.subr.mxu0 0.0
    %1167 = vmatpush1.msra.mxu0 0.0
    %1168 = vmatprep.subr.mxu0 0.0
    %1169 = vmatpush1.msra.mxu0 0.0
    %1170 = vmatprep.subr.mxu0 0.0
    %1171 = vmatpush1.msra.mxu0 0.0
    %1172 = vmatprep.subr.mxu0 0.0
    %1173 = vmatpush1.msra.mxu0 0.0
    %1174 = vmatprep.subr.mxu0 0.0
    %1175 = vmatpush1.msra.mxu0 0.0
    %1176 = vmatprep.subr.mxu0 0.0
    %1177 = vmatpush1.msra.mxu0 0.0
    %1178 = vmatprep.subr.mxu0 0.0
    %1179 = vmatpush1.msra.mxu0 0.0
    %1180 = vmatprep.subr.mxu0 0.0
    %1181 = vmatpush1.msra.mxu0 0.0
    %1182 = vmatprep.subr.mxu0 0.0
    %1183 = vmatpush1.msra.mxu0 0.0
    %1184 = vmatprep.subr.mxu0 0.0
    %1185 = vmatpush1.msra.mxu0 0.0
    %1186 = vmatprep.subr.mxu0 0.0
    %1187 = vmatpush1.msra.mxu0 0.0
    %1188 = vmatprep.subr.mxu0 0.0
    %1189 = vmatpush1.msra.mxu0 0.0
    %1190 = vmatprep.subr.mxu0 0.0
    %1191 = vmatpush1.msra.mxu0 0.0
    %1192 = vmatprep.subr.mxu0 0.0
    %1193 = vmatpush1.msra.mxu0 0.0
    %1194 = vmatprep.subr.mxu0 0.0
    %1195 = vmatpush1.msra.mxu0 0.0
    %1196 = vmatprep.subr.mxu0 0.0
    %1197 = vmatpush1.msra.mxu0 0.0
    %1198 = vmatprep.subr.mxu0 0.0
    %1199 = vmatpush1.msra.mxu0 0.0
    %1200 = vmatprep.subr.mxu0 0.0
    %1201 = vmatpush1.msra.mxu0 0.0
    %1202 = vmatprep.subr.mxu0 0.0
    %1203 = vmatpush1.msra.mxu0 0.0
    %1204 = vmatprep.subr.mxu0 0.0
    %1205 = vmatpush1.msra.mxu0 0.0
    %1206 = vmatprep.subr.mxu0 0.0
    %1207 = vmatpush1.msra.mxu0 0.0
    %1208 = vmatprep.subr.mxu0 0.0
    %1209 = vmatpush1.msra.mxu0 0.0
    %1210 = vmatprep.mubr.f32.mxu0 0.0
    %1211 = vmatmul.mubr.f32.gmra.mrb[0].mxu0 %v1141
    %v1212 = vpop.f32.mrb[0].mxu0
    %v1213 = vadd.f32 %v1138, %v1212
    %v1214 = vpop.f32.mrb[0].mxu0
    %1215 = vmatprep.mubr.f32.mxu0 0.0
    %1216 = vmatmul.mubr.f32.gmra.mrb[0].mxu0 %v1144
    %v1217 = vpop.f32.mrb[0].mxu0
    %v1218 = vadd.f32 %v1138, %v1217
    %v1219 = vpop.f32.mrb[0].mxu0
    %1220 = vdwg.mxu0
    %v1221 = vmax.f32 %v1213, 0.0
    %v1222 = vmax.f32 %v1218, 0.0
    %v1223 = vld [vmem:[%s13] sm:$0xff]
    %v1224 = vld [vmem:[%s13 + $0x8] sm:$0xff]
    %v1225 = vld [vmem:[%s13 + $0x10] sm:$0xff]
    %v1226 = vld [vmem:[%s13 + $0x18] sm:$0xff]
    %v1227 = vld [vmem:[%s13 + $0x20] sm:$0xff]
    %v1228 = vld [vmem:[%s13 + $0x28] sm:$0xff]
    %v1229 = vld [vmem:[%s13 + $0x30] sm:$0xff]
    %v1230 = vld [vmem:[%s13 + $0x38] sm:$0xff]
    %v1231 = vld [vmem:[%s14] sm:$0x1]
    %v1233 = vlaneseq
    %v1234 = vshrl.u32 %v1233, 7
    %v1235 = vsub.s32 0, %v1234
    %v1236 = vrot.slane %v1231, %v1235
    %vm1238 = vcmask 523264
    %v1240 = vsel %vm1238, %v1221, 0
    %v1243 = vsel %vm1238, %v1222, 0
    %1245 = vmatprep.subr.mxu0 0.0
    %1246 = vmatpush1.msra.mxu0 %v1223
    %1247 = vmatprep.subr.mxu0 0.0
    %1248 = vmatpush1.msra.mxu0 %v1224
    %1249 = vmatprep.subr.mxu0 0.0
    %1250 = vmatpush1.msra.mxu0 %v1225
    %1251 = vmatprep.subr.mxu0 0.0
    %1252 = vmatpush1.msra.mxu0 %v1226
    %1253 = vmatprep.subr.mxu0 0.0
    %1254 = vmatpush1.msra.mxu0 %v1227
    %1255 = vmatprep.subr.mxu0 0.0
    %1256 = vmatpush1.msra.mxu0 %v1228
    %1257 = vmatprep.subr.mxu0 0.0
    %1258 = vmatpush1.msra.mxu0 %v1229
    %1259 = vmatprep.subr.mxu0 0.0
    %1260 = vmatpush1.msra.mxu0 %v1230
    %1261 = vmatprep.subr.mxu0 0.0
    %1262 = vmatpush1.msra.mxu0 0.0
    %1263 = vmatprep.subr.mxu0 0.0
    %1264 = vmatpush1.msra.mxu0 0.0
    %1265 = vmatprep.subr.mxu0 0.0
    %1266 = vmatpush1.msra.mxu0 0.0
    %1267 = vmatprep.subr.mxu0 0.0
    %1268 = vmatpush1.msra.mxu0 0.0
    %1269 = vmatprep.subr.mxu0 0.0
    %1270 = vmatpush1.msra.mxu0 0.0
    %1271 = vmatprep.subr.mxu0 0.0
    %1272 = vmatpush1.msra.mxu0 0.0
    %1273 = vmatprep.subr.mxu0 0.0
    %1274 = vmatpush1.msra.mxu0 0.0
    %1275 = vmatprep.subr.mxu0 0.0
    %1276 = vmatpush1.msra.mxu0 0.0
    %1277 = vmatprep.subr.mxu0 0.0
    %1278 = vmatpush1.msra.mxu0 0.0
    %1279 = vmatprep.subr.mxu0 0.0
    %1280 = vmatpush1.msra.mxu0 0.0
    %1281 = vmatprep.subr.mxu0 0.0
    %1282 = vmatpush1.msra.mxu0 0.0
    %1283 = vmatprep.subr.mxu0 0.0
    %1284 = vmatpush1.msra.mxu0 0.0
    %1285 = vmatprep.subr.mxu0 0.0
    %1286 = vmatpush1.msra.mxu0 0.0
    %1287 = vmatprep.subr.mxu0 0.0
    %1288 = vmatpush1.msra.mxu0 0.0
    %1289 = vmatprep.subr.mxu0 0.0
    %1290 = vmatpush1.msra.mxu0 0.0
    %1291 = vmatprep.subr.mxu0 0.0
    %1292 = vmatpush1.msra.mxu0 0.0
    %1293 = vmatprep.subr.mxu0 0.0
    %1294 = vmatpush1.msra.mxu0 0.0
    %1295 = vmatprep.subr.mxu0 0.0
    %1296 = vmatpush1.msra.mxu0 0.0
    %1297 = vmatprep.subr.mxu0 0.0
    %1298 = vmatpush1.msra.mxu0 0.0
    %1299 = vmatprep.subr.mxu0 0.0
    %1300 = vmatpush1.msra.mxu0 0.0
    %1301 = vmatprep.subr.mxu0 0.0
    %1302 = vmatpush1.msra.mxu0 0.0
    %1303 = vmatprep.subr.mxu0 0.0
    %1304 = vmatpush1.msra.mxu0 0.0
    %1305 = vmatprep.subr.mxu0 0.0
    %1306 = vmatpush1.msra.mxu0 0.0
    %1307 = vmatprep.subr.mxu0 0.0
    %1308 = vmatpush1.msra.mxu0 0.0
    %1309 = vmatprep.mubr.f32.mxu0 0.0
    %1310 = vmatmul.mubr.f32.gmra.mrb[0].mxu0 %v1240
    %v1311 = vpop.f32.mrb[0].mxu0
    %v1312 = vadd.f32 %v1236, %v1311
    %v1313 = vpop.f32.mrb[0].mxu0
    %1314 = vmatprep.mubr.f32.mxu0 0.0
    %1315 = vmatmul.mubr.f32.gmra.mrb[0].mxu0 %v1243
    %v1316 = vpop.f32.mrb[0].mxu0
    %v1317 = vadd.f32 %v1236, %v1316
    %v1318 = vpop.f32.mrb[0].mxu0
    %1319 = vdwg.mxu0
    %v1320 = vadd.f32 %v1127, %v1312
    %v1321 = vadd.f32 %v1128, %v1317
    %v1322 = vld [vmem:[%s15] sm:$0x1]
    %v1323 = vld [vmem:[%s16] sm:$0x1]
    %v1324 = vsel %vm152, %v1320, 0.0
    %1325 = vadd.xlane.f32.xlu0 %v1324
    %v1326 = vpop.xlane.xlu0 %1325
    %v1327 = vsel %vm152, %v1321, 0.0
    %1328 = vadd.xlane.f32.xlu0 %v1327
    %v1329 = vpop.xlane.xlu0 %1328
    %v1330 = vmul.f32 %v1326, %v1092
    %v1331 = vmul.f32 %v1329, %v1092
    %v1332 = vsub.f32 %v1320, %v1330
    %v1333 = vsub.f32 %v1321, %v1331
    %v1334 = vmul.f32 %v1332, %v1332
    %v1335 = vmul.f32 %v1333, %v1333
    %v1336 = vsel %vm152, %v1334, 0.0
    %1337 = vadd.xlane.f32.xlu0 %v1336
    %v1338 = vpop.xlane.xlu0 %1337
    %v1339 = vsel %vm152, %v1335, 0.0
    %1340 = vadd.xlane.f32.xlu0 %v1339
    %v1341 = vpop.xlane.xlu0 %1340
    %v1342 = vmul.f32 %v1338, %v1092
    %v1343 = vmul.f32 %v1341, %v1092
    %v1344 = vadd.f32 %v1342, 1e-05
    %v1345 = vadd.f32 %v1343, 1e-05
    %v1346 = vrsqrt.pop %v1344
    %v1347 = vrsqrt.pop %v1345
    %v1348 = vmul.f32 %v1332, %v1346
    %v1349 = vmul.f32 %v1333, %v1347
    %v1351 = vlaneseq
    %v1352 = vshrl.u32 %v1351, 7
    %v1353 = vsub.s32 0, %v1352
    %v1354 = vrot.slane %v1322, %v1353
    %v1356 = vmul.f32 %v1348, %v1354
    %v1357 = vmul.f32 %v1349, %v1354
    %v1359 = vlaneseq
    %v1360 = vshrl.u32 %v1359, 7
    %v1361 = vsub.s32 0, %v1360
    %v1362 = vrot.slane %v1323, %v1361
    %v1364 = vadd.f32 %v1356, %v1362
    %v1365 = vadd.f32 %v1357, %v1362
    %s1366 = scalar_lea.vmem %s3, 32
    %v1367 = vld [vmem:[%s1366] sm:$0xff]
    %v1368 = vld [vmem:[%s1366 + $0x8] sm:$0xff]
    %v1369 = vld [vmem:[%s1366 + $0x10] sm:$0xff]
    %v1370 = vld [vmem:[%s1366 + $0x18] sm:$0xff]
    %s1371 = scalar_lea.vmem %s4, 1
    %v1372 = vld [vmem:[%s1371] sm:$0x1]
    %v1374 = vlaneseq
    %v1375 = vshrl.u32 %v1374, 7
    %v1376 = vsub.s32 0, %v1375
    %v1377 = vrot.slane %v1372, %v1376
    %v1380 = vsel %vm152, %v1364, 0
    %v1383 = vsel %vm152, %v1365, 0
    %1385 = vmatprep.subr.mxu0 0.0
    %1386 = vmatpush1.msra.mxu0 %v1367
    %1387 = vmatprep.subr.mxu0 0.0
    %1388 = vmatpush1.msra.mxu0 %v1368
    %1389 = vmatprep.subr.mxu0 0.0
    %1390 = vmatpush1.msra.mxu0 %v1369
    %1391 = vmatprep.subr.mxu0 0.0
    %1392 = vmatpush1.msra.mxu0 %v1370
    %1393 = vmatprep.subr.mxu0 0.0
    %1394 = vmatpush1.msra.mxu0 0.0
    %1395 = vmatprep.subr.mxu0 0.0
    %1396 = vmatpush1.msra.mxu0 0.0
    %1397 = vmatprep.subr.mxu0 0.0
    %1398 = vmatpush1.msra.mxu0 0.0
    %1399 = vmatprep.subr.mxu0 0.0
    %1400 = vmatpush1.msra.mxu0 0.0
    %1401 = vmatprep.subr.mxu0 0.0
    %1402 = vmatpush1.msra.mxu0 0.0
    %1403 = vmatprep.subr.mxu0 0.0
    %1404 = vmatpush1.msra.mxu0 0.0
    %1405 = vmatprep.subr.mxu0 0.0
    %1406 = vmatpush1.msra.mxu0 0.0
    %1407 = vmatprep.subr.mxu0 0.0
    %1408 = vmatpush1.msra.mxu0 0.0
    %1409 = vmatprep.subr.mxu0 0.0
    %1410 = vmatpush1.msra.mxu0 0.0
    %1411 = vmatprep.subr.mxu0 0.0
    %1412 = vmatpush1.msra.mxu0 0.0
    %1413 = vmatprep.subr.mxu0 0.0
    %1414 = vmatpush1.msra.mxu0 0.0
    %1415 = vmatprep.subr.mxu0 0.0
    %1416 = vmatpush1.msra.mxu0 0.0
    %1417 = vmatprep.subr.mxu0 0.0
    %1418 = vmatpush1.msra.mxu0 0.0
    %1419 = vmatprep.subr.mxu0 0.0
    %1420 = vmatpush1.msra.mxu0 0.0
    %1421 = vmatprep.subr.mxu0 0.0
    %1422 = vmatpush1.msra.mxu0 0.0
    %1423 = vmatprep.subr.mxu0 0.0
    %1424 = vmatpush1.msra.mxu0 0.0
    %1425 = vmatprep.subr.mxu0 0.0
    %1426 = vmatpush1.msra.mxu0 0.0
    %1427 = vmatprep.subr.mxu0 0.0
    %1428 = vmatpush1.msra.mxu0 0.0
    %1429 = vmatprep.subr.mxu0 0.0
    %1430 = vmatpush1.msra.mxu0 0.0
    %1431 = vmatprep.subr.mxu0 0.0
    %1432 = vmatpush1.msra.mxu0 0.0
    %1433 = vmatprep.subr.mxu0 0.0
    %1434 = vmatpush1.msra.mxu0 0.0
    %1435 = vmatprep.subr.mxu0 0.0
    %1436 = vmatpush1.msra.mxu0 0.0
    %1437 = vmatprep.subr.mxu0 0.0
    %1438 = vmatpush1.msra.mxu0 0.0
    %1439 = vmatprep.subr.mxu0 0.0
    %1440 = vmatpush1.msra.mxu0 0.0
    %1441 = vmatprep.subr.mxu0 0.0
    %1442 = vmatpush1.msra.mxu0 0.0
    %1443 = vmatprep.subr.mxu0 0.0
    %1444 = vmatpush1.msra.mxu0 0.0
    %1445 = vmatprep.subr.mxu0 0.0
    %1446 = vmatpush1.msra.mxu0 0.0
    %1447 = vmatprep.subr.mxu0 0.0
    %1448 = vmatpush1.msra.mxu0 0.0
    %1449 = vmatprep.mubr.f32.mxu0 0.0
    %1450 = vmatmul.mubr.f32.gmra.mrb[0].mxu0 %v1380
    %v1451 = vpop.f32.mrb[0].mxu0
    %v1452 = vadd.f32 %v1377, %v1451
    %v1453 = vpop.f32.mrb[0].mxu0
    %1454 = vmatprep.mubr.f32.mxu0 0.0
    %1455 = vmatmul.mubr.f32.gmra.mrb[0].mxu0 %v1383
    %v1456 = vpop.f32.mrb[0].mxu0
    %v1457 = vadd.f32 %v1377, %v1456
    %v1458 = vpop.f32.mrb[0].mxu0
    %1459 = vdwg.mxu0
    %s1460 = scalar_lea.vmem %s5, 32
    %v1461 = vld [vmem:[%s1460] sm:$0xff]
    %v1462 = vld [vmem:[%s1460 + $0x8] sm:$0xff]
    %v1463 = vld [vmem:[%s1460 + $0x10] sm:$0xff]
    %v1464 = vld [vmem:[%s1460 + $0x18] sm:$0xff]
    %s1465 = scalar_lea.vmem [#allocation7], 1
    %v1466 = vld [vmem:[%s1465] sm:$0x1]
    %v1468 = vlaneseq
    %v1469 = vshrl.u32 %v1468, 7
    %v1470 = vsub.s32 0, %v1469
    %v1471 = vrot.slane %v1466, %v1470
    %1473 = vmatprep.subr.mxu0 0.0
    %1474 = vmatpush1.msra.mxu0 %v1461
    %1475 = vmatprep.subr.mxu0 0.0
    %1476 = vmatpush1.msra.mxu0 %v1462
    %1477 = vmatprep.subr.mxu0 0.0
    %1478 = vmatpush1.msra.mxu0 %v1463
    %1479 = vmatprep.subr.mxu0 0.0
    %1480 = vmatpush1.msra.mxu0 %v1464
    %1481 = vmatprep.subr.mxu0 0.0
    %1482 = vmatpush1.msra.mxu0 0.0
    %1483 = vmatprep.subr.mxu0 0.0
    %1484 = vmatpush1.msra.mxu0 0.0
    %1485 = vmatprep.subr.mxu0 0.0
    %1486 = vmatpush1.msra.mxu0 0.0
    %1487 = vmatprep.subr.mxu0 0.0
    %1488 = vmatpush1.msra.mxu0 0.0
    %1489 = vmatprep.subr.mxu0 0.0
    %1490 = vmatpush1.msra.mxu0 0.0
    %1491 = vmatprep.subr.mxu0 0.0
    %1492 = vmatpush1.msra.mxu0 0.0
    %1493 = vmatprep.subr.mxu0 0.0
    %1494 = vmatpush1.msra.mxu0 0.0
    %1495 = vmatprep.subr.mxu0 0.0
    %1496 = vmatpush1.msra.mxu0 0.0
    %1497 = vmatprep.subr.mxu0 0.0
    %1498 = vmatpush1.msra.mxu0 0.0
    %1499 = vmatprep.subr.mxu0 0.0
    %1500 = vmatpush1.msra.mxu0 0.0
    %1501 = vmatprep.subr.mxu0 0.0
    %1502 = vmatpush1.msra.mxu0 0.0
    %1503 = vmatprep.subr.mxu0 0.0
    %1504 = vmatpush1.msra.mxu0 0.0
    %1505 = vmatprep.subr.mxu0 0.0
    %1506 = vmatpush1.msra.mxu0 0.0
    %1507 = vmatprep.subr.mxu0 0.0
    %1508 = vmatpush1.msra.mxu0 0.0
    %1509 = vmatprep.subr.mxu0 0.0
    %1510 = vmatpush1.msra.mxu0 0.0
    %1511 = vmatprep.subr.mxu0 0.0
    %1512 = vmatpush1.msra.mxu0 0.0
    %1513 = vmatprep.subr.mxu0 0.0
    %1514 = vmatpush1.msra.mxu0 0.0
    %1515 = vmatprep.subr.mxu0 0.0
    %1516 = vmatpush1.msra.mxu0 0.0
    %1517 = vmatprep.subr.mxu0 0.0
    %1518 = vmatpush1.msra.mxu0 0.0
    %1519 = vmatprep.subr.mxu0 0.0
    %1520 = vmatpush1.msra.mxu0 0.0
    %1521 = vmatprep.subr.mxu0 0.0
    %1522 = vmatpush1.msra.mxu0 0.0
    %1523 = vmatprep.subr.mxu0 0.0
    %1524 = vmatpush1.msra.mxu0 0.0
    %1525 = vmatprep.subr.mxu0 0.0
    %1526 = vmatpush1.msra.mxu0 0.0
    %1527 = vmatprep.subr.mxu0 0.0
    %1528 = vmatpush1.msra.mxu0 0.0
    %1529 = vmatprep.subr.mxu0 0.0
    %1530 = vmatpush1.msra.mxu0 0.0
    %1531 = vmatprep.subr.mxu0 0.0
    %1532 = vmatpush1.msra.mxu0 0.0
    %1533 = vmatprep.subr.mxu0 0.0
    %1534 = vmatpush1.msra.mxu0 0.0
    %1535 = vmatprep.subr.mxu0 0.0
    %1536 = vmatpush1.msra.mxu0 0.0
    %1537 = vmatprep.mubr.f32.mxu0 0.0
    %1538 = vmatmul.mubr.f32.gmra.mrb[0].mxu0 %v246
    %v1539 = vpop.f32.mrb[0].mxu0
    %v1540 = vadd.f32 %v1471, %v1539
    %v1541 = vpop.f32.mrb[0].mxu0
    %1542 = vmatprep.mubr.f32.mxu0 0.0
    %1543 = vmatmul.mubr.f32.gmra.mrb[0].mxu0 %v249
    %v1544 = vpop.f32.mrb[0].mxu0
    %v1545 = vadd.f32 %v1471, %v1544
    %v1546 = vpop.f32.mrb[0].mxu0
    %1547 = vdwg.mxu0
    %v1549 = vsel %vm326, %v1452, 0
    %1551 = vmatprep.subr.mxu0 0.0
    %1552 = vmatpush1.xpose.msra.mxu0 %v1549
    %1553 = vmatprep.subr.mxu0 0.0
    %1554 = vmatpush1.xpose.msra.mxu0 0.0
    %1555 = vmatprep.subr.mxu0 0.0
    %1556 = vmatpush1.xpose.msra.mxu0 0.0
    %1557 = vmatprep.subr.mxu0 0.0
    %1558 = vmatpush1.xpose.msra.mxu0 0.0
    %1559 = vmatprep.subr.mxu0 0.0
    %1560 = vmatpush1.xpose.msra.mxu0 0.0
    %1561 = vmatprep.subr.mxu0 0.0
    %1562 = vmatpush1.xpose.msra.mxu0 0.0
    %1563 = vmatprep.subr.mxu0 0.0
    %1564 = vmatpush1.xpose.msra.mxu0 0.0
    %1565 = vmatprep.subr.mxu0 0.0
    %1566 = vmatpush1.xpose.msra.mxu0 0.0
    %1567 = vmatprep.subr.mxu0 0.0
    %1568 = vmatpush1.xpose.msra.mxu0 0.0
    %1569 = vmatprep.subr.mxu0 0.0
    %1570 = vmatpush1.xpose.msra.mxu0 0.0
    %1571 = vmatprep.subr.mxu0 0.0
    %1572 = vmatpush1.xpose.msra.mxu0 0.0
    %1573 = vmatprep.subr.mxu0 0.0
    %1574 = vmatpush1.xpose.msra.mxu0 0.0
    %1575 = vmatprep.subr.mxu0 0.0
    %1576 = vmatpush1.xpose.msra.mxu0 0.0
    %1577 = vmatprep.subr.mxu0 0.0
    %1578 = vmatpush1.xpose.msra.mxu0 0.0
    %1579 = vmatprep.subr.mxu0 0.0
    %1580 = vmatpush1.xpose.msra.mxu0 0.0
    %1581 = vmatprep.subr.mxu0 0.0
    %1582 = vmatpush1.xpose.msra.mxu0 0.0
    %1583 = vmatprep.subr.mxu0 0.0
    %1584 = vmatpush1.xpose.msra.mxu0 0.0
    %1585 = vmatprep.subr.mxu0 0.0
    %1586 = vmatpush1.xpose.msra.mxu0 0.0
    %1587 = vmatprep.subr.mxu0 0.0
    %1588 = vmatpush1.xpose.msra.mxu0 0.0
    %1589 = vmatprep.subr.mxu0 0.0
    %1590 = vmatpush1.xpose.msra.mxu0 0.0
    %1591 = vmatprep.subr.mxu0 0.0
    %1592 = vmatpush1.xpose.msra.mxu0 0.0
    %1593 = vmatprep.subr.mxu0 0.0
    %1594 = vmatpush1.xpose.msra.mxu0 0.0
    %1595 = vmatprep.subr.mxu0 0.0
    %1596 = vmatpush1.xpose.msra.mxu0 0.0
    %1597 = vmatprep.subr.mxu0 0.0
    %1598 = vmatpush1.xpose.msra.mxu0 0.0
    %1599 = vmatprep.subr.mxu0 0.0
    %1600 = vmatpush1.xpose.msra.mxu0 0.0
    %1601 = vmatprep.subr.mxu0 0.0
    %1602 = vmatpush1.xpose.msra.mxu0 0.0
    %1603 = vmatprep.subr.mxu0 0.0
    %1604 = vmatpush1.xpose.msra.mxu0 0.0
    %1605 = vmatprep.subr.mxu0 0.0
    %1606 = vmatpush1.xpose.msra.mxu0 0.0
    %1607 = vmatprep.subr.mxu0 0.0
    %1608 = vmatpush1.xpose.msra.mxu0 0.0
    %1609 = vmatprep.subr.mxu0 0.0
    %1610 = vmatpush1.xpose.msra.mxu0 0.0
    %1611 = vmatprep.subr.mxu0 0.0
    %1612 = vmatpush1.xpose.msra.mxu0 0.0
    %1613 = vmatprep.subr.mxu0 0.0
    %1614 = vmatpush1.xpose.msra.mxu0 0.0
    %1615 = vmatprep.mubr.f32.mxu0 0.0
    %1616 = vmatmul.mubr.f32.gmra.mrb[0].mxu0 %v1549
    %v1617 = vpop.f32.mrb[0].mxu0
    %v1618 = vadd.f32 0.0, %v1617
    %v1619 = vpop.f32.mrb[0].mxu0
    %1620 = vdwg.mxu0
    %v1622 = vsel %vm326, %v1457, 0
    %1624 = vmatprep.subr.mxu0 0.0
    %1625 = vmatpush1.xpose.msra.mxu0 %v1622
    %1626 = vmatprep.subr.mxu0 0.0
    %1627 = vmatpush1.xpose.msra.mxu0 0.0
    %1628 = vmatprep.subr.mxu0 0.0
    %1629 = vmatpush1.xpose.msra.mxu0 0.0
    %1630 = vmatprep.subr.mxu0 0.0
    %1631 = vmatpush1.xpose.msra.mxu0 0.0
    %1632 = vmatprep.subr.mxu0 0.0
    %1633 = vmatpush1.xpose.msra.mxu0 0.0
    %1634 = vmatprep.subr.mxu0 0.0
    %1635 = vmatpush1.xpose.msra.mxu0 0.0
    %1636 = vmatprep.subr.mxu0 0.0
    %1637 = vmatpush1.xpose.msra.mxu0 0.0
    %1638 = vmatprep.subr.mxu0 0.0
    %1639 = vmatpush1.xpose.msra.mxu0 0.0
    %1640 = vmatprep.subr.mxu0 0.0
    %1641 = vmatpush1.xpose.msra.mxu0 0.0
    %1642 = vmatprep.subr.mxu0 0.0
    %1643 = vmatpush1.xpose.msra.mxu0 0.0
    %1644 = vmatprep.subr.mxu0 0.0
    %1645 = vmatpush1.xpose.msra.mxu0 0.0
    %1646 = vmatprep.subr.mxu0 0.0
    %1647 = vmatpush1.xpose.msra.mxu0 0.0
    %1648 = vmatprep.subr.mxu0 0.0
    %1649 = vmatpush1.xpose.msra.mxu0 0.0
    %1650 = vmatprep.subr.mxu0 0.0
    %1651 = vmatpush1.xpose.msra.mxu0 0.0
    %1652 = vmatprep.subr.mxu0 0.0
    %1653 = vmatpush1.xpose.msra.mxu0 0.0
    %1654 = vmatprep.subr.mxu0 0.0
    %1655 = vmatpush1.xpose.msra.mxu0 0.0
    %1656 = vmatprep.subr.mxu0 0.0
    %1657 = vmatpush1.xpose.msra.mxu0 0.0
    %1658 = vmatprep.subr.mxu0 0.0
    %1659 = vmatpush1.xpose.msra.mxu0 0.0
    %1660 = vmatprep.subr.mxu0 0.0
    %1661 = vmatpush1.xpose.msra.mxu0 0.0
    %1662 = vmatprep.subr.mxu0 0.0
    %1663 = vmatpush1.xpose.msra.mxu0 0.0
    %1664 = vmatprep.subr.mxu0 0.0
    %1665 = vmatpush1.xpose.msra.mxu0 0.0
    %1666 = vmatprep.subr.mxu0 0.0
    %1667 = vmatpush1.xpose.msra.mxu0 0.0
    %1668 = vmatprep.subr.mxu0 0.0
    %1669 = vmatpush1.xpose.msra.mxu0 0.0
    %1670 = vmatprep.subr.mxu0 0.0
    %1671 = vmatpush1.xpose.msra.mxu0 0.0
    %1672 = vmatprep.subr.mxu0 0.0
    %1673 = vmatpush1.xpose.msra.mxu0 0.0
    %1674 = vmatprep.subr.mxu0 0.0
    %1675 = vmatpush1.xpose.msra.mxu0 0.0
    %1676 = vmatprep.subr.mxu0 0.0
    %1677 = vmatpush1.xpose.msra.mxu0 0.0
    %1678 = vmatprep.subr.mxu0 0.0
    %1679 = vmatpush1.xpose.msra.mxu0 0.0
    %1680 = vmatprep.subr.mxu0 0.0
    %1681 = vmatpush1.xpose.msra.mxu0 0.0
    %1682 = vmatprep.subr.mxu0 0.0
    %1683 = vmatpush1.xpose.msra.mxu0 0.0
    %1684 = vmatprep.subr.mxu0 0.0
    %1685 = vmatpush1.xpose.msra.mxu0 0.0
    %1686 = vmatprep.subr.mxu0 0.0
    %1687 = vmatpush1.xpose.msra.mxu0 0.0
    %1688 = vmatprep.mubr.f32.mxu0 0.0
    %1689 = vmatmul.mubr.f32.gmra.mrb[0].mxu0 %v1622
    %v1690 = vpop.f32.mrb[0].mxu0
    %v1691 = vadd.f32 0.0, %v1690
    %v1692 = vpop.f32.mrb[0].mxu0
    %1693 = vdwg.mxu0
    %v1694 = vmul.f32 %v1618, 0.25
    %v1695 = vmul.f32 %v1691, 0.25
    %v1696 = vadd.f32 %v1694, %v139
    %v1697 = vadd.f32 %v1695, %v139
    %v1698 = vsel %vm477, %v1696, -inf
    %1699 = vmax.xlane.f32.xlu0 %v1698
    %v1700 = vpop.xlane.xlu0 %1699
    %v1701 = vsel %vm477, %v1697, -inf
    %1702 = vmax.xlane.f32.xlu0 %v1701
    %v1703 = vpop.xlane.xlu0 %1702
    %v1704 = vsub.f32 %v1696, %v1700
    %v1705 = vsub.f32 %v1697, %v1703
    %v1706 = vmul.f32 %v1704, 1.442695
    %v1707 = vpow.pop %v1706
    %v1708 = vmul.f32 %v1705, 1.442695
    %v1709 = vpow.pop %v1708
    %v1710 = vsel %vm477, %v1707, 0.0
    %1711 = vadd.xlane.f32.xlu0 %v1710
    %v1712 = vpop.xlane.xlu0 %1711
    %v1713 = vsel %vm477, %v1709, 0.0
    %1714 = vadd.xlane.f32.xlu0 %v1713
    %v1715 = vpop.xlane.xlu0 %1714
    %v1716 = vrcp.pop %v1712
    %v1717 = vrcp.pop %v1715
    %v1718 = vmul.f32 %v1707, %v1716
    %v1719 = vmul.f32 %v1709, %v1717
    %v1720 = vsel %vm501, 0.0, %v1718
    %v1721 = vsel %vm501, 0.0, %v1719
    %v1723 = vsel %vm477, %v1720, 0
    %1725 = vmatprep.subr.mxu0 0.0
    %1726 = vmatpush1.msra.mxu0 %v1540
    %1727 = vmatprep.subr.mxu0 0.0
    %1728 = vmatpush1.msra.mxu0 0.0
    %1729 = vmatprep.subr.mxu0 0.0
    %1730 = vmatpush1.msra.mxu0 0.0
    %1731 = vmatprep.subr.mxu0 0.0
    %1732 = vmatpush1.msra.mxu0 0.0
    %1733 = vmatprep.subr.mxu0 0.0
    %1734 = vmatpush1.msra.mxu0 0.0
    %1735 = vmatprep.subr.mxu0 0.0
    %1736 = vmatpush1.msra.mxu0 0.0
    %1737 = vmatprep.subr.mxu0 0.0
    %1738 = vmatpush1.msra.mxu0 0.0
    %1739 = vmatprep.subr.mxu0 0.0
    %1740 = vmatpush1.msra.mxu0 0.0
    %1741 = vmatprep.subr.mxu0 0.0
    %1742 = vmatpush1.msra.mxu0 0.0
    %1743 = vmatprep.subr.mxu0 0.0
    %1744 = vmatpush1.msra.mxu0 0.0
    %1745 = vmatprep.subr.mxu0 0.0
    %1746 = vmatpush1.msra.mxu0 0.0
    %1747 = vmatprep.subr.mxu0 0.0
    %1748 = vmatpush1.msra.mxu0 0.0
    %1749 = vmatprep.subr.mxu0 0.0
    %1750 = vmatpush1.msra.mxu0 0.0
    %1751 = vmatprep.subr.mxu0 0.0
    %1752 = vmatpush1.msra.mxu0 0.0
    %1753 = vmatprep.subr.mxu0 0.0
    %1754 = vmatpush1.msra.mxu0 0.0
    %1755 = vmatprep.subr.mxu0 0.0
    %1756 = vmatpush1.msra.mxu0 0.0
    %1757 = vmatprep.subr.mxu0 0.0
    %1758 = vmatpush1.msra.mxu0 0.0
    %1759 = vmatprep.subr.mxu0 0.0
    %1760 = vmatpush1.msra.mxu0 0.0
    %1761 = vmatprep.subr.mxu0 0.0
    %1762 = vmatpush1.msra.mxu0 0.0
    %1763 = vmatprep.subr.mxu0 0.0
    %1764 = vmatpush1.msra.mxu0 0.0
    %1765 = vmatprep.subr.mxu0 0.0
    %1766 = vmatpush1.msra.mxu0 0.0
    %1767 = vmatprep.subr.mxu0 0.0
    %1768 = vmatpush1.msra.mxu0 0.0
    %1769 = vmatprep.subr.mxu0 0.0
    %1770 = vmatpush1.msra.mxu0 0.0
    %1771 = vmatprep.subr.mxu0 0.0
    %1772 = vmatpush1.msra.mxu0 0.0
    %1773 = vmatprep.subr.mxu0 0.0
    %1774 = vmatpush1.msra.mxu0 0.0
    %1775 = vmatprep.subr.mxu0 0.0
    %1776 = vmatpush1.msra.mxu0 0.0
    %1777 = vmatprep.subr.mxu0 0.0
    %1778 = vmatpush1.msra.mxu0 0.0
    %1779 = vmatprep.subr.mxu0 0.0
    %1780 = vmatpush1.msra.mxu0 0.0
    %1781 = vmatprep.subr.mxu0 0.0
    %1782 = vmatpush1.msra.mxu0 0.0
    %1783 = vmatprep.subr.mxu0 0.0
    %1784 = vmatpush1.msra.mxu0 0.0
    %1785 = vmatprep.subr.mxu0 0.0
    %1786 = vmatpush1.msra.mxu0 0.0
    %1787 = vmatprep.subr.mxu0 0.0
    %1788 = vmatpush1.msra.mxu0 0.0
    %1789 = vmatprep.mubr.f32.mxu0 0.0
    %1790 = vmatmul.mubr.f32.gmra.mrb[0].mxu0 %v1723
    %v1791 = vpop.f32.mrb[0].mxu0
    %v1792 = vadd.f32 0.0, %v1791
    %v1793 = vpop.f32.mrb[0].mxu0
    %1794 = vdwg.mxu0
    %v1796 = vsel %vm477, %v1721, 0
    %1798 = vmatprep.subr.mxu0 0.0
    %1799 = vmatpush1.msra.mxu0 %v1545
    %1800 = vmatprep.subr.mxu0 0.0
    %1801 = vmatpush1.msra.mxu0 0.0
    %1802 = vmatprep.subr.mxu0 0.0
    %1803 = vmatpush1.msra.mxu0 0.0
    %1804 = vmatprep.subr.mxu0 0.0
    %1805 = vmatpush1.msra.mxu0 0.0
    %1806 = vmatprep.subr.mxu0 0.0
    %1807 = vmatpush1.msra.mxu0 0.0
    %1808 = vmatprep.subr.mxu0 0.0
    %1809 = vmatpush1.msra.mxu0 0.0
    %1810 = vmatprep.subr.mxu0 0.0
    %1811 = vmatpush1.msra.mxu0 0.0
    %1812 = vmatprep.subr.mxu0 0.0
    %1813 = vmatpush1.msra.mxu0 0.0
    %1814 = vmatprep.subr.mxu0 0.0
    %1815 = vmatpush1.msra.mxu0 0.0
    %1816 = vmatprep.subr.mxu0 0.0
    %1817 = vmatpush1.msra.mxu0 0.0
    %1818 = vmatprep.subr.mxu0 0.0
    %1819 = vmatpush1.msra.mxu0 0.0
    %1820 = vmatprep.subr.mxu0 0.0
    %1821 = vmatpush1.msra.mxu0 0.0
    %1822 = vmatprep.subr.mxu0 0.0
    %1823 = vmatpush1.msra.mxu0 0.0
    %1824 = vmatprep.subr.mxu0 0.0
    %1825 = vmatpush1.msra.mxu0 0.0
    %1826 = vmatprep.subr.mxu0 0.0
    %1827 = vmatpush1.msra.mxu0 0.0
    %1828 = vmatprep.subr.mxu0 0.0
    %1829 = vmatpush1.msra.mxu0 0.0
    %1830 = vmatprep.subr.mxu0 0.0
    %1831 = vmatpush1.msra.mxu0 0.0
    %1832 = vmatprep.subr.mxu0 0.0
    %1833 = vmatpush1.msra.mxu0 0.0
    %1834 = vmatprep.subr.mxu0 0.0
    %1835 = vmatpush1.msra.mxu0 0.0
    %1836 = vmatprep.subr.mxu0 0.0
    %1837 = vmatpush1.msra.mxu0 0.0
    %1838 = vmatprep.subr.mxu0 0.0
    %1839 = vmatpush1.msra.mxu0 0.0
    %1840 = vmatprep.subr.mxu0 0.0
    %1841 = vmatpush1.msra.mxu0 0.0
    %1842 = vmatprep.subr.mxu0 0.0
    %1843 = vmatpush1.msra.mxu0 0.0
    %1844 = vmatprep.subr.mxu0 0.0
    %1845 = vmatpush1.msra.mxu0 0.0
    %1846 = vmatprep.subr.mxu0 0.0
    %1847 = vmatpush1.msra.mxu0 0.0
    %1848 = vmatprep.subr.mxu0 0.0
    %1849 = vmatpush1.msra.mxu0 0.0
    %1850 = vmatprep.subr.mxu0 0.0
    %1851 = vmatpush1.msra.mxu0 0.0
    %1852 = vmatprep.subr.mxu0 0.0
    %1853 = vmatpush1.msra.mxu0 0.0
    %1854 = vmatprep.subr.mxu0 0.0
    %1855 = vmatpush1.msra.mxu0 0.0
    %1856 = vmatprep.subr.mxu0 0.0
    %1857 = vmatpush1.msra.mxu0 0.0
    %1858 = vmatprep.subr.mxu0 0.0
    %1859 = vmatpush1.msra.mxu0 0.0
    %1860 = vmatprep.subr.mxu0 0.0
    %1861 = vmatpush1.msra.mxu0 0.0
    %1862 = vmatprep.mubr.f32.mxu0 0.0
    %1863 = vmatmul.mubr.f32.gmra.mrb[0].mxu0 %v1796
    %v1864 = vpop.f32.mrb[0].mxu0
    %v1865 = vadd.f32 0.0, %v1864
    %v1866 = vpop.f32.mrb[0].mxu0
    %1867 = vdwg.mxu0
    %1868 = vrot.lane.b32.xlu0 %v1452, 112
    %v1869 = vpop.permute.xlu0 %1868
    %v1870 = vsel %vm326, %v1869, 0
    %1872 = vmatprep.subr.mxu0 0.0
    %1873 = vmatpush1.xpose.msra.mxu0 %v1870
    %1874 = vmatprep.subr.mxu0 0.0
    %1875 = vmatpush1.xpose.msra.mxu0 0.0
    %1876 = vmatprep.subr.mxu0 0.0
    %1877 = vmatpush1.xpose.msra.mxu0 0.0
    %1878 = vmatprep.subr.mxu0 0.0
    %1879 = vmatpush1.xpose.msra.mxu0 0.0
    %1880 = vmatprep.subr.mxu0 0.0
    %1881 = vmatpush1.xpose.msra.mxu0 0.0
    %1882 = vmatprep.subr.mxu0 0.0
    %1883 = vmatpush1.xpose.msra.mxu0 0.0
    %1884 = vmatprep.subr.mxu0 0.0
    %1885 = vmatpush1.xpose.msra.mxu0 0.0
    %1886 = vmatprep.subr.mxu0 0.0
    %1887 = vmatpush1.xpose.msra.mxu0 0.0
    %1888 = vmatprep.subr.mxu0 0.0
    %1889 = vmatpush1.xpose.msra.mxu0 0.0
    %1890 = vmatprep.subr.mxu0 0.0
    %1891 = vmatpush1.xpose.msra.mxu0 0.0
    %1892 = vmatprep.subr.mxu0 0.0
    %1893 = vmatpush1.xpose.msra.mxu0 0.0
    %1894 = vmatprep.subr.mxu0 0.0
    %1895 = vmatpush1.xpose.msra.mxu0 0.0
    %1896 = vmatprep.subr.mxu0 0.0
    %1897 = vmatpush1.xpose.msra.mxu0 0.0
    %1898 = vmatprep.subr.mxu0 0.0
    %1899 = vmatpush1.xpose.msra.mxu0 0.0
    %1900 = vmatprep.subr.mxu0 0.0
    %1901 = vmatpush1.xpose.msra.mxu0 0.0
    %1902 = vmatprep.subr.mxu0 0.0
    %1903 = vmatpush1.xpose.msra.mxu0 0.0
    %1904 = vmatprep.subr.mxu0 0.0
    %1905 = vmatpush1.xpose.msra.mxu0 0.0
    %1906 = vmatprep.subr.mxu0 0.0
    %1907 = vmatpush1.xpose.msra.mxu0 0.0
    %1908 = vmatprep.subr.mxu0 0.0
    %1909 = vmatpush1.xpose.msra.mxu0 0.0
    %1910 = vmatprep.subr.mxu0 0.0
    %1911 = vmatpush1.xpose.msra.mxu0 0.0
    %1912 = vmatprep.subr.mxu0 0.0
    %1913 = vmatpush1.xpose.msra.mxu0 0.0
    %1914 = vmatprep.subr.mxu0 0.0
    %1915 = vmatpush1.xpose.msra.mxu0 0.0
    %1916 = vmatprep.subr.mxu0 0.0
    %1917 = vmatpush1.xpose.msra.mxu0 0.0
    %1918 = vmatprep.subr.mxu0 0.0
    %1919 = vmatpush1.xpose.msra.mxu0 0.0
    %1920 = vmatprep.subr.mxu0 0.0
    %1921 = vmatpush1.xpose.msra.mxu0 0.0
    %1922 = vmatprep.subr.mxu0 0.0
    %1923 = vmatpush1.xpose.msra.mxu0 0.0
    %1924 = vmatprep.subr.mxu0 0.0
    %1925 = vmatpush1.xpose.msra.mxu0 0.0
    %1926 = vmatprep.subr.mxu0 0.0
    %1927 = vmatpush1.xpose.msra.mxu0 0.0
    %1928 = vmatprep.subr.mxu0 0.0
    %1929 = vmatpush1.xpose.msra.mxu0 0.0
    %1930 = vmatprep.subr.mxu0 0.0
    %1931 = vmatpush1.xpose.msra.mxu0 0.0
    %1932 = vmatprep.subr.mxu0 0.0
    %1933 = vmatpush1.xpose.msra.mxu0 0.0
    %1934 = vmatprep.subr.mxu0 0.0
    %1935 = vmatpush1.xpose.msra.mxu0 0.0
    %1936 = vmatprep.mubr.f32.mxu0 0.0
    %1937 = vmatmul.mubr.f32.gmra.mrb[0].mxu0 %v1870
    %v1938 = vpop.f32.mrb[0].mxu0
    %v1939 = vadd.f32 0.0, %v1938
    %v1940 = vpop.f32.mrb[0].mxu0
    %1941 = vdwg.mxu0
    %1942 = vrot.lane.b32.xlu0 %v1457, 112
    %v1943 = vpop.permute.xlu0 %1942
    %v1944 = vsel %vm326, %v1943, 0
    %1946 = vmatprep.subr.mxu0 0.0
    %1947 = vmatpush1.xpose.msra.mxu0 %v1944
    %1948 = vmatprep.subr.mxu0 0.0
    %1949 = vmatpush1.xpose.msra.mxu0 0.0
    %1950 = vmatprep.subr.mxu0 0.0
    %1951 = vmatpush1.xpose.msra.mxu0 0.0
    %1952 = vmatprep.subr.mxu0 0.0
    %1953 = vmatpush1.xpose.msra.mxu0 0.0
    %1954 = vmatprep.subr.mxu0 0.0
    %1955 = vmatpush1.xpose.msra.mxu0 0.0
    %1956 = vmatprep.subr.mxu0 0.0
    %1957 = vmatpush1.xpose.msra.mxu0 0.0
    %1958 = vmatprep.subr.mxu0 0.0
    %1959 = vmatpush1.xpose.msra.mxu0 0.0
    %1960 = vmatprep.subr.mxu0 0.0
    %1961 = vmatpush1.xpose.msra.mxu0 0.0
    %1962 = vmatprep.subr.mxu0 0.0
    %1963 = vmatpush1.xpose.msra.mxu0 0.0
    %1964 = vmatprep.subr.mxu0 0.0
    %1965 = vmatpush1.xpose.msra.mxu0 0.0
    %1966 = vmatprep.subr.mxu0 0.0
    %1967 = vmatpush1.xpose.msra.mxu0 0.0
    %1968 = vmatprep.subr.mxu0 0.0
    %1969 = vmatpush1.xpose.msra.mxu0 0.0
    %1970 = vmatprep.subr.mxu0 0.0
    %1971 = vmatpush1.xpose.msra.mxu0 0.0
    %1972 = vmatprep.subr.mxu0 0.0
    %1973 = vmatpush1.xpose.msra.mxu0 0.0
    %1974 = vmatprep.subr.mxu0 0.0
    %1975 = vmatpush1.xpose.msra.mxu0 0.0
    %1976 = vmatprep.subr.mxu0 0.0
    %1977 = vmatpush1.xpose.msra.mxu0 0.0
    %1978 = vmatprep.subr.mxu0 0.0
    %1979 = vmatpush1.xpose.msra.mxu0 0.0
    %1980 = vmatprep.subr.mxu0 0.0
    %1981 = vmatpush1.xpose.msra.mxu0 0.0
    %1982 = vmatprep.subr.mxu0 0.0
    %1983 = vmatpush1.xpose.msra.mxu0 0.0
    %1984 = vmatprep.subr.mxu0 0.0
    %1985 = vmatpush1.xpose.msra.mxu0 0.0
    %1986 = vmatprep.subr.mxu0 0.0
    %1987 = vmatpush1.xpose.msra.mxu0 0.0
    %1988 = vmatprep.subr.mxu0 0.0
    %1989 = vmatpush1.xpose.msra.mxu0 0.0
    %1990 = vmatprep.subr.mxu0 0.0
    %1991 = vmatpush1.xpose.msra.mxu0 0.0
    %1992 = vmatprep.subr.mxu0 0.0
    %1993 = vmatpush1.xpose.msra.mxu0 0.0
    %1994 = vmatprep.subr.mxu0 0.0
    %1995 = vmatpush1.xpose.msra.mxu0 0.0
    %1996 = vmatprep.subr.mxu0 0.0
    %1997 = vmatpush1.xpose.msra.mxu0 0.0
    %1998 = vmatprep.subr.mxu0 0.0
    %1999 = vmatpush1.xpose.msra.mxu0 0.0
    %2000 = vmatprep.subr.mxu0 0.0
    %2001 = vmatpush1.xpose.msra.mxu0 0.0
    %2002 = vmatprep.subr.mxu0 0.0
    %2003 = vmatpush1.xpose.msra.mxu0 0.0
    %2004 = vmatprep.subr.mxu0 0.0
    %2005 = vmatpush1.xpose.msra.mxu0 0.0
    %2006 = vmatprep.subr.mxu0 0.0
    %2007 = vmatpush1.xpose.msra.mxu0 0.0
    %2008 = vmatprep.subr.mxu0 0.0
    %2009 = vmatpush1.xpose.msra.mxu0 0.0
    %2010 = vmatprep.mubr.f32.mxu0 0.0
    %2011 = vmatmul.mubr.f32.gmra.mrb[0].mxu0 %v1944
    %v2012 = vpop.f32.mrb[0].mxu0
    %v2013 = vadd.f32 0.0, %v2012
    %v2014 = vpop.f32.mrb[0].mxu0
    %2015 = vdwg.mxu0
    %v2016 = vmul.f32 %v1939, 0.25
    %v2017 = vmul.f32 %v2013, 0.25
    %v2018 = vadd.f32 %v2016, %v139
    %v2019 = vadd.f32 %v2017, %v139
    %v2020 = vsel %vm477, %v2018, -inf
    %2021 = vmax.xlane.f32.xlu0 %v2020
    %v2022 = vpop.xlane.xlu0 %2021
    %v2023 = vsel %vm477, %v2019, -inf
    %2024 = vmax.xlane.f32.xlu0 %v2023
    %v2025 = vpop.xlane.xlu0 %2024
    %v2026 = vsub.f32 %v2018, %v2022
    %v2027 = vsub.f32 %v2019, %v2025
    %v2028 = vmul.f32 %v2026, 1.442695
    %v2029 = vpow.pop %v2028
    %v2030 = vmul.f32 %v2027, 1.442695
    %v2031 = vpow.pop %v2030
    %v2032 = vsel %vm477, %v2029, 0.0
    %2033 = vadd.xlane.f32.xlu0 %v2032
    %v2034 = vpop.xlane.xlu0 %2033
    %v2035 = vsel %vm477, %v2031, 0.0
    %2036 = vadd.xlane.f32.xlu0 %v2035
    %v2037 = vpop.xlane.xlu0 %2036
    %v2038 = vrcp.pop %v2034
    %v2039 = vrcp.pop %v2037
    %v2040 = vmul.f32 %v2029, %v2038
    %v2041 = vmul.f32 %v2031, %v2039
    %v2042 = vsel %vm501, 0.0, %v2040
    %v2043 = vsel %vm501, 0.0, %v2041
    %2045 = vrot.lane.b32.xlu0 %v1540, 112
    %v2046 = vpop.permute.xlu0 %2045
    %v2049 = vsel %vm477, %v2042, 0
    %2051 = vmatprep.subr.mxu0 0.0
    %2052 = vmatpush1.msra.mxu0 %v2046
    %2053 = vmatprep.subr.mxu0 0.0
    %2054 = vmatpush1.msra.mxu0 0.0
    %2055 = vmatprep.subr.mxu0 0.0
    %2056 = vmatpush1.msra.mxu0 0.0
    %2057 = vmatprep.subr.mxu0 0.0
    %2058 = vmatpush1.msra.mxu0 0.0
    %2059 = vmatprep.subr.mxu0 0.0
    %2060 = vmatpush1.msra.mxu0 0.0
    %2061 = vmatprep.subr.mxu0 0.0
    %2062 = vmatpush1.msra.mxu0 0.0
    %2063 = vmatprep.subr.mxu0 0.0
    %2064 = vmatpush1.msra.mxu0 0.0
    %2065 = vmatprep.subr.mxu0 0.0
    %2066 = vmatpush1.msra.mxu0 0.0
    %2067 = vmatprep.subr.mxu0 0.0
    %2068 = vmatpush1.msra.mxu0 0.0
    %2069 = vmatprep.subr.mxu0 0.0
    %2070 = vmatpush1.msra.mxu0 0.0
    %2071 = vmatprep.subr.mxu0 0.0
    %2072 = vmatpush1.msra.mxu0 0.0
    %2073 = vmatprep.subr.mxu0 0.0
    %2074 = vmatpush1.msra.mxu0 0.0
    %2075 = vmatprep.subr.mxu0 0.0
    %2076 = vmatpush1.msra.mxu0 0.0
    %2077 = vmatprep.subr.mxu0 0.0
    %2078 = vmatpush1.msra.mxu0 0.0
    %2079 = vmatprep.subr.mxu0 0.0
    %2080 = vmatpush1.msra.mxu0 0.0
    %2081 = vmatprep.subr.mxu0 0.0
    %2082 = vmatpush1.msra.mxu0 0.0
    %2083 = vmatprep.subr.mxu0 0.0
    %2084 = vmatpush1.msra.mxu0 0.0
    %2085 = vmatprep.subr.mxu0 0.0
    %2086 = vmatpush1.msra.mxu0 0.0
    %2087 = vmatprep.subr.mxu0 0.0
    %2088 = vmatpush1.msra.mxu0 0.0
    %2089 = vmatprep.subr.mxu0 0.0
    %2090 = vmatpush1.msra.mxu0 0.0
    %2091 = vmatprep.subr.mxu0 0.0
    %2092 = vmatpush1.msra.mxu0 0.0
    %2093 = vmatprep.subr.mxu0 0.0
    %2094 = vmatpush1.msra.mxu0 0.0
    %2095 = vmatprep.subr.mxu0 0.0
    %2096 = vmatpush1.msra.mxu0 0.0
    %2097 = vmatprep.subr.mxu0 0.0
    %2098 = vmatpush1.msra.mxu0 0.0
    %2099 = vmatprep.subr.mxu0 0.0
    %2100 = vmatpush1.msra.mxu0 0.0
    %2101 = vmatprep.subr.mxu0 0.0
    %2102 = vmatpush1.msra.mxu0 0.0
    %2103 = vmatprep.subr.mxu0 0.0
    %2104 = vmatpush1.msra.mxu0 0.0
    %2105 = vmatprep.subr.mxu0 0.0
    %2106 = vmatpush1.msra.mxu0 0.0
    %2107 = vmatprep.subr.mxu0 0.0
    %2108 = vmatpush1.msra.mxu0 0.0
    %2109 = vmatprep.subr.mxu0 0.0
    %2110 = vmatpush1.msra.mxu0 0.0
    %2111 = vmatprep.subr.mxu0 0.0
    %2112 = vmatpush1.msra.mxu0 0.0
    %2113 = vmatprep.subr.mxu0 0.0
    %2114 = vmatpush1.msra.mxu0 0.0
    %2115 = vmatprep.mubr.f32.mxu0 0.0
    %2116 = vmatmul.mubr.f32.gmra.mrb[0].mxu0 %v2049
    %v2117 = vpop.f32.mrb[0].mxu0
    %v2118 = vadd.f32 0.0, %v2117
    %v2119 = vpop.f32.mrb[0].mxu0
    %2120 = vdwg.mxu0
    %2122 = vrot.lane.b32.xlu0 %v1545, 112
    %v2123 = vpop.permute.xlu0 %2122
    %v2126 = vsel %vm477, %v2043, 0
    %2128 = vmatprep.subr.mxu0 0.0
    %2129 = vmatpush1.msra.mxu0 %v2123
    %2130 = vmatprep.subr.mxu0 0.0
    %2131 = vmatpush1.msra.mxu0 0.0
    %2132 = vmatprep.subr.mxu0 0.0
    %2133 = vmatpush1.msra.mxu0 0.0
    %2134 = vmatprep.subr.mxu0 0.0
    %2135 = vmatpush1.msra.mxu0 0.0
    %2136 = vmatprep.subr.mxu0 0.0
    %2137 = vmatpush1.msra.mxu0 0.0
    %2138 = vmatprep.subr.mxu0 0.0
    %2139 = vmatpush1.msra.mxu0 0.0
    %2140 = vmatprep.subr.mxu0 0.0
    %2141 = vmatpush1.msra.mxu0 0.0
    %2142 = vmatprep.subr.mxu0 0.0
    %2143 = vmatpush1.msra.mxu0 0.0
    %2144 = vmatprep.subr.mxu0 0.0
    %2145 = vmatpush1.msra.mxu0 0.0
    %2146 = vmatprep.subr.mxu0 0.0
    %2147 = vmatpush1.msra.mxu0 0.0
    %2148 = vmatprep.subr.mxu0 0.0
    %2149 = vmatpush1.msra.mxu0 0.0
    %2150 = vmatprep.subr.mxu0 0.0
    %2151 = vmatpush1.msra.mxu0 0.0
    %2152 = vmatprep.subr.mxu0 0.0
    %2153 = vmatpush1.msra.mxu0 0.0
    %2154 = vmatprep.subr.mxu0 0.0
    %2155 = vmatpush1.msra.mxu0 0.0
    %2156 = vmatprep.subr.mxu0 0.0
    %2157 = vmatpush1.msra.mxu0 0.0
    %2158 = vmatprep.subr.mxu0 0.0
    %2159 = vmatpush1.msra.mxu0 0.0
    %2160 = vmatprep.subr.mxu0 0.0
    %2161 = vmatpush1.msra.mxu0 0.0
    %2162 = vmatprep.subr.mxu0 0.0
    %2163 = vmatpush1.msra.mxu0 0.0
    %2164 = vmatprep.subr.mxu0 0.0
    %2165 = vmatpush1.msra.mxu0 0.0
    %2166 = vmatprep.subr.mxu0 0.0
    %2167 = vmatpush1.msra.mxu0 0.0
    %2168 = vmatprep.subr.mxu0 0.0
    %2169 = vmatpush1.msra.mxu0 0.0
    %2170 = vmatprep.subr.mxu0 0.0
    %2171 = vmatpush1.msra.mxu0 0.0
    %2172 = vmatprep.subr.mxu0 0.0
    %2173 = vmatpush1.msra.mxu0 0.0
    %2174 = vmatprep.subr.mxu0 0.0
    %2175 = vmatpush1.msra.mxu0 0.0
    %2176 = vmatprep.subr.mxu0 0.0
    %2177 = vmatpush1.msra.mxu0 0.0
    %2178 = vmatprep.subr.mxu0 0.0
    %2179 = vmatpush1.msra.mxu0 0.0
    %2180 = vmatprep.subr.mxu0 0.0
    %2181 = vmatpush1.msra.mxu0 0.0
    %2182 = vmatprep.subr.mxu0 0.0
    %2183 = vmatpush1.msra.mxu0 0.0
    %2184 = vmatprep.subr.mxu0 0.0
    %2185 = vmatpush1.msra.mxu0 0.0
    %2186 = vmatprep.subr.mxu0 0.0
    %2187 = vmatpush1.msra.mxu0 0.0
    %2188 = vmatprep.subr.mxu0 0.0
    %2189 = vmatpush1.msra.mxu0 0.0
    %2190 = vmatprep.subr.mxu0 0.0
    %2191 = vmatpush1.msra.mxu0 0.0
    %2192 = vmatprep.mubr.f32.mxu0 0.0
    %2193 = vmatmul.mubr.f32.gmra.mrb[0].mxu0 %v2126
    %v2194 = vpop.f32.mrb[0].mxu0
    %v2195 = vadd.f32 0.0, %v2194
    %v2196 = vpop.f32.mrb[0].mxu0
    %2197 = vdwg.mxu0
    %2200 = vrot.lane.b32.xlu0 %v2118, 16
    %v2201 = vpop.permute.xlu0 %2200
    %2202 = vrot.lane.b32.xlu0 %v2195, 16
    %v2203 = vpop.permute.xlu0 %2202
    %v2206 = vsel %vm326, %v1792, %v2201
    %v2207 = vsel %vm326, %v1865, %v2203
    %s2208 = scalar_lea.vmem %s7, 32
    %v2209 = vld [vmem:[%s2208] sm:$0xff]
    %v2210 = vld [vmem:[%s2208 + $0x8] sm:$0xff]
    %v2211 = vld [vmem:[%s2208 + $0x10] sm:$0xff]
    %v2212 = vld [vmem:[%s2208 + $0x18] sm:$0xff]
    %s2213 = scalar_lea.vmem [#allocation8], 1
    %v2214 = vld [vmem:[%s2213] sm:$0x1]
    %v2216 = vlaneseq
    %v2217 = vshrl.u32 %v2216, 7
    %v2218 = vsub.s32 0, %v2217
    %v2219 = vrot.slane %v2214, %v2218
    %v2222 = vsel %vm152, %v2206, 0
    %v2225 = vsel %vm152, %v2207, 0
    %2227 = vmatprep.subr.mxu0 0.0
    %2228 = vmatpush1.msra.mxu0 %v2209
    %2229 = vmatprep.subr.mxu0 0.0
    %2230 = vmatpush1.msra.mxu0 %v2210
    %2231 = vmatprep.subr.mxu0 0.0
    %2232 = vmatpush1.msra.mxu0 %v2211
    %2233 = vmatprep.subr.mxu0 0.0
    %2234 = vmatpush1.msra.mxu0 %v2212
    %2235 = vmatprep.subr.mxu0 0.0
    %2236 = vmatpush1.msra.mxu0 0.0
    %2237 = vmatprep.subr.mxu0 0.0
    %2238 = vmatpush1.msra.mxu0 0.0
    %2239 = vmatprep.subr.mxu0 0.0
    %2240 = vmatpush1.msra.mxu0 0.0
    %2241 = vmatprep.subr.mxu0 0.0
    %2242 = vmatpush1.msra.mxu0 0.0
    %2243 = vmatprep.subr.mxu0 0.0
    %2244 = vmatpush1.msra.mxu0 0.0
    %2245 = vmatprep.subr.mxu0 0.0
    %2246 = vmatpush1.msra.mxu0 0.0
    %2247 = vmatprep.subr.mxu0 0.0
    %2248 = vmatpush1.msra.mxu0 0.0
    %2249 = vmatprep.subr.mxu0 0.0
    %2250 = vmatpush1.msra.mxu0 0.0
    %2251 = vmatprep.subr.mxu0 0.0
    %2252 = vmatpush1.msra.mxu0 0.0
    %2253 = vmatprep.subr.mxu0 0.0
    %2254 = vmatpush1.msra.mxu0 0.0
    %2255 = vmatprep.subr.mxu0 0.0
    %2256 = vmatpush1.msra.mxu0 0.0
    %2257 = vmatprep.subr.mxu0 0.0
    %2258 = vmatpush1.msra.mxu0 0.0
    %2259 = vmatprep.subr.mxu0 0.0
    %2260 = vmatpush1.msra.mxu0 0.0
    %2261 = vmatprep.subr.mxu0 0.0
    %2262 = vmatpush1.msra.mxu0 0.0
    %2263 = vmatprep.subr.mxu0 0.0
    %2264 = vmatpush1.msra.mxu0 0.0
    %2265 = vmatprep.subr.mxu0 0.0
    %2266 = vmatpush1.msra.mxu0 0.0
    %2267 = vmatprep.subr.mxu0 0.0
    %2268 = vmatpush1.msra.mxu0 0.0
    %2269 = vmatprep.subr.mxu0 0.0
    %2270 = vmatpush1.msra.mxu0 0.0
    %2271 = vmatprep.subr.mxu0 0.0
    %2272 = vmatpush1.msra.mxu0 0.0
    %2273 = vmatprep.subr.mxu0 0.0
    %2274 = vmatpush1.msra.mxu0 0.0
    %2275 = vmatprep.subr.mxu0 0.0
    %2276 = vmatpush1.msra.mxu0 0.0
    %2277 = vmatprep.subr.mxu0 0.0
    %2278 = vmatpush1.msra.mxu0 0.0
    %2279 = vmatprep.subr.mxu0 0.0
    %2280 = vmatpush1.msra.mxu0 0.0
    %2281 = vmatprep.subr.mxu0 0.0
    %2282 = vmatpush1.msra.mxu0 0.0
    %2283 = vmatprep.subr.mxu0 0.0
    %2284 = vmatpush1.msra.mxu0 0.0
    %2285 = vmatprep.subr.mxu0 0.0
    %2286 = vmatpush1.msra.mxu0 0.0
    %2287 = vmatprep.subr.mxu0 0.0
    %2288 = vmatpush1.msra.mxu0 0.0
    %2289 = vmatprep.subr.mxu0 0.0
    %2290 = vmatpush1.msra.mxu0 0.0
    %2291 = vmatprep.mubr.f32.mxu0 0.0
    %2292 = vmatmul.mubr.f32.gmra.mrb[0].mxu0 %v2222
    %v2293 = vpop.f32.mrb[0].mxu0
    %v2294 = vadd.f32 %v2219, %v2293
    %v2295 = vpop.f32.mrb[0].mxu0
    %2296 = vmatprep.mubr.f32.mxu0 0.0
    %2297 = vmatmul.mubr.f32.gmra.mrb[0].mxu0 %v2225
    %v2298 = vpop.f32.mrb[0].mxu0
    %v2299 = vadd.f32 %v2219, %v2298
    %v2300 = vpop.f32.mrb[0].mxu0
    %2301 = vdwg.mxu0
    %v2302 = vadd.f32 %v1364, %v2294
    %v2303 = vadd.f32 %v1365, %v2299
    %s2304 = scalar_lea.vmem [#allocation10], 1
    %v2305 = vld [vmem:[%s2304] sm:$0x1]
    %s2306 = scalar_lea.vmem %s10, 1
    %v2307 = vld [vmem:[%s2306] sm:$0x1]
    %v2308 = vsel %vm152, %v2302, 0.0
    %2309 = vadd.xlane.f32.xlu0 %v2308
    %v2310 = vpop.xlane.xlu0 %2309
    %v2311 = vsel %vm152, %v2303, 0.0
    %2312 = vadd.xlane.f32.xlu0 %v2311
    %v2313 = vpop.xlane.xlu0 %2312
    %v2314 = vmul.f32 %v2310, %v1092
    %v2315 = vmul.f32 %v2313, %v1092
    %v2316 = vsub.f32 %v2302, %v2314
    %v2317 = vsub.f32 %v2303, %v2315
    %v2318 = vmul.f32 %v2316, %v2316
    %v2319 = vmul.f32 %v2317, %v2317
    %v2320 = vsel %vm152, %v2318, 0.0
    %2321 = vadd.xlane.f32.xlu0 %v2320
    %v2322 = vpop.xlane.xlu0 %2321
    %v2323 = vsel %vm152, %v2319, 0.0
    %2324 = vadd.xlane.f32.xlu0 %v2323
    %v2325 = vpop.xlane.xlu0 %2324
    %v2326 = vmul.f32 %v2322, %v1092
    %v2327 = vmul.f32 %v2325, %v1092
    %v2328 = vadd.f32 %v2326, 1e-05
    %v2329 = vadd.f32 %v2327, 1e-05
    %v2330 = vrsqrt.pop %v2328
    %v2331 = vrsqrt.pop %v2329
    %v2332 = vmul.f32 %v2316, %v2330
    %v2333 = vmul.f32 %v2317, %v2331
    %v2335 = vlaneseq
    %v2336 = vshrl.u32 %v2335, 7
    %v2337 = vsub.s32 0, %v2336
    %v2338 = vrot.slane %v2305, %v2337
    %v2340 = vmul.f32 %v2332, %v2338
    %v2341 = vmul.f32 %v2333, %v2338
    %v2343 = vlaneseq
    %v2344 = vshrl.u32 %v2343, 7
    %v2345 = vsub.s32 0, %v2344
    %v2346 = vrot.slane %v2307, %v2345
    %v2348 = vadd.f32 %v2340, %v2346
    %v2349 = vadd.f32 %v2341, %v2346
    %s2350 = scalar_lea.vmem %s11, 32
    %v2351 = vld [vmem:[%s2350] sm:$0xff]
    %v2352 = vld [vmem:[%s2350 + $0x8] sm:$0xff]
    %v2353 = vld [vmem:[%s2350 + $0x10] sm:$0xff]
    %v2354 = vld [vmem:[%s2350 + $0x18] sm:$0xff]
    %s2355 = scalar_lea.vmem %s12, 1
    %v2356 = vld [vmem:[%s2355] sm:$0x1]
    %v2358 = vlaneseq
    %v2359 = vshrl.u32 %v2358, 7
    %v2360 = vsub.s32 0, %v2359
    %v2361 = vrot.slane %v2356, %v2360
    %v2364 = vsel %vm152, %v2348, 0
    %v2367 = vsel %vm152, %v2349, 0
    %2369 = vmatprep.subr.mxu0 0.0
    %2370 = vmatpush1.msra.mxu0 %v2351
    %2371 = vmatprep.subr.mxu0 0.0
    %2372 = vmatpush1.msra.mxu0 %v2352
    %2373 = vmatprep.subr.mxu0 0.0
    %2374 = vmatpush1.msra.mxu0 %v2353
    %2375 = vmatprep.subr.mxu0 0.0
    %2376 = vmatpush1.msra.mxu0 %v2354
    %2377 = vmatprep.subr.mxu0 0.0
    %2378 = vmatpush1.msra.mxu0 0.0
    %2379 = vmatprep.subr.mxu0 0.0
    %2380 = vmatpush1.msra.mxu0 0.0
    %2381 = vmatprep.subr.mxu0 0.0
    %2382 = vmatpush1.msra.mxu0 0.0
    %2383 = vmatprep.subr.mxu0 0.0
    %2384 = vmatpush1.msra.mxu0 0.0
    %2385 = vmatprep.subr.mxu0 0.0
    %2386 = vmatpush1.msra.mxu0 0.0
    %2387 = vmatprep.subr.mxu0 0.0
    %2388 = vmatpush1.msra.mxu0 0.0
    %2389 = vmatprep.subr.mxu0 0.0
    %2390 = vmatpush1.msra.mxu0 0.0
    %2391 = vmatprep.subr.mxu0 0.0
    %2392 = vmatpush1.msra.mxu0 0.0
    %2393 = vmatprep.subr.mxu0 0.0
    %2394 = vmatpush1.msra.mxu0 0.0
    %2395 = vmatprep.subr.mxu0 0.0
    %2396 = vmatpush1.msra.mxu0 0.0
    %2397 = vmatprep.subr.mxu0 0.0
    %2398 = vmatpush1.msra.mxu0 0.0
    %2399 = vmatprep.subr.mxu0 0.0
    %2400 = vmatpush1.msra.mxu0 0.0
    %2401 = vmatprep.subr.mxu0 0.0
    %2402 = vmatpush1.msra.mxu0 0.0
    %2403 = vmatprep.subr.mxu0 0.0
    %2404 = vmatpush1.msra.mxu0 0.0
    %2405 = vmatprep.subr.mxu0 0.0
    %2406 = vmatpush1.msra.mxu0 0.0
    %2407 = vmatprep.subr.mxu0 0.0
    %2408 = vmatpush1.msra.mxu0 0.0
    %2409 = vmatprep.subr.mxu0 0.0
    %2410 = vmatpush1.msra.mxu0 0.0
    %2411 = vmatprep.subr.mxu0 0.0
    %2412 = vmatpush1.msra.mxu0 0.0
    %2413 = vmatprep.subr.mxu0 0.0
    %2414 = vmatpush1.msra.mxu0 0.0
    %2415 = vmatprep.subr.mxu0 0.0
    %2416 = vmatpush1.msra.mxu0 0.0
    %2417 = vmatprep.subr.mxu0 0.0
    %2418 = vmatpush1.msra.mxu0 0.0
    %2419 = vmatprep.subr.mxu0 0.0
    %2420 = vmatpush1.msra.mxu0 0.0
    %2421 = vmatprep.subr.mxu0 0.0
    %2422 = vmatpush1.msra.mxu0 0.0
    %2423 = vmatprep.subr.mxu0 0.0
    %2424 = vmatpush1.msra.mxu0 0.0
    %2425 = vmatprep.subr.mxu0 0.0
    %2426 = vmatpush1.msra.mxu0 0.0
    %2427 = vmatprep.subr.mxu0 0.0
    %2428 = vmatpush1.msra.mxu0 0.0
    %2429 = vmatprep.subr.mxu0 0.0
    %2430 = vmatpush1.msra.mxu0 0.0
    %2431 = vmatprep.subr.mxu0 0.0
    %2432 = vmatpush1.msra.mxu0 0.0
    %2433 = vmatprep.mubr.f32.mxu0 0.0
    %2434 = vmatmul.mubr.f32.gmra.mrb[0].mxu0 %v2364
    %v2435 = vpop.f32.mrb[0].mxu0
    %v2436 = vadd.f32 %v2361, %v2435
    %v2437 = vpop.f32.mrb[0].mxu0
    %2438 = vmatprep.mubr.f32.mxu0 0.0
    %2439 = vmatmul.mubr.f32.gmra.mrb[0].mxu0 %v2367
    %v2440 = vpop.f32.mrb[0].mxu0
    %v2441 = vadd.f32 %v2361, %v2440
    %v2442 = vpop.f32.mrb[0].mxu0
    %2443 = vdwg.mxu0
    %v2444 = vmax.f32 %v2436, 0.0
    %v2445 = vmax.f32 %v2441, 0.0
    %s2446 = scalar_lea.vmem %s13, 64
    %v2447 = vld [vmem:[%s2446] sm:$0xff]
    %v2448 = vld [vmem:[%s2446 + $0x8] sm:$0xff]
    %v2449 = vld [vmem:[%s2446 + $0x10] sm:$0xff]
    %v2450 = vld [vmem:[%s2446 + $0x18] sm:$0xff]
    %v2451 = vld [vmem:[%s2446 + $0x20] sm:$0xff]
    %v2452 = vld [vmem:[%s2446 + $0x28] sm:$0xff]
    %v2453 = vld [vmem:[%s2446 + $0x30] sm:$0xff]
    %v2454 = vld [vmem:[%s2446 + $0x38] sm:$0xff]
    %s2455 = scalar_lea.vmem %s14, 1
    %v2456 = vld [vmem:[%s2455] sm:$0x1]
    %v2458 = vlaneseq
    %v2459 = vshrl.u32 %v2458, 7
    %v2460 = vsub.s32 0, %v2459
    %v2461 = vrot.slane %v2456, %v2460
    %v2464 = vsel %vm1238, %v2444, 0
    %v2467 = vsel %vm1238, %v2445, 0
    %2469 = vmatprep.subr.mxu0 0.0
    %2470 = vmatpush1.msra.mxu0 %v2447
    %2471 = vmatprep.subr.mxu0 0.0
    %2472 = vmatpush1.msra.mxu0 %v2448
    %2473 = vmatprep.subr.mxu0 0.0
    %2474 = vmatpush1.msra.mxu0 %v2449
    %2475 = vmatprep.subr.mxu0 0.0
    %2476 = vmatpush1.msra.mxu0 %v2450
    %2477 = vmatprep.subr.mxu0 0.0
    %2478 = vmatpush1.msra.mxu0 %v2451
    %2479 = vmatprep.subr.mxu0 0.0
    %2480 = vmatpush1.msra.mxu0 %v2452
    %2481 = vmatprep.subr.mxu0 0.0
    %2482 = vmatpush1.msra.mxu0 %v2453
    %2483 = vmatprep.subr.mxu0 0.0
    %2484 = vmatpush1.msra.mxu0 %v2454
    %2485 = vmatprep.subr.mxu0 0.0
    %2486 = vmatpush1.msra.mxu0 0.0
    %2487 = vmatprep.subr.mxu0 0.0
    %2488 = vmatpush1.msra.mxu0 0.0
    %2489 = vmatprep.subr.mxu0 0.0
    %2490 = vmatpush1.msra.mxu0 0.0
    %2491 = vmatprep.subr.mxu0 0.0
    %2492 = vmatpush1.msra.mxu0 0.0
    %2493 = vmatprep.subr.mxu0 0.0
    %2494 = vmatpush1.msra.mxu0 0.0
    %2495 = vmatprep.subr.mxu0 0.0
    %2496 = vmatpush1.msra.mxu0 0.0
    %2497 = vmatprep.subr.mxu0 0.0
    %2498 = vmatpush1.msra.mxu0 0.0
    %2499 = vmatprep.subr.mxu0 0.0
    %2500 = vmatpush1.msra.mxu0 0.0
    %2501 = vmatprep.subr.mxu0 0.0
    %2502 = vmatpush1.msra.mxu0 0.0
    %2503 = vmatprep.subr.mxu0 0.0
    %2504 = vmatpush1.msra.mxu0 0.0
    %2505 = vmatprep.subr.mxu0 0.0
    %2506 = vmatpush1.msra.mxu0 0.0
    %2507 = vmatprep.subr.mxu0 0.0
    %2508 = vmatpush1.msra.mxu0 0.0
    %2509 = vmatprep.subr.mxu0 0.0
    %2510 = vmatpush1.msra.mxu0 0.0
    %2511 = vmatprep.subr.mxu0 0.0
    %2512 = vmatpush1.msra.mxu0 0.0
    %2513 = vmatprep.subr.mxu0 0.0
    %2514 = vmatpush1.msra.mxu0 0.0
    %2515 = vmatprep.subr.mxu0 0.0
    %2516 = vmatpush1.msra.mxu0 0.0
    %2517 = vmatprep.subr.mxu0 0.0
    %2518 = vmatpush1.msra.mxu0 0.0
    %2519 = vmatprep.subr.mxu0 0.0
    %2520 = vmatpush1.msra.mxu0 0.0
    %2521 = vmatprep.subr.mxu0 0.0
    %2522 = vmatpush1.msra.mxu0 0.0
    %2523 = vmatprep.subr.mxu0 0.0
    %2524 = vmatpush1.msra.mxu0 0.0
    %2525 = vmatprep.subr.mxu0 0.0
    %2526 = vmatpush1.msra.mxu0 0.0
    %2527 = vmatprep.subr.mxu0 0.0
    %2528 = vmatpush1.msra.mxu0 0.0
    %2529 = vmatprep.subr.mxu0 0.0
    %2530 = vmatpush1.msra.mxu0 0.0
    %2531 = vmatprep.subr.mxu0 0.0
    %2532 = vmatpush1.msra.mxu0 0.0
    %2533 = vmatprep.mubr.f32.mxu0 0.0
    %2534 = vmatmul.mubr.f32.gmra.mrb[0].mxu0 %v2464
    %v2535 = vpop.f32.mrb[0].mxu0
    %v2536 = vadd.f32 %v2461, %v2535
    %v2537 = vpop.f32.mrb[0].mxu0
    %2538 = vmatprep.mubr.f32.mxu0 0.0
    %2539 = vmatmul.mubr.f32.gmra.mrb[0].mxu0 %v2467
    %v2540 = vpop.f32.mrb[0].mxu0
    %v2541 = vadd.f32 %v2461, %v2540
    %v2542 = vpop.f32.mrb[0].mxu0
    %2543 = vdwg.mxu0
    %v2544 = vadd.f32 %v2348, %v2536
    %v2545 = vadd.f32 %v2349, %v2541
    %s2546 = scalar_lea.vmem %s15, 1
    %v2547 = vld [vmem:[%s2546] sm:$0x1]
    %s2548 = scalar_lea.vmem %s16, 1
    %v2549 = vld [vmem:[%s2548] sm:$0x1]
    %v2550 = vsel %vm152, %v2544, 0.0
    %2551 = vadd.xlane.f32.xlu0 %v2550
    %v2552 = vpop.xlane.xlu0 %2551
    %v2553 = vsel %vm152, %v2545, 0.0
    %2554 = vadd.xlane.f32.xlu0 %v2553
    %v2555 = vpop.xlane.xlu0 %2554
    %v2556 = vmul.f32 %v2552, %v1092
    %v2557 = vmul.f32 %v2555, %v1092
    %v2558 = vsub.f32 %v2544, %v2556
    %v2559 = vsub.f32 %v2545, %v2557
    %v2560 = vmul.f32 %v2558, %v2558
    %v2561 = vmul.f32 %v2559, %v2559
    %v2562 = vsel %vm152, %v2560, 0.0
    %2563 = vadd.xlane.f32.xlu0 %v2562
    %v2564 = vpop.xlane.xlu0 %2563
    %v2565 = vsel %vm152, %v2561, 0.0
    %2566 = vadd.xlane.f32.xlu0 %v2565
    %v2567 = vpop.xlane.xlu0 %2566
    %v2568 = vmul.f32 %v2564, %v1092
    %v2569 = vmul.f32 %v2567, %v1092
    %v2570 = vadd.f32 %v2568, 1e-05
    %v2571 = vadd.f32 %v2569, 1e-05
    %v2572 = vrsqrt.pop %v2570
    %v2573 = vrsqrt.pop %v2571
    %v2574 = vmul.f32 %v2558, %v2572
    %v2575 = vmul.f32 %v2559, %v2573
    %v2577 = vlaneseq
    %v2578 = vshrl.u32 %v2577, 7
    %v2579 = vsub.s32 0, %v2578
    %v2580 = vrot.slane %v2547, %v2579
    %v2582 = vmul.f32 %v2574, %v2580
    %v2583 = vmul.f32 %v2575, %v2580
    %v2585 = vlaneseq
    %v2586 = vshrl.u32 %v2585, 7
    %v2587 = vsub.s32 0, %v2586
    %v2588 = vrot.slane %v2549, %v2587
    %v2590 = vadd.f32 %v2582, %v2588
    %v2591 = vadd.f32 %v2583, %v2588
    %2592 = vst.msk [vmem:[#allocation11] sm:$0xff] %vm152, %v2590
    %2593 = vst.msk [vmem:[#allocation11 + $0x8] sm:$0xff] %vm152, %v2591
    // Predicated region
    $region90: #{tpu_custom_call.1} parent=1 // pred_check
      _
    $region91: #{tpu_custom_call.1} parent=1 // pred_check_branch
      %2595 = sbr.rel (0) target = $region93
    $region92: #{tpu_custom_call.1} parent=1 // pred_region
      %s2597 = ssub.s32 256, 256
      %2598 = vsyncadd [#allocation4], %s2597
      %s2599 = sshll.u32 [#allocation11], 4
      %s2600 = int_to_ptr.vmem [resolvable:$true] %s2599
      %2605 = dma.vmem_to_hbm [thread:$0]  %s2600, 256, %s17, [#allocation4], 128, 128, 8
    $region93: #{tpu_custom_call.1} parent=1 // pred_fallthru
      _
    // Predicated region
    $region94: #{tpu_custom_call.1} parent=1 // pred_check
      _
    $region95: #{tpu_custom_call.1} parent=1 // pred_check_branch
      %2607 = sbr.rel (0) target = $region97
    $region96: #{tpu_custom_call.1} parent=1 // pred_region
      %2608 = dma.done [#allocation4], 256
    $region97: #{tpu_custom_call.1} parent=1 // pred_fallthru
      _
    %2609 = vsyncpa [#allocation3], 1
    %2610 = vsyncpa [#allocation6], 1
    %2611 = vsyncpa [#allocation9], 1
    %2612 = vsyncpa [#allocation4], 1

</llo_original>
